<compile_context>
chip_gen: v6e
topology: v6e:2x2x1
jax: 0.10.0
libtpu: 0.0.40
codegen_flags: <defaults>
</compile_context>

<pallas_src>
import functools

import jax
import jax.numpy as jnp
from jax.experimental import pallas as pl
from jax.experimental.pallas import tpu as pltpu


# ----------------------------------------------------------------------------
# Kernel: one batch tile (TB rows) runs the full GRU stack + fc.
# ----------------------------------------------------------------------------
def _encoder_gru_kernel(x_ref,        # (T, TB, Dp)  bf16   time-major layer-0 input
                        wih0_ref,     # (Dp, 3Hp)    bf16
                        wihr_ref,     # (max(L-1,1), Hp, 3Hp) bf16
                        whh_ref,      # (L, Hp, 3Hp) bf16
                        bih_ref,      # (L, 1, 3Hp)  f32    folded b_ih (+ b_hr/b_hz)
                        bhn_ref,      # (L, 1, Hp)   f32    b_hn only
                        wfc_ref,      # (Hp, Lp)     bf16
                        bfc_ref,      # (1, Lp)      f32
                        out_ref,      # (TB, Lp)     f32
                        gi_ref,       # scratch (T, TB, 3Hp) bf16
                        seq_ref,      # scratch (T or 1, TB, Hp) bf16
                        h_ref,        # scratch (TB, Hp)     f32
                        *, num_layers, seq_len, hidden_pad):
    T = seq_len
    Hp = hidden_pad
    L = num_layers
    TB = out_ref.shape[0]
    Dp = x_ref.shape[2]

    for layer in range(L):            # L is small & static: unroll over layers
        # ---- batched (non-recurrent) input projection for ALL timesteps ----
        if layer == 0:
            xin = x_ref[...].reshape(T * TB, Dp)                     # bf16
            wih = wih0_ref[...]
        else:
            xin = seq_ref[...].reshape(T * TB, Hp)                   # bf16
            wih = wihr_ref[layer - 1]
        gi_all = (jnp.dot(xin, wih, preferred_element_type=jnp.float32)
                  + bih_ref[layer])                                  # (T*TB, 3Hp) f32
        gi_ref[...] = gi_all.astype(jnp.bfloat16).reshape(T, TB, 3 * Hp)

        whh = whh_ref[layer]                           # (Hp, 3Hp) bf16
        bhn_b = jnp.broadcast_to(bhn_ref[layer], (TB, Hp))  # hoisted out of loop
        h_ref[...] = jnp.zeros_like(h_ref)
        write_seq = layer < L - 1      # only deeper layers need the full sequence

        # TODO(synk): holding Whh stationary in the MXU (matmul_push_rhs /
        # matmul_acc_lhs / matmul_pop) would avoid re-pushing the recurrent
        # weights every timestep; kept as jnp.dot for lowering robustness.
        def step(t, carry):
            h = h_ref[...]                                           # (TB, Hp) f32
            gh = jnp.dot(h.astype(jnp.bfloat16), whh,
                         preferred_element_type=jnp.float32)         # (TB, 3Hp)
            gi = gi_ref[t].astype(jnp.float32)                       # (TB, 3Hp)
            # fused r/z: one wide sigmoid over 2*Hp lanes, 128-aligned slices
            rz = jax.nn.sigmoid(gi[:, 0:2 * Hp] + gh[:, 0:2 * Hp])
            r = rz[:, 0:Hp]
            z = rz[:, Hp:2 * Hp]
            nn_ = jnp.tanh(gi[:, 2 * Hp:3 * Hp]
                           + r * (gh[:, 2 * Hp:3 * Hp] + bhn_b))
            h_new = (1.0 - z) * nn_ + z * h
            h_ref[...] = h_new
            if write_seq:
                seq_ref[t] = h_new.astype(jnp.bfloat16)
            return carry

        unroll = True if T <= 16 else 4
        jax.lax.fori_loop(0, T, step, 0, unroll=unroll)

    # ---- fc on the last timestep's top-layer hidden state ----
    out = (jnp.dot(h_ref[...].astype(jnp.bfloat16), wfc_ref[...],
                   preferred_element_type=jnp.float32) + bfc_ref[...])
    out_ref[...] = out.astype(out_ref.dtype)


# ----------------------------------------------------------------------------
# Wrapper: padding / bias folding / tiling + pallas_call
# ----------------------------------------------------------------------------
def _round_up(v, m):
    return (v + m - 1) // m * m


def _pad_last_gates(w, H, Hp):
    """(..., 3H) -> (..., 3*Hp): each gate block [r|z|n] zero-padded to Hp lanes."""
    if Hp == H:
        return w
    cfg = [(0, 0)] * (w.ndim - 1) + [(0, Hp - H)]
    return jnp.concatenate(
        [jnp.pad(w[..., g * H:(g + 1) * H], cfg) for g in range(3)], axis=-1)


def _pad_axis(w, axis, new_size):
    if w.shape[axis] == new_size:
        return w
    cfg = [(0, 0)] * w.ndim
    cfg[axis] = (0, new_size - w.shape[axis])
    return jnp.pad(w, cfg)


def _vmem_budget_bytes(T, TB, Dp, Hp, Lp, L, weight_bytes):
    """Per-TensorCore VMEM needed by this kernel (double-buffered tiles)."""
    x_tile = T * TB * Dp * 2                     # bf16 input tile
    gi = T * TB * 3 * Hp * 2                     # bf16 scratch
    seq = (T if L > 1 else 1) * TB * Hp * 2      # bf16 scratch
    h = TB * Hp * 4                              # f32 scratch
    out_t = TB * Lp * 4                          # f32 output tile
    return 2 * x_tile + gi + seq + h + 2 * out_t + 2 * weight_bytes + (2 << 20)


def encoder_gru1_forward(x, params, *, rec_layers, rec_dims, latent_dim,
                         batch_tile=None):
    """x: (b, n, T, d) float32 -> (b, n, latent_dim) float32."""
    b, n, T, d = x.shape
    B = b * n
    H = rec_dims
    L = rec_layers
    Hp = _round_up(H, 128)
    Lp = _round_up(latent_dim, 128)
    Dp = _round_up(d, 128)

    wih0, wihr, whh, bih, bhh, wfc, bfc = params

    # --- bias folding (gate order r,z,n):
    #     gi = x@Wih + (b_ih + [b_hr, b_hz, 0]);   gh = h@Whh (no bias);
    #     n-gate adds b_hn inside the r * (...) term.
    bih_fold = bih.at[:, :, 0:2 * H].add(bhh[:, :, 0:2 * H])
    bhn = bhh[:, :, 2 * H:3 * H]

    # --- lane-dense padded / bf16 weights (zero padding keeps padded h lanes 0)
    wih0_p = _pad_axis(_pad_last_gates(wih0, H, Hp), 0, Dp).astype(jnp.bfloat16)
    wihr_p = _pad_axis(_pad_last_gates(wihr, H, Hp), 1, Hp).astype(jnp.bfloat16)
    whh_p = _pad_axis(_pad_last_gates(whh, H, Hp), 1, Hp).astype(jnp.bfloat16)
    bih_p = _pad_last_gates(bih_fold, H, Hp).astype(jnp.float32)
    bhn_p = _pad_axis(bhn, 2, Hp).astype(jnp.float32)
    wfc_p = _pad_axis(_pad_axis(wfc, 0, Hp), 1, Lp).astype(jnp.bfloat16)
    bfc_p = _pad_axis(bfc, 1, Lp).astype(jnp.float32)

    weight_bytes = sum(int(a.size) * a.dtype.itemsize for a in
                       (wih0_p, wihr_p, whh_p, bih_p, bhn_p, wfc_p, bfc_p))

    # --- VMEM cap for this chip generation (3/4 of physical, fallback 64 MiB)
    try:
        info = pltpu.get_tpu_info()
        vmem_cap = int(getattr(info, "vmem_capacity_bytes", 64 * 1024 * 1024))
    except Exception:  # pragma: no cover - conservative fallback off-TPU
        vmem_cap = 64 * 1024 * 1024
    cap = (vmem_cap * 3) // 4

    # --- batch tile selection: TB multiple of 16 (bf16 packing), budget-gated
    if batch_tile is None:
        if B >= 512:
            TB = 256                    # fill the 256-wide MXU M dim (v6e/v7x)
        elif B >= 128:
            TB = 128
        else:
            TB = max(16, _round_up(B, 16))
        while TB > 16 and _vmem_budget_bytes(T, TB, Dp, Hp, Lp, L,
                                             weight_bytes) > cap:
            TB = max(16, _round_up(TB // 2, 16))
    else:
        TB = batch_tile
    assert TB % 16 == 0, "batch_tile must be a multiple of 16"

    # --- grid shaping: no forced padded tile; even, balanced steps when > 1
    steps = -(-B // TB)
    if steps > 1 and steps % 2 == 1:
        tb_alt = max(16, _round_up(-(-B // (steps + 1)), 16))
        if _vmem_budget_bytes(T, tb_alt, Dp, Hp, Lp, L, weight_bytes) <= cap:
            TB = tb_alt
            steps = -(-B // TB)
            if steps % 2 == 1:
                steps += 1              # one extra tile, but balanced halves
    B_pad = TB * steps
    grid = (steps,)

    budget = _vmem_budget_bytes(T, TB, Dp, Hp, Lp, L, weight_bytes)
    vmem_limit = int(min(cap, max(32 * 1024 * 1024, budget)))

    # --- time-major, batch/feature-padded, bf16 input
    x_tm = jnp.transpose(x.reshape(B, T, d), (1, 0, 2))          # (T, B, d)
    x_p = _pad_axis(_pad_axis(x_tm, 1, B_pad), 2, Dp).astype(jnp.bfloat16)

    kernel = functools.partial(_encoder_gru_kernel,
                               num_layers=L, seq_len=T, hidden_pad=Hp)

    # --- advisory cost estimate (weights are DMA'd once: constant index_map)
    flops = int(2 * B_pad * T * (Dp * 3 * Hp + (L - 1) * Hp * 3 * Hp
                                 + L * Hp * 3 * Hp) + 2 * B_pad * Hp * Lp)
    transcendentals = int(B_pad * T * L * 3 * Hp)
    bytes_accessed = (int(x_p.size) * x_p.dtype.itemsize
                      + weight_bytes + B_pad * Lp * 4)

    def full(a):
        return pl.BlockSpec(a.shape, lambda i: (0,) * a.ndim)

    seq_t = T if L > 1 else 1
    out_p = pl.pallas_call(
        kernel,
        out_shape=jax.ShapeDtypeStruct((B_pad, Lp), jnp.float32),
        grid=grid,
        in_specs=[
            pl.BlockSpec((T, TB, Dp), lambda i: (0, i, 0)),      # x tile
            full(wih0_p), full(wihr_p), full(whh_p),
            full(bih_p), full(bhn_p), full(wfc_p), full(bfc_p),
        ],
        out_specs=pl.BlockSpec((TB, Lp), lambda i: (i, 0)),
        scratch_shapes=[
            pltpu.VMEM((T, TB, 3 * Hp), jnp.bfloat16),   # gi for all timesteps
            pltpu.VMEM((seq_t, TB, Hp), jnp.bfloat16),   # layer output sequence
            pltpu.VMEM((TB, Hp), jnp.float32),           # hidden state
        ],
        compiler_params=pltpu.CompilerParams(
            dimension_semantics=("parallel",),
            vmem_limit_bytes=vmem_limit),
        cost_estimate=pl.CostEstimate(flops=flops,
                                      transcendentals=transcendentals,
                                      bytes_accessed=int(bytes_accessed)),
    )(x_p, wih0_p, wihr_p, whh_p, bih_p, bhn_p, wfc_p, bfc_p)

    return out_p[:B, :latent_dim].reshape(b, n, latent_dim)


# ----------------------------------------------------------------------------
# Deterministic parameter construction (synthetic init, gate order r,z,n).
# ----------------------------------------------------------------------------
def make_params(key, input_dim, rec_dims, rec_layers, latent_dim):
    H, L, d = rec_dims, rec_layers, input_dim
    keys = jax.random.split(key, 7)
    scale = 0.1
    wih0 = scale * jax.random.normal(keys[0], (d, 3 * H), jnp.float32)
    wihr = scale * jax.random.normal(keys[1], (max(L - 1, 1), H, 3 * H),
                                     jnp.float32)
    whh = scale * jax.random.normal(keys[2], (L, H, 3 * H), jnp.float32)
    bih = scale * jax.random.normal(keys[3], (L, 1, 3 * H), jnp.float32)
    bhh = scale * jax.random.normal(keys[4], (L, 1, 3 * H), jnp.float32)
    wfc = scale * jax.random.normal(keys[5], (H, latent_dim), jnp.float32)
    bfc = scale * jax.random.normal(keys[6], (1, latent_dim), jnp.float32)
    return (wih0, wihr, whh, bih, bhh, wfc, bfc)


# ----------------------------------------------------------------------------
# Pure-JAX f32 reference (same math as torch.nn.GRU + Linear) for verification.
# ----------------------------------------------------------------------------
def reference_forward(x, params, *, rec_layers, rec_dims, latent_dim):
    b, n, T, d = x.shape
    B = b * n
    H = rec_dims
    wih0, wihr, whh, bih, bhh, wfc, bfc = params
    seq = x.reshape(B, T, d).astype(jnp.float32)
    for l in range(rec_layers):
        wih = wih0 if l == 0 else wihr[l - 1]
        h = jnp.zeros((B, H), jnp.float32)
        outs = []
        for t in range(T):
            gi = seq[:, t, :] @ wih + bih[l]
            gh = h @ whh[l] + bhh[l]
            r = jax.nn.sigmoid(gi[:, :H] + gh[:, :H])
            z = jax.nn.sigmoid(gi[:, H:2 * H] + gh[:, H:2 * H])
            nn_ = jnp.tanh(gi[:, 2 * H:] + r * gh[:, 2 * H:])
            h = (1.0 - z) * nn_ + z * h
            outs.append(h)
        seq = jnp.stack(outs, axis=1)
    out = seq[:, -1, :] @ wfc + bfc
    return out.reshape(b, n, latent_dim)


if __name__ == "__main__":
    # Small shapes consistent with the module: x is (b, n, T, d).
    b, n, T, d = 2, 4, 8, 16
    rec_layers = 2          # args.rec_layers
    rec_dims = 32           # args.rec_dims
    latent_dim = 16

    key = jax.random.PRNGKey(0)
    kx, kp = jax.random.split(key)
    x = jax.random.normal(kx, (b, n, T, d), jnp.float32)
    params = make_params(kp, d, rec_dims, rec_layers, latent_dim)

    out = encoder_gru1_forward(x, params, rec_layers=rec_layers,
                               rec_dims=rec_dims, latent_dim=latent_dim)
    out = jax.block_until_ready(out)

    ref = reference_forward(x, params, rec_layers=rec_layers,
                            rec_dims=rec_dims, latent_dim=latent_dim)
    assert out.shape == (b, n, latent_dim)
    err = float(jnp.max(jnp.abs(out - ref)))
    # bf16 weights / bf16 gi+seq scratch vs f32 reference -> loosened tolerance.
    assert err < 5e-2, f"kernel/reference mismatch: {err}"
    print("KERNEL_OK")
</pallas_src>

<mosaic_0001>
module attributes {stable_mosaic.version = 11 : i64} {
  func.func @_encoder_gru_kernel(%arg0: i32, %arg1: memref<8x16x128xbf16, #tpu.memory_space<vmem>>, %arg2: memref<128x384xbf16, #tpu.memory_space<vmem>>, %arg3: memref<1x128x384xbf16, #tpu.memory_space<vmem>>, %arg4: memref<2x128x384xbf16, #tpu.memory_space<vmem>>, %arg5: memref<2x1x384xf32, #tpu.memory_space<vmem>>, %arg6: memref<2x1x128xf32, #tpu.memory_space<vmem>>, %arg7: memref<128x128xbf16, #tpu.memory_space<vmem>>, %arg8: memref<1x128xf32, #tpu.memory_space<vmem>>, %arg9: memref<16x128xf32, #tpu.memory_space<vmem>>, %arg10: memref<8x16x384xbf16, #tpu.memory_space<vmem>>, %arg11: memref<8x16x128xbf16, #tpu.memory_space<vmem>>, %arg12: memref<16x128xf32, #tpu.memory_space<vmem>>) attributes {dimension_semantics = [#tpu.dimension_semantics<parallel>], iteration_bounds = array<i64: 1>, scalar_prefetch = 0 : i64, scratch_operands = 3 : i64, tpu.core_type = #tpu.core_type<tc>, window_params = [{transform_indices = @transform_0, window_bounds = array<i64: 8, 16, 128>}, {pipeline_mode = #tpu.pipeline_mode<synchronous>, transform_indices = @transform_1, window_bounds = array<i64: 128, 384>}, {pipeline_mode = #tpu.pipeline_mode<synchronous>, transform_indices = @transform_2, window_bounds = array<i64: 1, 128, 384>}, {pipeline_mode = #tpu.pipeline_mode<synchronous>, transform_indices = @transform_3, window_bounds = array<i64: 2, 128, 384>}, {pipeline_mode = #tpu.pipeline_mode<synchronous>, transform_indices = @transform_4, window_bounds = array<i64: 2, 1, 384>}, {pipeline_mode = #tpu.pipeline_mode<synchronous>, transform_indices = @transform_5, window_bounds = array<i64: 2, 1, 128>}, {pipeline_mode = #tpu.pipeline_mode<synchronous>, transform_indices = @transform_6, window_bounds = array<i64: 128, 128>}, {pipeline_mode = #tpu.pipeline_mode<synchronous>, transform_indices = @transform_7, window_bounds = array<i64: 1, 128>}, {transform_indices = @transform_8, window_bounds = array<i64: 16, 128>}]} {
    %c0 = arith.constant 0 : index
    %c0_0 = arith.constant 0 : index
    %c0_1 = arith.constant 0 : index
    %0 = vector.load %arg1[%c0, %c0_0, %c0_1] : memref<8x16x128xbf16, #tpu.memory_space<vmem>>, vector<8x16x128xbf16>
    %1 = vector.shape_cast %0 : vector<8x16x128xbf16> to vector<128x128xbf16>
    %c0_2 = arith.constant 0 : index
    %c0_3 = arith.constant 0 : index
    %2 = vector.load %arg2[%c0_2, %c0_3] : memref<128x384xbf16, #tpu.memory_space<vmem>>, vector<128x384xbf16>
    %cst = arith.constant dense<0.000000e+00> : vector<128x384xf32>
    %3 = tpu.matmul %1, %2, %cst {dimension_numbers = #tpu.dot_dimension_numbers<[1], [0], [0], [1], [0, 0, 1, 1], [], []>} : vector<128x128xbf16>, vector<128x384xbf16>, vector<128x384xf32> -> vector<128x384xf32>
    %c0_4 = arith.constant 0 : index
    %c0_5 = arith.constant 0 : index
    %c0_6 = arith.constant 0 : index
    %4 = vector.load %arg5[%c0_4, %c0_5, %c0_6] : memref<2x1x384xf32, #tpu.memory_space<vmem>>, vector<1x1x384xf32>
    %5 = vector.shape_cast %4 : vector<1x1x384xf32> to vector<1x384xf32>
    %6 = vector.broadcast %5 : vector<1x384xf32> to vector<128x384xf32>
    %7 = arith.addf %3, %6 : vector<128x384xf32>
    %8 = arith.truncf %7 : vector<128x384xf32> to vector<128x384xbf16>
    %9 = vector.shape_cast %8 : vector<128x384xbf16> to vector<8x16x384xbf16>
    %c0_7 = arith.constant 0 : index
    %c0_8 = arith.constant 0 : index
    %c0_9 = arith.constant 0 : index
    %10 = vector.load %arg10[%c0_7, %c0_8, %c0_9] : memref<8x16x384xbf16, #tpu.memory_space<vmem>>, vector<8x16x384xbf16>
    tpu.vector_store %arg10[%c0_7, %c0_8, %c0_9], %9 {strides = array<i32>} : memref<8x16x384xbf16, #tpu.memory_space<vmem>>, vector<8x16x384xbf16>,
    %c0_10 = arith.constant 0 : index
    %c0_11 = arith.constant 0 : index
    %c0_12 = arith.constant 0 : index
    %11 = vector.load %arg4[%c0_10, %c0_11, %c0_12] : memref<2x128x384xbf16, #tpu.memory_space<vmem>>, vector<1x128x384xbf16>
    %12 = vector.shape_cast %11 : vector<1x128x384xbf16> to vector<128x384xbf16>
    %c0_13 = arith.constant 0 : index
    %c0_14 = arith.constant 0 : index
    %c0_15 = arith.constant 0 : index
    %13 = vector.load %arg6[%c0_13, %c0_14, %c0_15] : memref<2x1x128xf32, #tpu.memory_space<vmem>>, vector<1x1x128xf32>
    %14 = vector.shape_cast %13 : vector<1x1x128xf32> to vector<1x128xf32>
    %15 = vector.shape_cast %14 : vector<1x128xf32> to vector<1x128xf32>
    %16 = vector.broadcast %15 : vector<1x128xf32> to vector<16x128xf32>
    %cst_16 = arith.constant 0.000000e+00 : f32
    %17 = vector.broadcast %cst_16 : f32 to vector<16x128xf32>
    %c0_17 = arith.constant 0 : index
    %c0_18 = arith.constant 0 : index
    %18 = vector.load %arg12[%c0_17, %c0_18] : memref<16x128xf32, #tpu.memory_space<vmem>>, vector<16x128xf32>
    tpu.vector_store %arg12[%c0_17, %c0_18], %17 {strides = array<i32>} : memref<16x128xf32, #tpu.memory_space<vmem>>, vector<16x128xf32>,
    %c0_i32 = arith.constant 0 : i32
    %c0_19 = arith.constant 0 : index
    %c0_20 = arith.constant 0 : index
    %19 = vector.load %arg12[%c0_19, %c0_20] : memref<16x128xf32, #tpu.memory_space<vmem>>, vector<16x128xf32>
    %20 = arith.truncf %19 : vector<16x128xf32> to vector<16x128xbf16>
    %cst_21 = arith.constant dense<0.000000e+00> : vector<16x384xf32>
    %21 = tpu.matmul %20, %12, %cst_21 {dimension_numbers = #tpu.dot_dimension_numbers<[1], [0], [0], [1], [0, 0, 1, 1], [], []>} : vector<16x128xbf16>, vector<128x384xbf16>, vector<16x384xf32> -> vector<16x384xf32>
    %22 = arith.index_cast %c0_i32 : i32 to index
    %c0_22 = arith.constant 0 : index
    %c0_23 = arith.constant 0 : index
    %23 = vector.load %arg10[%22, %c0_22, %c0_23] : memref<8x16x384xbf16, #tpu.memory_space<vmem>>, vector<1x16x384xbf16>
    %24 = vector.shape_cast %23 : vector<1x16x384xbf16> to vector<16x384xbf16>
    %25 = arith.extf %24 : vector<16x384xbf16> to vector<16x384xf32>
    %26 = vector.extract_strided_slice %25 {offsets = [0, 0], sizes = [16, 256], strides = [1, 1]} : vector<16x384xf32> to vector<16x256xf32>
    %27 = vector.extract_strided_slice %21 {offsets = [0, 0], sizes = [16, 256], strides = [1, 1]} : vector<16x384xf32> to vector<16x256xf32>
    %28 = arith.addf %26, %27 : vector<16x256xf32>
    %29 = arith.negf %28 : vector<16x256xf32>
    %30 = math.exp %29 : vector<16x256xf32>
    %cst_24 = arith.constant 1.000000e+00 : f32
    %31 = vector.broadcast %cst_24 : f32 to vector<16x256xf32>
    %32 = arith.addf %31, %30 : vector<16x256xf32>
    %33 = arith.divf %31, %32 : vector<16x256xf32>
    %34 = vector.extract_strided_slice %33 {offsets = [0, 0], sizes = [16, 128], strides = [1, 1]} : vector<16x256xf32> to vector<16x128xf32>
    %35 = vector.extract_strided_slice %33 {offsets = [0, 128], sizes = [16, 128], strides = [1, 1]} : vector<16x256xf32> to vector<16x128xf32>
    %36 = vector.extract_strided_slice %25 {offsets = [0, 256], sizes = [16, 128], strides = [1, 1]} : vector<16x384xf32> to vector<16x128xf32>
    %37 = vector.extract_strided_slice %21 {offsets = [0, 256], sizes = [16, 128], strides = [1, 1]} : vector<16x384xf32> to vector<16x128xf32>
    %38 = arith.addf %37, %16 : vector<16x128xf32>
    %39 = arith.mulf %34, %38 : vector<16x128xf32>
    %40 = arith.addf %36, %39 : vector<16x128xf32>
    %41 = math.tanh %40 : vector<16x128xf32>
    %cst_25 = arith.constant 1.000000e+00 : f32
    %42 = vector.broadcast %cst_25 : f32 to vector<16x128xf32>
    %43 = arith.subf %42, %35 : vector<16x128xf32>
    %44 = arith.mulf %43, %41 : vector<16x128xf32>
    %45 = arith.mulf %35, %19 : vector<16x128xf32>
    %46 = arith.addf %44, %45 : vector<16x128xf32>
    %c0_26 = arith.constant 0 : index
    %c0_27 = arith.constant 0 : index
    %47 = vector.load %arg12[%c0_26, %c0_27] : memref<16x128xf32, #tpu.memory_space<vmem>>, vector<16x128xf32>
    tpu.vector_store %arg12[%c0_26, %c0_27], %46 {strides = array<i32>} : memref<16x128xf32, #tpu.memory_space<vmem>>, vector<16x128xf32>,
    %48 = arith.truncf %46 : vector<16x128xf32> to vector<16x128xbf16>
    %49 = arith.index_cast %c0_i32 : i32 to index
    %c0_28 = arith.constant 0 : index
    %c0_29 = arith.constant 0 : index
    %50 = vector.load %arg11[%49, %c0_28, %c0_29] : memref<8x16x128xbf16, #tpu.memory_space<vmem>>, vector<1x16x128xbf16>
    %51 = vector.shape_cast %50 : vector<1x16x128xbf16> to vector<16x128xbf16>
    %52 = vector.shape_cast %48 : vector<16x128xbf16> to vector<1x16x128xbf16>
    tpu.vector_store %arg11[%49, %c0_28, %c0_29], %52 {strides = array<i32>} : memref<8x16x128xbf16, #tpu.memory_space<vmem>>, vector<1x16x128xbf16>,
    %c1_i32 = arith.constant 1 : i32
    %c0_30 = arith.constant 0 : index
    %c0_31 = arith.constant 0 : index
    %53 = vector.load %arg12[%c0_30, %c0_31] : memref<16x128xf32, #tpu.memory_space<vmem>>, vector<16x128xf32>
    %54 = arith.truncf %53 : vector<16x128xf32> to vector<16x128xbf16>
    %cst_32 = arith.constant dense<0.000000e+00> : vector<16x384xf32>
    %55 = tpu.matmul %54, %12, %cst_32 {dimension_numbers = #tpu.dot_dimension_numbers<[1], [0], [0], [1], [0, 0, 1, 1], [], []>} : vector<16x128xbf16>, vector<128x384xbf16>, vector<16x384xf32> -> vector<16x384xf32>
    %56 = arith.index_cast %c1_i32 : i32 to index
    %c0_33 = arith.constant 0 : index
    %c0_34 = arith.constant 0 : index
    %57 = vector.load %arg10[%56, %c0_33, %c0_34] : memref<8x16x384xbf16, #tpu.memory_space<vmem>>, vector<1x16x384xbf16>
    %58 = vector.shape_cast %57 : vector<1x16x384xbf16> to vector<16x384xbf16>
    %59 = arith.extf %58 : vector<16x384xbf16> to vector<16x384xf32>
    %60 = vector.extract_strided_slice %59 {offsets = [0, 0], sizes = [16, 256], strides = [1, 1]} : vector<16x384xf32> to vector<16x256xf32>
    %61 = vector.extract_strided_slice %55 {offsets = [0, 0], sizes = [16, 256], strides = [1, 1]} : vector<16x384xf32> to vector<16x256xf32>
    %62 = arith.addf %60, %61 : vector<16x256xf32>
    %63 = arith.negf %62 : vector<16x256xf32>
    %64 = math.exp %63 : vector<16x256xf32>
    %cst_35 = arith.constant 1.000000e+00 : f32
    %65 = vector.broadcast %cst_35 : f32 to vector<16x256xf32>
    %66 = arith.addf %65, %64 : vector<16x256xf32>
    %67 = arith.divf %65, %66 : vector<16x256xf32>
    %68 = vector.extract_strided_slice %67 {offsets = [0, 0], sizes = [16, 128], strides = [1, 1]} : vector<16x256xf32> to vector<16x128xf32>
    %69 = vector.extract_strided_slice %67 {offsets = [0, 128], sizes = [16, 128], strides = [1, 1]} : vector<16x256xf32> to vector<16x128xf32>
    %70 = vector.extract_strided_slice %59 {offsets = [0, 256], sizes = [16, 128], strides = [1, 1]} : vector<16x384xf32> to vector<16x128xf32>
    %71 = vector.extract_strided_slice %55 {offsets = [0, 256], sizes = [16, 128], strides = [1, 1]} : vector<16x384xf32> to vector<16x128xf32>
    %72 = arith.addf %71, %16 : vector<16x128xf32>
    %73 = arith.mulf %68, %72 : vector<16x128xf32>
    %74 = arith.addf %70, %73 : vector<16x128xf32>
    %75 = math.tanh %74 : vector<16x128xf32>
    %cst_36 = arith.constant 1.000000e+00 : f32
    %76 = vector.broadcast %cst_36 : f32 to vector<16x128xf32>
    %77 = arith.subf %76, %69 : vector<16x128xf32>
    %78 = arith.mulf %77, %75 : vector<16x128xf32>
    %79 = arith.mulf %69, %53 : vector<16x128xf32>
    %80 = arith.addf %78, %79 : vector<16x128xf32>
    %c0_37 = arith.constant 0 : index
    %c0_38 = arith.constant 0 : index
    %81 = vector.load %arg12[%c0_37, %c0_38] : memref<16x128xf32, #tpu.memory_space<vmem>>, vector<16x128xf32>
    tpu.vector_store %arg12[%c0_37, %c0_38], %80 {strides = array<i32>} : memref<16x128xf32, #tpu.memory_space<vmem>>, vector<16x128xf32>,
    %82 = arith.truncf %80 : vector<16x128xf32> to vector<16x128xbf16>
    %83 = arith.index_cast %c1_i32 : i32 to index
    %c0_39 = arith.constant 0 : index
    %c0_40 = arith.constant 0 : index
    %84 = vector.load %arg11[%83, %c0_39, %c0_40] : memref<8x16x128xbf16, #tpu.memory_space<vmem>>, vector<1x16x128xbf16>
    %85 = vector.shape_cast %84 : vector<1x16x128xbf16> to vector<16x128xbf16>
    %86 = vector.shape_cast %82 : vector<16x128xbf16> to vector<1x16x128xbf16>
    tpu.vector_store %arg11[%83, %c0_39, %c0_40], %86 {strides = array<i32>} : memref<8x16x128xbf16, #tpu.memory_space<vmem>>, vector<1x16x128xbf16>,
    %c2_i32 = arith.constant 2 : i32
    %c0_41 = arith.constant 0 : index
    %c0_42 = arith.constant 0 : index
    %87 = vector.load %arg12[%c0_41, %c0_42] : memref<16x128xf32, #tpu.memory_space<vmem>>, vector<16x128xf32>
    %88 = arith.truncf %87 : vector<16x128xf32> to vector<16x128xbf16>
    %cst_43 = arith.constant dense<0.000000e+00> : vector<16x384xf32>
    %89 = tpu.matmul %88, %12, %cst_43 {dimension_numbers = #tpu.dot_dimension_numbers<[1], [0], [0], [1], [0, 0, 1, 1], [], []>} : vector<16x128xbf16>, vector<128x384xbf16>, vector<16x384xf32> -> vector<16x384xf32>
    %90 = arith.index_cast %c2_i32 : i32 to index
    %c0_44 = arith.constant 0 : index
    %c0_45 = arith.constant 0 : index
    %91 = vector.load %arg10[%90, %c0_44, %c0_45] : memref<8x16x384xbf16, #tpu.memory_space<vmem>>, vector<1x16x384xbf16>
    %92 = vector.shape_cast %91 : vector<1x16x384xbf16> to vector<16x384xbf16>
    %93 = arith.extf %92 : vector<16x384xbf16> to vector<16x384xf32>
    %94 = vector.extract_strided_slice %93 {offsets = [0, 0], sizes = [16, 256], strides = [1, 1]} : vector<16x384xf32> to vector<16x256xf32>
    %95 = vector.extract_strided_slice %89 {offsets = [0, 0], sizes = [16, 256], strides = [1, 1]} : vector<16x384xf32> to vector<16x256xf32>
    %96 = arith.addf %94, %95 : vector<16x256xf32>
    %97 = arith.negf %96 : vector<16x256xf32>
    %98 = math.exp %97 : vector<16x256xf32>
    %cst_46 = arith.constant 1.000000e+00 : f32
    %99 = vector.broadcast %cst_46 : f32 to vector<16x256xf32>
    %100 = arith.addf %99, %98 : vector<16x256xf32>
    %101 = arith.divf %99, %100 : vector<16x256xf32>
    %102 = vector.extract_strided_slice %101 {offsets = [0, 0], sizes = [16, 128], strides = [1, 1]} : vector<16x256xf32> to vector<16x128xf32>
    %103 = vector.extract_strided_slice %101 {offsets = [0, 128], sizes = [16, 128], strides = [1, 1]} : vector<16x256xf32> to vector<16x128xf32>
    %104 = vector.extract_strided_slice %93 {offsets = [0, 256], sizes = [16, 128], strides = [1, 1]} : vector<16x384xf32> to vector<16x128xf32>
    %105 = vector.extract_strided_slice %89 {offsets = [0, 256], sizes = [16, 128], strides = [1, 1]} : vector<16x384xf32> to vector<16x128xf32>
    %106 = arith.addf %105, %16 : vector<16x128xf32>
    %107 = arith.mulf %102, %106 : vector<16x128xf32>
    %108 = arith.addf %104, %107 : vector<16x128xf32>
    %109 = math.tanh %108 : vector<16x128xf32>
    %cst_47 = arith.constant 1.000000e+00 : f32
    %110 = vector.broadcast %cst_47 : f32 to vector<16x128xf32>
    %111 = arith.subf %110, %103 : vector<16x128xf32>
    %112 = arith.mulf %111, %109 : vector<16x128xf32>
    %113 = arith.mulf %103, %87 : vector<16x128xf32>
    %114 = arith.addf %112, %113 : vector<16x128xf32>
    %c0_48 = arith.constant 0 : index
    %c0_49 = arith.constant 0 : index
    %115 = vector.load %arg12[%c0_48, %c0_49] : memref<16x128xf32, #tpu.memory_space<vmem>>, vector<16x128xf32>
    tpu.vector_store %arg12[%c0_48, %c0_49], %114 {strides = array<i32>} : memref<16x128xf32, #tpu.memory_space<vmem>>, vector<16x128xf32>,
    %116 = arith.truncf %114 : vector<16x128xf32> to vector<16x128xbf16>
    %117 = arith.index_cast %c2_i32 : i32 to index
    %c0_50 = arith.constant 0 : index
    %c0_51 = arith.constant 0 : index
    %118 = vector.load %arg11[%117, %c0_50, %c0_51] : memref<8x16x128xbf16, #tpu.memory_space<vmem>>, vector<1x16x128xbf16>
    %119 = vector.shape_cast %118 : vector<1x16x128xbf16> to vector<16x128xbf16>
    %120 = vector.shape_cast %116 : vector<16x128xbf16> to vector<1x16x128xbf16>
    tpu.vector_store %arg11[%117, %c0_50, %c0_51], %120 {strides = array<i32>} : memref<8x16x128xbf16, #tpu.memory_space<vmem>>, vector<1x16x128xbf16>,
    %c3_i32 = arith.constant 3 : i32
    %c0_52 = arith.constant 0 : index
    %c0_53 = arith.constant 0 : index
    %121 = vector.load %arg12[%c0_52, %c0_53] : memref<16x128xf32, #tpu.memory_space<vmem>>, vector<16x128xf32>
    %122 = arith.truncf %121 : vector<16x128xf32> to vector<16x128xbf16>
    %cst_54 = arith.constant dense<0.000000e+00> : vector<16x384xf32>
    %123 = tpu.matmul %122, %12, %cst_54 {dimension_numbers = #tpu.dot_dimension_numbers<[1], [0], [0], [1], [0, 0, 1, 1], [], []>} : vector<16x128xbf16>, vector<128x384xbf16>, vector<16x384xf32> -> vector<16x384xf32>
    %124 = arith.index_cast %c3_i32 : i32 to index
    %c0_55 = arith.constant 0 : index
    %c0_56 = arith.constant 0 : index
    %125 = vector.load %arg10[%124, %c0_55, %c0_56] : memref<8x16x384xbf16, #tpu.memory_space<vmem>>, vector<1x16x384xbf16>
    %126 = vector.shape_cast %125 : vector<1x16x384xbf16> to vector<16x384xbf16>
    %127 = arith.extf %126 : vector<16x384xbf16> to vector<16x384xf32>
    %128 = vector.extract_strided_slice %127 {offsets = [0, 0], sizes = [16, 256], strides = [1, 1]} : vector<16x384xf32> to vector<16x256xf32>
    %129 = vector.extract_strided_slice %123 {offsets = [0, 0], sizes = [16, 256], strides = [1, 1]} : vector<16x384xf32> to vector<16x256xf32>
    %130 = arith.addf %128, %129 : vector<16x256xf32>
    %131 = arith.negf %130 : vector<16x256xf32>
    %132 = math.exp %131 : vector<16x256xf32>
    %cst_57 = arith.constant 1.000000e+00 : f32
    %133 = vector.broadcast %cst_57 : f32 to vector<16x256xf32>
    %134 = arith.addf %133, %132 : vector<16x256xf32>
    %135 = arith.divf %133, %134 : vector<16x256xf32>
    %136 = vector.extract_strided_slice %135 {offsets = [0, 0], sizes = [16, 128], strides = [1, 1]} : vector<16x256xf32> to vector<16x128xf32>
    %137 = vector.extract_strided_slice %135 {offsets = [0, 128], sizes = [16, 128], strides = [1, 1]} : vector<16x256xf32> to vector<16x128xf32>
    %138 = vector.extract_strided_slice %127 {offsets = [0, 256], sizes = [16, 128], strides = [1, 1]} : vector<16x384xf32> to vector<16x128xf32>
    %139 = vector.extract_strided_slice %123 {offsets = [0, 256], sizes = [16, 128], strides = [1, 1]} : vector<16x384xf32> to vector<16x128xf32>
    %140 = arith.addf %139, %16 : vector<16x128xf32>
    %141 = arith.mulf %136, %140 : vector<16x128xf32>
    %142 = arith.addf %138, %141 : vector<16x128xf32>
    %143 = math.tanh %142 : vector<16x128xf32>
    %cst_58 = arith.constant 1.000000e+00 : f32
    %144 = vector.broadcast %cst_58 : f32 to vector<16x128xf32>
    %145 = arith.subf %144, %137 : vector<16x128xf32>
    %146 = arith.mulf %145, %143 : vector<16x128xf32>
    %147 = arith.mulf %137, %121 : vector<16x128xf32>
    %148 = arith.addf %146, %147 : vector<16x128xf32>
    %c0_59 = arith.constant 0 : index
    %c0_60 = arith.constant 0 : index
    %149 = vector.load %arg12[%c0_59, %c0_60] : memref<16x128xf32, #tpu.memory_space<vmem>>, vector<16x128xf32>
    tpu.vector_store %arg12[%c0_59, %c0_60], %148 {strides = array<i32>} : memref<16x128xf32, #tpu.memory_space<vmem>>, vector<16x128xf32>,
    %150 = arith.truncf %148 : vector<16x128xf32> to vector<16x128xbf16>
    %151 = arith.index_cast %c3_i32 : i32 to index
    %c0_61 = arith.constant 0 : index
    %c0_62 = arith.constant 0 : index
    %152 = vector.load %arg11[%151, %c0_61, %c0_62] : memref<8x16x128xbf16, #tpu.memory_space<vmem>>, vector<1x16x128xbf16>
    %153 = vector.shape_cast %152 : vector<1x16x128xbf16> to vector<16x128xbf16>
    %154 = vector.shape_cast %150 : vector<16x128xbf16> to vector<1x16x128xbf16>
    tpu.vector_store %arg11[%151, %c0_61, %c0_62], %154 {strides = array<i32>} : memref<8x16x128xbf16, #tpu.memory_space<vmem>>, vector<1x16x128xbf16>,
    %c4_i32 = arith.constant 4 : i32
    %c0_63 = arith.constant 0 : index
    %c0_64 = arith.constant 0 : index
    %155 = vector.load %arg12[%c0_63, %c0_64] : memref<16x128xf32, #tpu.memory_space<vmem>>, vector<16x128xf32>
    %156 = arith.truncf %155 : vector<16x128xf32> to vector<16x128xbf16>
    %cst_65 = arith.constant dense<0.000000e+00> : vector<16x384xf32>
    %157 = tpu.matmul %156, %12, %cst_65 {dimension_numbers = #tpu.dot_dimension_numbers<[1], [0], [0], [1], [0, 0, 1, 1], [], []>} : vector<16x128xbf16>, vector<128x384xbf16>, vector<16x384xf32> -> vector<16x384xf32>
    %158 = arith.index_cast %c4_i32 : i32 to index
    %c0_66 = arith.constant 0 : index
    %c0_67 = arith.constant 0 : index
    %159 = vector.load %arg10[%158, %c0_66, %c0_67] : memref<8x16x384xbf16, #tpu.memory_space<vmem>>, vector<1x16x384xbf16>
    %160 = vector.shape_cast %159 : vector<1x16x384xbf16> to vector<16x384xbf16>
    %161 = arith.extf %160 : vector<16x384xbf16> to vector<16x384xf32>
    %162 = vector.extract_strided_slice %161 {offsets = [0, 0], sizes = [16, 256], strides = [1, 1]} : vector<16x384xf32> to vector<16x256xf32>
    %163 = vector.extract_strided_slice %157 {offsets = [0, 0], sizes = [16, 256], strides = [1, 1]} : vector<16x384xf32> to vector<16x256xf32>
    %164 = arith.addf %162, %163 : vector<16x256xf32>
    %165 = arith.negf %164 : vector<16x256xf32>
    %166 = math.exp %165 : vector<16x256xf32>
    %cst_68 = arith.constant 1.000000e+00 : f32
    %167 = vector.broadcast %cst_68 : f32 to vector<16x256xf32>
    %168 = arith.addf %167, %166 : vector<16x256xf32>
    %169 = arith.divf %167, %168 : vector<16x256xf32>
    %170 = vector.extract_strided_slice %169 {offsets = [0, 0], sizes = [16, 128], strides = [1, 1]} : vector<16x256xf32> to vector<16x128xf32>
    %171 = vector.extract_strided_slice %169 {offsets = [0, 128], sizes = [16, 128], strides = [1, 1]} : vector<16x256xf32> to vector<16x128xf32>
    %172 = vector.extract_strided_slice %161 {offsets = [0, 256], sizes = [16, 128], strides = [1, 1]} : vector<16x384xf32> to vector<16x128xf32>
    %173 = vector.extract_strided_slice %157 {offsets = [0, 256], sizes = [16, 128], strides = [1, 1]} : vector<16x384xf32> to vector<16x128xf32>
    %174 = arith.addf %173, %16 : vector<16x128xf32>
    %175 = arith.mulf %170, %174 : vector<16x128xf32>
    %176 = arith.addf %172, %175 : vector<16x128xf32>
    %177 = math.tanh %176 : vector<16x128xf32>
    %cst_69 = arith.constant 1.000000e+00 : f32
    %178 = vector.broadcast %cst_69 : f32 to vector<16x128xf32>
    %179 = arith.subf %178, %171 : vector<16x128xf32>
    %180 = arith.mulf %179, %177 : vector<16x128xf32>
    %181 = arith.mulf %171, %155 : vector<16x128xf32>
    %182 = arith.addf %180, %181 : vector<16x128xf32>
    %c0_70 = arith.constant 0 : index
    %c0_71 = arith.constant 0 : index
    %183 = vector.load %arg12[%c0_70, %c0_71] : memref<16x128xf32, #tpu.memory_space<vmem>>, vector<16x128xf32>
    tpu.vector_store %arg12[%c0_70, %c0_71], %182 {strides = array<i32>} : memref<16x128xf32, #tpu.memory_space<vmem>>, vector<16x128xf32>,
    %184 = arith.truncf %182 : vector<16x128xf32> to vector<16x128xbf16>
    %185 = arith.index_cast %c4_i32 : i32 to index
    %c0_72 = arith.constant 0 : index
    %c0_73 = arith.constant 0 : index
    %186 = vector.load %arg11[%185, %c0_72, %c0_73] : memref<8x16x128xbf16, #tpu.memory_space<vmem>>, vector<1x16x128xbf16>
    %187 = vector.shape_cast %186 : vector<1x16x128xbf16> to vector<16x128xbf16>
    %188 = vector.shape_cast %184 : vector<16x128xbf16> to vector<1x16x128xbf16>
    tpu.vector_store %arg11[%185, %c0_72, %c0_73], %188 {strides = array<i32>} : memref<8x16x128xbf16, #tpu.memory_space<vmem>>, vector<1x16x128xbf16>,
    %c5_i32 = arith.constant 5 : i32
    %c0_74 = arith.constant 0 : index
    %c0_75 = arith.constant 0 : index
    %189 = vector.load %arg12[%c0_74, %c0_75] : memref<16x128xf32, #tpu.memory_space<vmem>>, vector<16x128xf32>
    %190 = arith.truncf %189 : vector<16x128xf32> to vector<16x128xbf16>
    %cst_76 = arith.constant dense<0.000000e+00> : vector<16x384xf32>
    %191 = tpu.matmul %190, %12, %cst_76 {dimension_numbers = #tpu.dot_dimension_numbers<[1], [0], [0], [1], [0, 0, 1, 1], [], []>} : vector<16x128xbf16>, vector<128x384xbf16>, vector<16x384xf32> -> vector<16x384xf32>
    %192 = arith.index_cast %c5_i32 : i32 to index
    %c0_77 = arith.constant 0 : index
    %c0_78 = arith.constant 0 : index
    %193 = vector.load %arg10[%192, %c0_77, %c0_78] : memref<8x16x384xbf16, #tpu.memory_space<vmem>>, vector<1x16x384xbf16>
    %194 = vector.shape_cast %193 : vector<1x16x384xbf16> to vector<16x384xbf16>
    %195 = arith.extf %194 : vector<16x384xbf16> to vector<16x384xf32>
    %196 = vector.extract_strided_slice %195 {offsets = [0, 0], sizes = [16, 256], strides = [1, 1]} : vector<16x384xf32> to vector<16x256xf32>
    %197 = vector.extract_strided_slice %191 {offsets = [0, 0], sizes = [16, 256], strides = [1, 1]} : vector<16x384xf32> to vector<16x256xf32>
    %198 = arith.addf %196, %197 : vector<16x256xf32>
    %199 = arith.negf %198 : vector<16x256xf32>
    %200 = math.exp %199 : vector<16x256xf32>
    %cst_79 = arith.constant 1.000000e+00 : f32
    %201 = vector.broadcast %cst_79 : f32 to vector<16x256xf32>
    %202 = arith.addf %201, %200 : vector<16x256xf32>
    %203 = arith.divf %201, %202 : vector<16x256xf32>
    %204 = vector.extract_strided_slice %203 {offsets = [0, 0], sizes = [16, 128], strides = [1, 1]} : vector<16x256xf32> to vector<16x128xf32>
    %205 = vector.extract_strided_slice %203 {offsets = [0, 128], sizes = [16, 128], strides = [1, 1]} : vector<16x256xf32> to vector<16x128xf32>
    %206 = vector.extract_strided_slice %195 {offsets = [0, 256], sizes = [16, 128], strides = [1, 1]} : vector<16x384xf32> to vector<16x128xf32>
    %207 = vector.extract_strided_slice %191 {offsets = [0, 256], sizes = [16, 128], strides = [1, 1]} : vector<16x384xf32> to vector<16x128xf32>
    %208 = arith.addf %207, %16 : vector<16x128xf32>
    %209 = arith.mulf %204, %208 : vector<16x128xf32>
    %210 = arith.addf %206, %209 : vector<16x128xf32>
    %211 = math.tanh %210 : vector<16x128xf32>
    %cst_80 = arith.constant 1.000000e+00 : f32
    %212 = vector.broadcast %cst_80 : f32 to vector<16x128xf32>
    %213 = arith.subf %212, %205 : vector<16x128xf32>
    %214 = arith.mulf %213, %211 : vector<16x128xf32>
    %215 = arith.mulf %205, %189 : vector<16x128xf32>
    %216 = arith.addf %214, %215 : vector<16x128xf32>
    %c0_81 = arith.constant 0 : index
    %c0_82 = arith.constant 0 : index
    %217 = vector.load %arg12[%c0_81, %c0_82] : memref<16x128xf32, #tpu.memory_space<vmem>>, vector<16x128xf32>
    tpu.vector_store %arg12[%c0_81, %c0_82], %216 {strides = array<i32>} : memref<16x128xf32, #tpu.memory_space<vmem>>, vector<16x128xf32>,
    %218 = arith.truncf %216 : vector<16x128xf32> to vector<16x128xbf16>
    %219 = arith.index_cast %c5_i32 : i32 to index
    %c0_83 = arith.constant 0 : index
    %c0_84 = arith.constant 0 : index
    %220 = vector.load %arg11[%219, %c0_83, %c0_84] : memref<8x16x128xbf16, #tpu.memory_space<vmem>>, vector<1x16x128xbf16>
    %221 = vector.shape_cast %220 : vector<1x16x128xbf16> to vector<16x128xbf16>
    %222 = vector.shape_cast %218 : vector<16x128xbf16> to vector<1x16x128xbf16>
    tpu.vector_store %arg11[%219, %c0_83, %c0_84], %222 {strides = array<i32>} : memref<8x16x128xbf16, #tpu.memory_space<vmem>>, vector<1x16x128xbf16>,
    %c6_i32 = arith.constant 6 : i32
    %c0_85 = arith.constant 0 : index
    %c0_86 = arith.constant 0 : index
    %223 = vector.load %arg12[%c0_85, %c0_86] : memref<16x128xf32, #tpu.memory_space<vmem>>, vector<16x128xf32>
    %224 = arith.truncf %223 : vector<16x128xf32> to vector<16x128xbf16>
    %cst_87 = arith.constant dense<0.000000e+00> : vector<16x384xf32>
    %225 = tpu.matmul %224, %12, %cst_87 {dimension_numbers = #tpu.dot_dimension_numbers<[1], [0], [0], [1], [0, 0, 1, 1], [], []>} : vector<16x128xbf16>, vector<128x384xbf16>, vector<16x384xf32> -> vector<16x384xf32>
    %226 = arith.index_cast %c6_i32 : i32 to index
    %c0_88 = arith.constant 0 : index
    %c0_89 = arith.constant 0 : index
    %227 = vector.load %arg10[%226, %c0_88, %c0_89] : memref<8x16x384xbf16, #tpu.memory_space<vmem>>, vector<1x16x384xbf16>
    %228 = vector.shape_cast %227 : vector<1x16x384xbf16> to vector<16x384xbf16>
    %229 = arith.extf %228 : vector<16x384xbf16> to vector<16x384xf32>
    %230 = vector.extract_strided_slice %229 {offsets = [0, 0], sizes = [16, 256], strides = [1, 1]} : vector<16x384xf32> to vector<16x256xf32>
    %231 = vector.extract_strided_slice %225 {offsets = [0, 0], sizes = [16, 256], strides = [1, 1]} : vector<16x384xf32> to vector<16x256xf32>
    %232 = arith.addf %230, %231 : vector<16x256xf32>
    %233 = arith.negf %232 : vector<16x256xf32>
    %234 = math.exp %233 : vector<16x256xf32>
    %cst_90 = arith.constant 1.000000e+00 : f32
    %235 = vector.broadcast %cst_90 : f32 to vector<16x256xf32>
    %236 = arith.addf %235, %234 : vector<16x256xf32>
    %237 = arith.divf %235, %236 : vector<16x256xf32>
    %238 = vector.extract_strided_slice %237 {offsets = [0, 0], sizes = [16, 128], strides = [1, 1]} : vector<16x256xf32> to vector<16x128xf32>
    %239 = vector.extract_strided_slice %237 {offsets = [0, 128], sizes = [16, 128], strides = [1, 1]} : vector<16x256xf32> to vector<16x128xf32>
    %240 = vector.extract_strided_slice %229 {offsets = [0, 256], sizes = [16, 128], strides = [1, 1]} : vector<16x384xf32> to vector<16x128xf32>
    %241 = vector.extract_strided_slice %225 {offsets = [0, 256], sizes = [16, 128], strides = [1, 1]} : vector<16x384xf32> to vector<16x128xf32>
    %242 = arith.addf %241, %16 : vector<16x128xf32>
    %243 = arith.mulf %238, %242 : vector<16x128xf32>
    %244 = arith.addf %240, %243 : vector<16x128xf32>
    %245 = math.tanh %244 : vector<16x128xf32>
    %cst_91 = arith.constant 1.000000e+00 : f32
    %246 = vector.broadcast %cst_91 : f32 to vector<16x128xf32>
    %247 = arith.subf %246, %239 : vector<16x128xf32>
    %248 = arith.mulf %247, %245 : vector<16x128xf32>
    %249 = arith.mulf %239, %223 : vector<16x128xf32>
    %250 = arith.addf %248, %249 : vector<16x128xf32>
    %c0_92 = arith.constant 0 : index
    %c0_93 = arith.constant 0 : index
    %251 = vector.load %arg12[%c0_92, %c0_93] : memref<16x128xf32, #tpu.memory_space<vmem>>, vector<16x128xf32>
    tpu.vector_store %arg12[%c0_92, %c0_93], %250 {strides = array<i32>} : memref<16x128xf32, #tpu.memory_space<vmem>>, vector<16x128xf32>,
    %252 = arith.truncf %250 : vector<16x128xf32> to vector<16x128xbf16>
    %253 = arith.index_cast %c6_i32 : i32 to index
    %c0_94 = arith.constant 0 : index
    %c0_95 = arith.constant 0 : index
    %254 = vector.load %arg11[%253, %c0_94, %c0_95] : memref<8x16x128xbf16, #tpu.memory_space<vmem>>, vector<1x16x128xbf16>
    %255 = vector.shape_cast %254 : vector<1x16x128xbf16> to vector<16x128xbf16>
    %256 = vector.shape_cast %252 : vector<16x128xbf16> to vector<1x16x128xbf16>
    tpu.vector_store %arg11[%253, %c0_94, %c0_95], %256 {strides = array<i32>} : memref<8x16x128xbf16, #tpu.memory_space<vmem>>, vector<1x16x128xbf16>,
    %c7_i32 = arith.constant 7 : i32
    %c0_96 = arith.constant 0 : index
    %c0_97 = arith.constant 0 : index
    %257 = vector.load %arg12[%c0_96, %c0_97] : memref<16x128xf32, #tpu.memory_space<vmem>>, vector<16x128xf32>
    %258 = arith.truncf %257 : vector<16x128xf32> to vector<16x128xbf16>
    %cst_98 = arith.constant dense<0.000000e+00> : vector<16x384xf32>
    %259 = tpu.matmul %258, %12, %cst_98 {dimension_numbers = #tpu.dot_dimension_numbers<[1], [0], [0], [1], [0, 0, 1, 1], [], []>} : vector<16x128xbf16>, vector<128x384xbf16>, vector<16x384xf32> -> vector<16x384xf32>
    %260 = arith.index_cast %c7_i32 : i32 to index
    %c0_99 = arith.constant 0 : index
    %c0_100 = arith.constant 0 : index
    %261 = vector.load %arg10[%260, %c0_99, %c0_100] : memref<8x16x384xbf16, #tpu.memory_space<vmem>>, vector<1x16x384xbf16>
    %262 = vector.shape_cast %261 : vector<1x16x384xbf16> to vector<16x384xbf16>
    %263 = arith.extf %262 : vector<16x384xbf16> to vector<16x384xf32>
    %264 = vector.extract_strided_slice %263 {offsets = [0, 0], sizes = [16, 256], strides = [1, 1]} : vector<16x384xf32> to vector<16x256xf32>
    %265 = vector.extract_strided_slice %259 {offsets = [0, 0], sizes = [16, 256], strides = [1, 1]} : vector<16x384xf32> to vector<16x256xf32>
    %266 = arith.addf %264, %265 : vector<16x256xf32>
    %267 = arith.negf %266 : vector<16x256xf32>
    %268 = math.exp %267 : vector<16x256xf32>
    %cst_101 = arith.constant 1.000000e+00 : f32
    %269 = vector.broadcast %cst_101 : f32 to vector<16x256xf32>
    %270 = arith.addf %269, %268 : vector<16x256xf32>
    %271 = arith.divf %269, %270 : vector<16x256xf32>
    %272 = vector.extract_strided_slice %271 {offsets = [0, 0], sizes = [16, 128], strides = [1, 1]} : vector<16x256xf32> to vector<16x128xf32>
    %273 = vector.extract_strided_slice %271 {offsets = [0, 128], sizes = [16, 128], strides = [1, 1]} : vector<16x256xf32> to vector<16x128xf32>
    %274 = vector.extract_strided_slice %263 {offsets = [0, 256], sizes = [16, 128], strides = [1, 1]} : vector<16x384xf32> to vector<16x128xf32>
    %275 = vector.extract_strided_slice %259 {offsets = [0, 256], sizes = [16, 128], strides = [1, 1]} : vector<16x384xf32> to vector<16x128xf32>
    %276 = arith.addf %275, %16 : vector<16x128xf32>
    %277 = arith.mulf %272, %276 : vector<16x128xf32>
    %278 = arith.addf %274, %277 : vector<16x128xf32>
    %279 = math.tanh %278 : vector<16x128xf32>
    %cst_102 = arith.constant 1.000000e+00 : f32
    %280 = vector.broadcast %cst_102 : f32 to vector<16x128xf32>
    %281 = arith.subf %280, %273 : vector<16x128xf32>
    %282 = arith.mulf %281, %279 : vector<16x128xf32>
    %283 = arith.mulf %273, %257 : vector<16x128xf32>
    %284 = arith.addf %282, %283 : vector<16x128xf32>
    %c0_103 = arith.constant 0 : index
    %c0_104 = arith.constant 0 : index
    %285 = vector.load %arg12[%c0_103, %c0_104] : memref<16x128xf32, #tpu.memory_space<vmem>>, vector<16x128xf32>
    tpu.vector_store %arg12[%c0_103, %c0_104], %284 {strides = array<i32>} : memref<16x128xf32, #tpu.memory_space<vmem>>, vector<16x128xf32>,
    %286 = arith.truncf %284 : vector<16x128xf32> to vector<16x128xbf16>
    %287 = arith.index_cast %c7_i32 : i32 to index
    %c0_105 = arith.constant 0 : index
    %c0_106 = arith.constant 0 : index
    %288 = vector.load %arg11[%287, %c0_105, %c0_106] : memref<8x16x128xbf16, #tpu.memory_space<vmem>>, vector<1x16x128xbf16>
    %289 = vector.shape_cast %288 : vector<1x16x128xbf16> to vector<16x128xbf16>
    %290 = vector.shape_cast %286 : vector<16x128xbf16> to vector<1x16x128xbf16>
    tpu.vector_store %arg11[%287, %c0_105, %c0_106], %290 {strides = array<i32>} : memref<8x16x128xbf16, #tpu.memory_space<vmem>>, vector<1x16x128xbf16>,
    %c8_i32 = arith.constant 8 : i32
    %c0_107 = arith.constant 0 : index
    %c0_108 = arith.constant 0 : index
    %c0_109 = arith.constant 0 : index
    %291 = vector.load %arg11[%c0_107, %c0_108, %c0_109] : memref<8x16x128xbf16, #tpu.memory_space<vmem>>, vector<8x16x128xbf16>
    %292 = vector.shape_cast %291 : vector<8x16x128xbf16> to vector<128x128xbf16>
    %c0_110 = arith.constant 0 : index
    %c0_111 = arith.constant 0 : index
    %c0_112 = arith.constant 0 : index
    %293 = vector.load %arg3[%c0_110, %c0_111, %c0_112] : memref<1x128x384xbf16, #tpu.memory_space<vmem>>, vector<1x128x384xbf16>
    %294 = vector.shape_cast %293 : vector<1x128x384xbf16> to vector<128x384xbf16>
    %cst_113 = arith.constant dense<0.000000e+00> : vector<128x384xf32>
    %295 = tpu.matmul %292, %294, %cst_113 {dimension_numbers = #tpu.dot_dimension_numbers<[1], [0], [0], [1], [0, 0, 1, 1], [], []>} : vector<128x128xbf16>, vector<128x384xbf16>, vector<128x384xf32> -> vector<128x384xf32>
    %c1 = arith.constant 1 : index
    %c0_114 = arith.constant 0 : index
    %c0_115 = arith.constant 0 : index
    %296 = vector.load %arg5[%c1, %c0_114, %c0_115] : memref<2x1x384xf32, #tpu.memory_space<vmem>>, vector<1x1x384xf32>
    %297 = vector.shape_cast %296 : vector<1x1x384xf32> to vector<1x384xf32>
    %298 = vector.broadcast %297 : vector<1x384xf32> to vector<128x384xf32>
    %299 = arith.addf %295, %298 : vector<128x384xf32>
    %300 = arith.truncf %299 : vector<128x384xf32> to vector<128x384xbf16>
    %301 = vector.shape_cast %300 : vector<128x384xbf16> to vector<8x16x384xbf16>
    %c0_116 = arith.constant 0 : index
    %c0_117 = arith.constant 0 : index
    %c0_118 = arith.constant 0 : index
    %302 = vector.load %arg10[%c0_116, %c0_117, %c0_118] : memref<8x16x384xbf16, #tpu.memory_space<vmem>>, vector<8x16x384xbf16>
    tpu.vector_store %arg10[%c0_116, %c0_117, %c0_118], %301 {strides = array<i32>} : memref<8x16x384xbf16, #tpu.memory_space<vmem>>, vector<8x16x384xbf16>,
    %c1_119 = arith.constant 1 : index
    %c0_120 = arith.constant 0 : index
    %c0_121 = arith.constant 0 : index
    %303 = vector.load %arg4[%c1_119, %c0_120, %c0_121] : memref<2x128x384xbf16, #tpu.memory_space<vmem>>, vector<1x128x384xbf16>
    %304 = vector.shape_cast %303 : vector<1x128x384xbf16> to vector<128x384xbf16>
    %c1_122 = arith.constant 1 : index
    %c0_123 = arith.constant 0 : index
    %c0_124 = arith.constant 0 : index
    %305 = vector.load %arg6[%c1_122, %c0_123, %c0_124] : memref<2x1x128xf32, #tpu.memory_space<vmem>>, vector<1x1x128xf32>
    %306 = vector.shape_cast %305 : vector<1x1x128xf32> to vector<1x128xf32>
    %307 = vector.shape_cast %306 : vector<1x128xf32> to vector<1x128xf32>
    %308 = vector.broadcast %307 : vector<1x128xf32> to vector<16x128xf32>
    %cst_125 = arith.constant 0.000000e+00 : f32
    %309 = vector.broadcast %cst_125 : f32 to vector<16x128xf32>
    %c0_126 = arith.constant 0 : index
    %c0_127 = arith.constant 0 : index
    %310 = vector.load %arg12[%c0_126, %c0_127] : memref<16x128xf32, #tpu.memory_space<vmem>>, vector<16x128xf32>
    tpu.vector_store %arg12[%c0_126, %c0_127], %309 {strides = array<i32>} : memref<16x128xf32, #tpu.memory_space<vmem>>, vector<16x128xf32>,
    %c0_i32_128 = arith.constant 0 : i32
    %c0_129 = arith.constant 0 : index
    %c0_130 = arith.constant 0 : index
    %311 = vector.load %arg12[%c0_129, %c0_130] : memref<16x128xf32, #tpu.memory_space<vmem>>, vector<16x128xf32>
    %312 = arith.truncf %311 : vector<16x128xf32> to vector<16x128xbf16>
    %cst_131 = arith.constant dense<0.000000e+00> : vector<16x384xf32>
    %313 = tpu.matmul %312, %304, %cst_131 {dimension_numbers = #tpu.dot_dimension_numbers<[1], [0], [0], [1], [0, 0, 1, 1], [], []>} : vector<16x128xbf16>, vector<128x384xbf16>, vector<16x384xf32> -> vector<16x384xf32>
    %314 = arith.index_cast %c0_i32_128 : i32 to index
    %c0_132 = arith.constant 0 : index
    %c0_133 = arith.constant 0 : index
    %315 = vector.load %arg10[%314, %c0_132, %c0_133] : memref<8x16x384xbf16, #tpu.memory_space<vmem>>, vector<1x16x384xbf16>
    %316 = vector.shape_cast %315 : vector<1x16x384xbf16> to vector<16x384xbf16>
    %317 = arith.extf %316 : vector<16x384xbf16> to vector<16x384xf32>
    %318 = vector.extract_strided_slice %317 {offsets = [0, 0], sizes = [16, 256], strides = [1, 1]} : vector<16x384xf32> to vector<16x256xf32>
    %319 = vector.extract_strided_slice %313 {offsets = [0, 0], sizes = [16, 256], strides = [1, 1]} : vector<16x384xf32> to vector<16x256xf32>
    %320 = arith.addf %318, %319 : vector<16x256xf32>
    %321 = arith.negf %320 : vector<16x256xf32>
    %322 = math.exp %321 : vector<16x256xf32>
    %cst_134 = arith.constant 1.000000e+00 : f32
    %323 = vector.broadcast %cst_134 : f32 to vector<16x256xf32>
    %324 = arith.addf %323, %322 : vector<16x256xf32>
    %325 = arith.divf %323, %324 : vector<16x256xf32>
    %326 = vector.extract_strided_slice %325 {offsets = [0, 0], sizes = [16, 128], strides = [1, 1]} : vector<16x256xf32> to vector<16x128xf32>
    %327 = vector.extract_strided_slice %325 {offsets = [0, 128], sizes = [16, 128], strides = [1, 1]} : vector<16x256xf32> to vector<16x128xf32>
    %328 = vector.extract_strided_slice %317 {offsets = [0, 256], sizes = [16, 128], strides = [1, 1]} : vector<16x384xf32> to vector<16x128xf32>
    %329 = vector.extract_strided_slice %313 {offsets = [0, 256], sizes = [16, 128], strides = [1, 1]} : vector<16x384xf32> to vector<16x128xf32>
    %330 = arith.addf %329, %308 : vector<16x128xf32>
    %331 = arith.mulf %326, %330 : vector<16x128xf32>
    %332 = arith.addf %328, %331 : vector<16x128xf32>
    %333 = math.tanh %332 : vector<16x128xf32>
    %cst_135 = arith.constant 1.000000e+00 : f32
    %334 = vector.broadcast %cst_135 : f32 to vector<16x128xf32>
    %335 = arith.subf %334, %327 : vector<16x128xf32>
    %336 = arith.mulf %335, %333 : vector<16x128xf32>
    %337 = arith.mulf %327, %311 : vector<16x128xf32>
    %338 = arith.addf %336, %337 : vector<16x128xf32>
    %c0_136 = arith.constant 0 : index
    %c0_137 = arith.constant 0 : index
    %339 = vector.load %arg12[%c0_136, %c0_137] : memref<16x128xf32, #tpu.memory_space<vmem>>, vector<16x128xf32>
    tpu.vector_store %arg12[%c0_136, %c0_137], %338 {strides = array<i32>} : memref<16x128xf32, #tpu.memory_space<vmem>>, vector<16x128xf32>,
    %c1_i32_138 = arith.constant 1 : i32
    %c0_139 = arith.constant 0 : index
    %c0_140 = arith.constant 0 : index
    %340 = vector.load %arg12[%c0_139, %c0_140] : memref<16x128xf32, #tpu.memory_space<vmem>>, vector<16x128xf32>
    %341 = arith.truncf %340 : vector<16x128xf32> to vector<16x128xbf16>
    %cst_141 = arith.constant dense<0.000000e+00> : vector<16x384xf32>
    %342 = tpu.matmul %341, %304, %cst_141 {dimension_numbers = #tpu.dot_dimension_numbers<[1], [0], [0], [1], [0, 0, 1, 1], [], []>} : vector<16x128xbf16>, vector<128x384xbf16>, vector<16x384xf32> -> vector<16x384xf32>
    %343 = arith.index_cast %c1_i32_138 : i32 to index
    %c0_142 = arith.constant 0 : index
    %c0_143 = arith.constant 0 : index
    %344 = vector.load %arg10[%343, %c0_142, %c0_143] : memref<8x16x384xbf16, #tpu.memory_space<vmem>>, vector<1x16x384xbf16>
    %345 = vector.shape_cast %344 : vector<1x16x384xbf16> to vector<16x384xbf16>
    %346 = arith.extf %345 : vector<16x384xbf16> to vector<16x384xf32>
    %347 = vector.extract_strided_slice %346 {offsets = [0, 0], sizes = [16, 256], strides = [1, 1]} : vector<16x384xf32> to vector<16x256xf32>
    %348 = vector.extract_strided_slice %342 {offsets = [0, 0], sizes = [16, 256], strides = [1, 1]} : vector<16x384xf32> to vector<16x256xf32>
    %349 = arith.addf %347, %348 : vector<16x256xf32>
    %350 = arith.negf %349 : vector<16x256xf32>
    %351 = math.exp %350 : vector<16x256xf32>
    %cst_144 = arith.constant 1.000000e+00 : f32
    %352 = vector.broadcast %cst_144 : f32 to vector<16x256xf32>
    %353 = arith.addf %352, %351 : vector<16x256xf32>
    %354 = arith.divf %352, %353 : vector<16x256xf32>
    %355 = vector.extract_strided_slice %354 {offsets = [0, 0], sizes = [16, 128], strides = [1, 1]} : vector<16x256xf32> to vector<16x128xf32>
    %356 = vector.extract_strided_slice %354 {offsets = [0, 128], sizes = [16, 128], strides = [1, 1]} : vector<16x256xf32> to vector<16x128xf32>
    %357 = vector.extract_strided_slice %346 {offsets = [0, 256], sizes = [16, 128], strides = [1, 1]} : vector<16x384xf32> to vector<16x128xf32>
    %358 = vector.extract_strided_slice %342 {offsets = [0, 256], sizes = [16, 128], strides = [1, 1]} : vector<16x384xf32> to vector<16x128xf32>
    %359 = arith.addf %358, %308 : vector<16x128xf32>
    %360 = arith.mulf %355, %359 : vector<16x128xf32>
    %361 = arith.addf %357, %360 : vector<16x128xf32>
    %362 = math.tanh %361 : vector<16x128xf32>
    %cst_145 = arith.constant 1.000000e+00 : f32
    %363 = vector.broadcast %cst_145 : f32 to vector<16x128xf32>
    %364 = arith.subf %363, %356 : vector<16x128xf32>
    %365 = arith.mulf %364, %362 : vector<16x128xf32>
    %366 = arith.mulf %356, %340 : vector<16x128xf32>
    %367 = arith.addf %365, %366 : vector<16x128xf32>
    %c0_146 = arith.constant 0 : index
    %c0_147 = arith.constant 0 : index
    %368 = vector.load %arg12[%c0_146, %c0_147] : memref<16x128xf32, #tpu.memory_space<vmem>>, vector<16x128xf32>
    tpu.vector_store %arg12[%c0_146, %c0_147], %367 {strides = array<i32>} : memref<16x128xf32, #tpu.memory_space<vmem>>, vector<16x128xf32>,
    %c2_i32_148 = arith.constant 2 : i32
    %c0_149 = arith.constant 0 : index
    %c0_150 = arith.constant 0 : index
    %369 = vector.load %arg12[%c0_149, %c0_150] : memref<16x128xf32, #tpu.memory_space<vmem>>, vector<16x128xf32>
    %370 = arith.truncf %369 : vector<16x128xf32> to vector<16x128xbf16>
    %cst_151 = arith.constant dense<0.000000e+00> : vector<16x384xf32>
    %371 = tpu.matmul %370, %304, %cst_151 {dimension_numbers = #tpu.dot_dimension_numbers<[1], [0], [0], [1], [0, 0, 1, 1], [], []>} : vector<16x128xbf16>, vector<128x384xbf16>, vector<16x384xf32> -> vector<16x384xf32>
    %372 = arith.index_cast %c2_i32_148 : i32 to index
    %c0_152 = arith.constant 0 : index
    %c0_153 = arith.constant 0 : index
    %373 = vector.load %arg10[%372, %c0_152, %c0_153] : memref<8x16x384xbf16, #tpu.memory_space<vmem>>, vector<1x16x384xbf16>
    %374 = vector.shape_cast %373 : vector<1x16x384xbf16> to vector<16x384xbf16>
    %375 = arith.extf %374 : vector<16x384xbf16> to vector<16x384xf32>
    %376 = vector.extract_strided_slice %375 {offsets = [0, 0], sizes = [16, 256], strides = [1, 1]} : vector<16x384xf32> to vector<16x256xf32>
    %377 = vector.extract_strided_slice %371 {offsets = [0, 0], sizes = [16, 256], strides = [1, 1]} : vector<16x384xf32> to vector<16x256xf32>
    %378 = arith.addf %376, %377 : vector<16x256xf32>
    %379 = arith.negf %378 : vector<16x256xf32>
    %380 = math.exp %379 : vector<16x256xf32>
    %cst_154 = arith.constant 1.000000e+00 : f32
    %381 = vector.broadcast %cst_154 : f32 to vector<16x256xf32>
    %382 = arith.addf %381, %380 : vector<16x256xf32>
    %383 = arith.divf %381, %382 : vector<16x256xf32>
    %384 = vector.extract_strided_slice %383 {offsets = [0, 0], sizes = [16, 128], strides = [1, 1]} : vector<16x256xf32> to vector<16x128xf32>
    %385 = vector.extract_strided_slice %383 {offsets = [0, 128], sizes = [16, 128], strides = [1, 1]} : vector<16x256xf32> to vector<16x128xf32>
    %386 = vector.extract_strided_slice %375 {offsets = [0, 256], sizes = [16, 128], strides = [1, 1]} : vector<16x384xf32> to vector<16x128xf32>
    %387 = vector.extract_strided_slice %371 {offsets = [0, 256], sizes = [16, 128], strides = [1, 1]} : vector<16x384xf32> to vector<16x128xf32>
    %388 = arith.addf %387, %308 : vector<16x128xf32>
    %389 = arith.mulf %384, %388 : vector<16x128xf32>
    %390 = arith.addf %386, %389 : vector<16x128xf32>
    %391 = math.tanh %390 : vector<16x128xf32>
    %cst_155 = arith.constant 1.000000e+00 : f32
    %392 = vector.broadcast %cst_155 : f32 to vector<16x128xf32>
    %393 = arith.subf %392, %385 : vector<16x128xf32>
    %394 = arith.mulf %393, %391 : vector<16x128xf32>
    %395 = arith.mulf %385, %369 : vector<16x128xf32>
    %396 = arith.addf %394, %395 : vector<16x128xf32>
    %c0_156 = arith.constant 0 : index
    %c0_157 = arith.constant 0 : index
    %397 = vector.load %arg12[%c0_156, %c0_157] : memref<16x128xf32, #tpu.memory_space<vmem>>, vector<16x128xf32>
    tpu.vector_store %arg12[%c0_156, %c0_157], %396 {strides = array<i32>} : memref<16x128xf32, #tpu.memory_space<vmem>>, vector<16x128xf32>,
    %c3_i32_158 = arith.constant 3 : i32
    %c0_159 = arith.constant 0 : index
    %c0_160 = arith.constant 0 : index
    %398 = vector.load %arg12[%c0_159, %c0_160] : memref<16x128xf32, #tpu.memory_space<vmem>>, vector<16x128xf32>
    %399 = arith.truncf %398 : vector<16x128xf32> to vector<16x128xbf16>
    %cst_161 = arith.constant dense<0.000000e+00> : vector<16x384xf32>
    %400 = tpu.matmul %399, %304, %cst_161 {dimension_numbers = #tpu.dot_dimension_numbers<[1], [0], [0], [1], [0, 0, 1, 1], [], []>} : vector<16x128xbf16>, vector<128x384xbf16>, vector<16x384xf32> -> vector<16x384xf32>
    %401 = arith.index_cast %c3_i32_158 : i32 to index
    %c0_162 = arith.constant 0 : index
    %c0_163 = arith.constant 0 : index
    %402 = vector.load %arg10[%401, %c0_162, %c0_163] : memref<8x16x384xbf16, #tpu.memory_space<vmem>>, vector<1x16x384xbf16>
    %403 = vector.shape_cast %402 : vector<1x16x384xbf16> to vector<16x384xbf16>
    %404 = arith.extf %403 : vector<16x384xbf16> to vector<16x384xf32>
    %405 = vector.extract_strided_slice %404 {offsets = [0, 0], sizes = [16, 256], strides = [1, 1]} : vector<16x384xf32> to vector<16x256xf32>
    %406 = vector.extract_strided_slice %400 {offsets = [0, 0], sizes = [16, 256], strides = [1, 1]} : vector<16x384xf32> to vector<16x256xf32>
    %407 = arith.addf %405, %406 : vector<16x256xf32>
    %408 = arith.negf %407 : vector<16x256xf32>
    %409 = math.exp %408 : vector<16x256xf32>
    %cst_164 = arith.constant 1.000000e+00 : f32
    %410 = vector.broadcast %cst_164 : f32 to vector<16x256xf32>
    %411 = arith.addf %410, %409 : vector<16x256xf32>
    %412 = arith.divf %410, %411 : vector<16x256xf32>
    %413 = vector.extract_strided_slice %412 {offsets = [0, 0], sizes = [16, 128], strides = [1, 1]} : vector<16x256xf32> to vector<16x128xf32>
    %414 = vector.extract_strided_slice %412 {offsets = [0, 128], sizes = [16, 128], strides = [1, 1]} : vector<16x256xf32> to vector<16x128xf32>
    %415 = vector.extract_strided_slice %404 {offsets = [0, 256], sizes = [16, 128], strides = [1, 1]} : vector<16x384xf32> to vector<16x128xf32>
    %416 = vector.extract_strided_slice %400 {offsets = [0, 256], sizes = [16, 128], strides = [1, 1]} : vector<16x384xf32> to vector<16x128xf32>
    %417 = arith.addf %416, %308 : vector<16x128xf32>
    %418 = arith.mulf %413, %417 : vector<16x128xf32>
    %419 = arith.addf %415, %418 : vector<16x128xf32>
    %420 = math.tanh %419 : vector<16x128xf32>
    %cst_165 = arith.constant 1.000000e+00 : f32
    %421 = vector.broadcast %cst_165 : f32 to vector<16x128xf32>
    %422 = arith.subf %421, %414 : vector<16x128xf32>
    %423 = arith.mulf %422, %420 : vector<16x128xf32>
    %424 = arith.mulf %414, %398 : vector<16x128xf32>
    %425 = arith.addf %423, %424 : vector<16x128xf32>
    %c0_166 = arith.constant 0 : index
    %c0_167 = arith.constant 0 : index
    %426 = vector.load %arg12[%c0_166, %c0_167] : memref<16x128xf32, #tpu.memory_space<vmem>>, vector<16x128xf32>
    tpu.vector_store %arg12[%c0_166, %c0_167], %425 {strides = array<i32>} : memref<16x128xf32, #tpu.memory_space<vmem>>, vector<16x128xf32>,
    %c4_i32_168 = arith.constant 4 : i32
    %c0_169 = arith.constant 0 : index
    %c0_170 = arith.constant 0 : index
    %427 = vector.load %arg12[%c0_169, %c0_170] : memref<16x128xf32, #tpu.memory_space<vmem>>, vector<16x128xf32>
    %428 = arith.truncf %427 : vector<16x128xf32> to vector<16x128xbf16>
    %cst_171 = arith.constant dense<0.000000e+00> : vector<16x384xf32>
    %429 = tpu.matmul %428, %304, %cst_171 {dimension_numbers = #tpu.dot_dimension_numbers<[1], [0], [0], [1], [0, 0, 1, 1], [], []>} : vector<16x128xbf16>, vector<128x384xbf16>, vector<16x384xf32> -> vector<16x384xf32>
    %430 = arith.index_cast %c4_i32_168 : i32 to index
    %c0_172 = arith.constant 0 : index
    %c0_173 = arith.constant 0 : index
    %431 = vector.load %arg10[%430, %c0_172, %c0_173] : memref<8x16x384xbf16, #tpu.memory_space<vmem>>, vector<1x16x384xbf16>
    %432 = vector.shape_cast %431 : vector<1x16x384xbf16> to vector<16x384xbf16>
    %433 = arith.extf %432 : vector<16x384xbf16> to vector<16x384xf32>
    %434 = vector.extract_strided_slice %433 {offsets = [0, 0], sizes = [16, 256], strides = [1, 1]} : vector<16x384xf32> to vector<16x256xf32>
    %435 = vector.extract_strided_slice %429 {offsets = [0, 0], sizes = [16, 256], strides = [1, 1]} : vector<16x384xf32> to vector<16x256xf32>
    %436 = arith.addf %434, %435 : vector<16x256xf32>
    %437 = arith.negf %436 : vector<16x256xf32>
    %438 = math.exp %437 : vector<16x256xf32>
    %cst_174 = arith.constant 1.000000e+00 : f32
    %439 = vector.broadcast %cst_174 : f32 to vector<16x256xf32>
    %440 = arith.addf %439, %438 : vector<16x256xf32>
    %441 = arith.divf %439, %440 : vector<16x256xf32>
    %442 = vector.extract_strided_slice %441 {offsets = [0, 0], sizes = [16, 128], strides = [1, 1]} : vector<16x256xf32> to vector<16x128xf32>
    %443 = vector.extract_strided_slice %441 {offsets = [0, 128], sizes = [16, 128], strides = [1, 1]} : vector<16x256xf32> to vector<16x128xf32>
    %444 = vector.extract_strided_slice %433 {offsets = [0, 256], sizes = [16, 128], strides = [1, 1]} : vector<16x384xf32> to vector<16x128xf32>
    %445 = vector.extract_strided_slice %429 {offsets = [0, 256], sizes = [16, 128], strides = [1, 1]} : vector<16x384xf32> to vector<16x128xf32>
    %446 = arith.addf %445, %308 : vector<16x128xf32>
    %447 = arith.mulf %442, %446 : vector<16x128xf32>
    %448 = arith.addf %444, %447 : vector<16x128xf32>
    %449 = math.tanh %448 : vector<16x128xf32>
    %cst_175 = arith.constant 1.000000e+00 : f32
    %450 = vector.broadcast %cst_175 : f32 to vector<16x128xf32>
    %451 = arith.subf %450, %443 : vector<16x128xf32>
    %452 = arith.mulf %451, %449 : vector<16x128xf32>
    %453 = arith.mulf %443, %427 : vector<16x128xf32>
    %454 = arith.addf %452, %453 : vector<16x128xf32>
    %c0_176 = arith.constant 0 : index
    %c0_177 = arith.constant 0 : index
    %455 = vector.load %arg12[%c0_176, %c0_177] : memref<16x128xf32, #tpu.memory_space<vmem>>, vector<16x128xf32>
    tpu.vector_store %arg12[%c0_176, %c0_177], %454 {strides = array<i32>} : memref<16x128xf32, #tpu.memory_space<vmem>>, vector<16x128xf32>,
    %c5_i32_178 = arith.constant 5 : i32
    %c0_179 = arith.constant 0 : index
    %c0_180 = arith.constant 0 : index
    %456 = vector.load %arg12[%c0_179, %c0_180] : memref<16x128xf32, #tpu.memory_space<vmem>>, vector<16x128xf32>
    %457 = arith.truncf %456 : vector<16x128xf32> to vector<16x128xbf16>
    %cst_181 = arith.constant dense<0.000000e+00> : vector<16x384xf32>
    %458 = tpu.matmul %457, %304, %cst_181 {dimension_numbers = #tpu.dot_dimension_numbers<[1], [0], [0], [1], [0, 0, 1, 1], [], []>} : vector<16x128xbf16>, vector<128x384xbf16>, vector<16x384xf32> -> vector<16x384xf32>
    %459 = arith.index_cast %c5_i32_178 : i32 to index
    %c0_182 = arith.constant 0 : index
    %c0_183 = arith.constant 0 : index
    %460 = vector.load %arg10[%459, %c0_182, %c0_183] : memref<8x16x384xbf16, #tpu.memory_space<vmem>>, vector<1x16x384xbf16>
    %461 = vector.shape_cast %460 : vector<1x16x384xbf16> to vector<16x384xbf16>
    %462 = arith.extf %461 : vector<16x384xbf16> to vector<16x384xf32>
    %463 = vector.extract_strided_slice %462 {offsets = [0, 0], sizes = [16, 256], strides = [1, 1]} : vector<16x384xf32> to vector<16x256xf32>
    %464 = vector.extract_strided_slice %458 {offsets = [0, 0], sizes = [16, 256], strides = [1, 1]} : vector<16x384xf32> to vector<16x256xf32>
    %465 = arith.addf %463, %464 : vector<16x256xf32>
    %466 = arith.negf %465 : vector<16x256xf32>
    %467 = math.exp %466 : vector<16x256xf32>
    %cst_184 = arith.constant 1.000000e+00 : f32
    %468 = vector.broadcast %cst_184 : f32 to vector<16x256xf32>
    %469 = arith.addf %468, %467 : vector<16x256xf32>
    %470 = arith.divf %468, %469 : vector<16x256xf32>
    %471 = vector.extract_strided_slice %470 {offsets = [0, 0], sizes = [16, 128], strides = [1, 1]} : vector<16x256xf32> to vector<16x128xf32>
    %472 = vector.extract_strided_slice %470 {offsets = [0, 128], sizes = [16, 128], strides = [1, 1]} : vector<16x256xf32> to vector<16x128xf32>
    %473 = vector.extract_strided_slice %462 {offsets = [0, 256], sizes = [16, 128], strides = [1, 1]} : vector<16x384xf32> to vector<16x128xf32>
    %474 = vector.extract_strided_slice %458 {offsets = [0, 256], sizes = [16, 128], strides = [1, 1]} : vector<16x384xf32> to vector<16x128xf32>
    %475 = arith.addf %474, %308 : vector<16x128xf32>
    %476 = arith.mulf %471, %475 : vector<16x128xf32>
    %477 = arith.addf %473, %476 : vector<16x128xf32>
    %478 = math.tanh %477 : vector<16x128xf32>
    %cst_185 = arith.constant 1.000000e+00 : f32
    %479 = vector.broadcast %cst_185 : f32 to vector<16x128xf32>
    %480 = arith.subf %479, %472 : vector<16x128xf32>
    %481 = arith.mulf %480, %478 : vector<16x128xf32>
    %482 = arith.mulf %472, %456 : vector<16x128xf32>
    %483 = arith.addf %481, %482 : vector<16x128xf32>
    %c0_186 = arith.constant 0 : index
    %c0_187 = arith.constant 0 : index
    %484 = vector.load %arg12[%c0_186, %c0_187] : memref<16x128xf32, #tpu.memory_space<vmem>>, vector<16x128xf32>
    tpu.vector_store %arg12[%c0_186, %c0_187], %483 {strides = array<i32>} : memref<16x128xf32, #tpu.memory_space<vmem>>, vector<16x128xf32>,
    %c6_i32_188 = arith.constant 6 : i32
    %c0_189 = arith.constant 0 : index
    %c0_190 = arith.constant 0 : index
    %485 = vector.load %arg12[%c0_189, %c0_190] : memref<16x128xf32, #tpu.memory_space<vmem>>, vector<16x128xf32>
    %486 = arith.truncf %485 : vector<16x128xf32> to vector<16x128xbf16>
    %cst_191 = arith.constant dense<0.000000e+00> : vector<16x384xf32>
    %487 = tpu.matmul %486, %304, %cst_191 {dimension_numbers = #tpu.dot_dimension_numbers<[1], [0], [0], [1], [0, 0, 1, 1], [], []>} : vector<16x128xbf16>, vector<128x384xbf16>, vector<16x384xf32> -> vector<16x384xf32>
    %488 = arith.index_cast %c6_i32_188 : i32 to index
    %c0_192 = arith.constant 0 : index
    %c0_193 = arith.constant 0 : index
    %489 = vector.load %arg10[%488, %c0_192, %c0_193] : memref<8x16x384xbf16, #tpu.memory_space<vmem>>, vector<1x16x384xbf16>
    %490 = vector.shape_cast %489 : vector<1x16x384xbf16> to vector<16x384xbf16>
    %491 = arith.extf %490 : vector<16x384xbf16> to vector<16x384xf32>
    %492 = vector.extract_strided_slice %491 {offsets = [0, 0], sizes = [16, 256], strides = [1, 1]} : vector<16x384xf32> to vector<16x256xf32>
    %493 = vector.extract_strided_slice %487 {offsets = [0, 0], sizes = [16, 256], strides = [1, 1]} : vector<16x384xf32> to vector<16x256xf32>
    %494 = arith.addf %492, %493 : vector<16x256xf32>
    %495 = arith.negf %494 : vector<16x256xf32>
    %496 = math.exp %495 : vector<16x256xf32>
    %cst_194 = arith.constant 1.000000e+00 : f32
    %497 = vector.broadcast %cst_194 : f32 to vector<16x256xf32>
    %498 = arith.addf %497, %496 : vector<16x256xf32>
    %499 = arith.divf %497, %498 : vector<16x256xf32>
    %500 = vector.extract_strided_slice %499 {offsets = [0, 0], sizes = [16, 128], strides = [1, 1]} : vector<16x256xf32> to vector<16x128xf32>
    %501 = vector.extract_strided_slice %499 {offsets = [0, 128], sizes = [16, 128], strides = [1, 1]} : vector<16x256xf32> to vector<16x128xf32>
    %502 = vector.extract_strided_slice %491 {offsets = [0, 256], sizes = [16, 128], strides = [1, 1]} : vector<16x384xf32> to vector<16x128xf32>
    %503 = vector.extract_strided_slice %487 {offsets = [0, 256], sizes = [16, 128], strides = [1, 1]} : vector<16x384xf32> to vector<16x128xf32>
    %504 = arith.addf %503, %308 : vector<16x128xf32>
    %505 = arith.mulf %500, %504 : vector<16x128xf32>
    %506 = arith.addf %502, %505 : vector<16x128xf32>
    %507 = math.tanh %506 : vector<16x128xf32>
    %cst_195 = arith.constant 1.000000e+00 : f32
    %508 = vector.broadcast %cst_195 : f32 to vector<16x128xf32>
    %509 = arith.subf %508, %501 : vector<16x128xf32>
    %510 = arith.mulf %509, %507 : vector<16x128xf32>
    %511 = arith.mulf %501, %485 : vector<16x128xf32>
    %512 = arith.addf %510, %511 : vector<16x128xf32>
    %c0_196 = arith.constant 0 : index
    %c0_197 = arith.constant 0 : index
    %513 = vector.load %arg12[%c0_196, %c0_197] : memref<16x128xf32, #tpu.memory_space<vmem>>, vector<16x128xf32>
    tpu.vector_store %arg12[%c0_196, %c0_197], %512 {strides = array<i32>} : memref<16x128xf32, #tpu.memory_space<vmem>>, vector<16x128xf32>,
    %c7_i32_198 = arith.constant 7 : i32
    %c0_199 = arith.constant 0 : index
    %c0_200 = arith.constant 0 : index
    %514 = vector.load %arg12[%c0_199, %c0_200] : memref<16x128xf32, #tpu.memory_space<vmem>>, vector<16x128xf32>
    %515 = arith.truncf %514 : vector<16x128xf32> to vector<16x128xbf16>
    %cst_201 = arith.constant dense<0.000000e+00> : vector<16x384xf32>
    %516 = tpu.matmul %515, %304, %cst_201 {dimension_numbers = #tpu.dot_dimension_numbers<[1], [0], [0], [1], [0, 0, 1, 1], [], []>} : vector<16x128xbf16>, vector<128x384xbf16>, vector<16x384xf32> -> vector<16x384xf32>
    %517 = arith.index_cast %c7_i32_198 : i32 to index
    %c0_202 = arith.constant 0 : index
    %c0_203 = arith.constant 0 : index
    %518 = vector.load %arg10[%517, %c0_202, %c0_203] : memref<8x16x384xbf16, #tpu.memory_space<vmem>>, vector<1x16x384xbf16>
    %519 = vector.shape_cast %518 : vector<1x16x384xbf16> to vector<16x384xbf16>
    %520 = arith.extf %519 : vector<16x384xbf16> to vector<16x384xf32>
    %521 = vector.extract_strided_slice %520 {offsets = [0, 0], sizes = [16, 256], strides = [1, 1]} : vector<16x384xf32> to vector<16x256xf32>
    %522 = vector.extract_strided_slice %516 {offsets = [0, 0], sizes = [16, 256], strides = [1, 1]} : vector<16x384xf32> to vector<16x256xf32>
    %523 = arith.addf %521, %522 : vector<16x256xf32>
    %524 = arith.negf %523 : vector<16x256xf32>
    %525 = math.exp %524 : vector<16x256xf32>
    %cst_204 = arith.constant 1.000000e+00 : f32
    %526 = vector.broadcast %cst_204 : f32 to vector<16x256xf32>
    %527 = arith.addf %526, %525 : vector<16x256xf32>
    %528 = arith.divf %526, %527 : vector<16x256xf32>
    %529 = vector.extract_strided_slice %528 {offsets = [0, 0], sizes = [16, 128], strides = [1, 1]} : vector<16x256xf32> to vector<16x128xf32>
    %530 = vector.extract_strided_slice %528 {offsets = [0, 128], sizes = [16, 128], strides = [1, 1]} : vector<16x256xf32> to vector<16x128xf32>
    %531 = vector.extract_strided_slice %520 {offsets = [0, 256], sizes = [16, 128], strides = [1, 1]} : vector<16x384xf32> to vector<16x128xf32>
    %532 = vector.extract_strided_slice %516 {offsets = [0, 256], sizes = [16, 128], strides = [1, 1]} : vector<16x384xf32> to vector<16x128xf32>
    %533 = arith.addf %532, %308 : vector<16x128xf32>
    %534 = arith.mulf %529, %533 : vector<16x128xf32>
    %535 = arith.addf %531, %534 : vector<16x128xf32>
    %536 = math.tanh %535 : vector<16x128xf32>
    %cst_205 = arith.constant 1.000000e+00 : f32
    %537 = vector.broadcast %cst_205 : f32 to vector<16x128xf32>
    %538 = arith.subf %537, %530 : vector<16x128xf32>
    %539 = arith.mulf %538, %536 : vector<16x128xf32>
    %540 = arith.mulf %530, %514 : vector<16x128xf32>
    %541 = arith.addf %539, %540 : vector<16x128xf32>
    %c0_206 = arith.constant 0 : index
    %c0_207 = arith.constant 0 : index
    %542 = vector.load %arg12[%c0_206, %c0_207] : memref<16x128xf32, #tpu.memory_space<vmem>>, vector<16x128xf32>
    tpu.vector_store %arg12[%c0_206, %c0_207], %541 {strides = array<i32>} : memref<16x128xf32, #tpu.memory_space<vmem>>, vector<16x128xf32>,
    %c8_i32_208 = arith.constant 8 : i32
    %c0_209 = arith.constant 0 : index
    %c0_210 = arith.constant 0 : index
    %543 = vector.load %arg12[%c0_209, %c0_210] : memref<16x128xf32, #tpu.memory_space<vmem>>, vector<16x128xf32>
    %544 = arith.truncf %543 : vector<16x128xf32> to vector<16x128xbf16>
    %c0_211 = arith.constant 0 : index
    %c0_212 = arith.constant 0 : index
    %545 = vector.load %arg7[%c0_211, %c0_212] : memref<128x128xbf16, #tpu.memory_space<vmem>>, vector<128x128xbf16>
    %cst_213 = arith.constant dense<0.000000e+00> : vector<16x128xf32>
    %546 = tpu.matmul %544, %545, %cst_213 {dimension_numbers = #tpu.dot_dimension_numbers<[1], [0], [0], [1], [0, 0, 1, 1], [], []>} : vector<16x128xbf16>, vector<128x128xbf16>, vector<16x128xf32> -> vector<16x128xf32>
    %c0_214 = arith.constant 0 : index
    %c0_215 = arith.constant 0 : index
    %547 = vector.load %arg8[%c0_214, %c0_215] : memref<1x128xf32, #tpu.memory_space<vmem>>, vector<1x128xf32>
    %548 = vector.broadcast %547 : vector<1x128xf32> to vector<16x128xf32>
    %549 = arith.addf %546, %548 : vector<16x128xf32>
    %c0_216 = arith.constant 0 : index
    %c0_217 = arith.constant 0 : index
    %550 = vector.load %arg9[%c0_216, %c0_217] : memref<16x128xf32, #tpu.memory_space<vmem>>, vector<16x128xf32>
    tpu.vector_store %arg9[%c0_216, %c0_217], %549 {strides = array<i32>} : memref<16x128xf32, #tpu.memory_space<vmem>>, vector<16x128xf32>,
    return
  }
  func.func @transform_0(%arg0: i32) -> (i32, i32, i32) {
    %c0_i32 = arith.constant 0 : i32
    %c0_i32_0 = arith.constant 0 : i32
    %c0_i32_1 = arith.constant 0 : i32
    return %c0_i32, %arg0, %c0_i32_0 : i32, i32, i32
  }
  func.func @transform_1(%arg0: i32) -> (i32, i32) {
    %c0_i32 = arith.constant 0 : i32
    %c0_i32_0 = arith.constant 0 : i32
    %c0_i32_1 = arith.constant 0 : i32
    return %c0_i32, %c0_i32_0 : i32, i32
  }
  func.func @transform_2(%arg0: i32) -> (i32, i32, i32) {
    %c0_i32 = arith.constant 0 : i32
    %c0_i32_0 = arith.constant 0 : i32
    %c0_i32_1 = arith.constant 0 : i32
    %c0_i32_2 = arith.constant 0 : i32
    return %c0_i32, %c0_i32_0, %c0_i32_1 : i32, i32, i32
  }
  func.func @transform_3(%arg0: i32) -> (i32, i32, i32) {
    %c0_i32 = arith.constant 0 : i32
    %c0_i32_0 = arith.constant 0 : i32
    %c0_i32_1 = arith.constant 0 : i32
    %c0_i32_2 = arith.constant 0 : i32
    return %c0_i32, %c0_i32_0, %c0_i32_1 : i32, i32, i32
  }
  func.func @transform_4(%arg0: i32) -> (i32, i32, i32) {
    %c0_i32 = arith.constant 0 : i32
    %c0_i32_0 = arith.constant 0 : i32
    %c0_i32_1 = arith.constant 0 : i32
    %c0_i32_2 = arith.constant 0 : i32
    return %c0_i32, %c0_i32_0, %c0_i32_1 : i32, i32, i32
  }
  func.func @transform_5(%arg0: i32) -> (i32, i32, i32) {
    %c0_i32 = arith.constant 0 : i32
    %c0_i32_0 = arith.constant 0 : i32
    %c0_i32_1 = arith.constant 0 : i32
    %c0_i32_2 = arith.constant 0 : i32
    return %c0_i32, %c0_i32_0, %c0_i32_1 : i32, i32, i32
  }
  func.func @transform_6(%arg0: i32) -> (i32, i32) {
    %c0_i32 = arith.constant 0 : i32
    %c0_i32_0 = arith.constant 0 : i32
    %c0_i32_1 = arith.constant 0 : i32
    return %c0_i32, %c0_i32_0 : i32, i32
  }
  func.func @transform_7(%arg0: i32) -> (i32, i32) {
    %c0_i32 = arith.constant 0 : i32
    %c0_i32_0 = arith.constant 0 : i32
    %c0_i32_1 = arith.constant 0 : i32
    return %c0_i32, %c0_i32_0 : i32, i32
  }
  func.func @transform_8(%arg0: i32) -> (i32, i32) {
    %c0_i32 = arith.constant 0 : i32
    %c0_i32_0 = arith.constant 0 : i32
    return %arg0, %c0_i32 : i32, i32
  }
}

</mosaic_0001>

<llo_original>
// kernel: tpu_custom_call.1
$region0: #{tpu_custom_call.1}
  #allocation0 [shape = 'u32[]', space=smem, size = 0x4, offset = 0x4, fixed_abs, tag = 'smem constant byte address 0x4 - core index']
  #allocation1 [shape = 'u32[144,128]{1,0:T(1,128)}', space=vmem, size = 0x12000, scoped, tag = 'internal scratch']
  #allocation2 [shape = 'bf16[8,16,384]{2,1,0:T(8,128)(2,1)}', space=vmem, size = 0x18000, scoped, tag = 'scratch operand']
  #allocation3 [shape = 'bf16[8,16,128]{2,1,0:T(8,128)(2,1)}', space=vmem, size = 0x8000, scoped, tag = 'scratch operand']
  #allocation4 [shape = 'f32[16,128]{1,0:T(8,128)}', space=vmem, size = 0x2000, scoped, tag = 'scratch operand']
  %s0 = inlined_call_operand.hbm [shape: bf16[8,16,128], index: 0, kind: input, shape index: {}]
  %s1 = inlined_call_operand.hbm [shape: bf16[128,384], index: 1, kind: input, shape index: {}]
  %s2 = inlined_call_operand.hbm [shape: bf16[1,128,384], index: 2, kind: input, shape index: {}]
  %s3 = inlined_call_operand.hbm [shape: bf16[2,128,384], index: 3, kind: input, shape index: {}]
  %s4 = inlined_call_operand.vmem [shape: f32[2,1,384], index: 4, kind: input, shape index: {}]
  %s5 = inlined_call_operand.vmem [shape: f32[2,1,128], index: 5, kind: input, shape index: {}]
  %s6 = inlined_call_operand.hbm [shape: bf16[128,128], index: 6, kind: input, shape index: {}]
  %s7 = inlined_call_operand.vmem [shape: f32[1,128], index: 7, kind: input, shape index: {}]
  %s8 = inlined_call_operand.hbm [shape: f32[16,128], index: 8, kind: output, shape index: {}]
  %s9 = sld [smem:[#allocation0]]
  $region62: #{tpu_custom_call.1} parent=0
    _
  %s11 = ssub.s32 1, %s9
  %s12 = scalar_select 0, %s11, %s9
  $region1: #{tpu_custom_call.1} parent=0
    #allocation5 [shape = 'u8[32768]{0}', space=vmem, size = 0x8000, scoped, tag = 'input window, operand 0, single buffered']
    #allocation6 [shape = 's32[1]{0}', space=sflag, size = 0x4, scoped, tag = 'scoped memory for tpu_custom_call.1']
    #allocation7 [shape = 's32[1]{0}', space=sflag, size = 0x4, scoped, tag = 'scoped memory for tpu_custom_call.1']
    #allocation8 [shape = 'u8[98304]{0}', space=vmem, size = 0x18000, scoped, tag = 'input window, operand 1, single buffered']
    #allocation9 [shape = 's32[1]{0}', space=sflag, size = 0x4, scoped, tag = 'scoped memory for tpu_custom_call.1']
    #allocation10 [shape = 'u8[98304]{0}', space=vmem, size = 0x18000, scoped, tag = 'input window, operand 2, single buffered']
    #allocation11 [shape = 'u8[196608]{0}', space=vmem, size = 0x30000, scoped, tag = 'input window, operand 3, single buffered']
    #allocation12 [shape = 's32[1]{0}', space=sflag, size = 0x4, scoped, tag = 'scoped memory for tpu_custom_call.1']
    #allocation13 [shape = 'u8[32768]{0}', space=vmem, size = 0x8000, scoped, tag = 'input window, operand 6, single buffered']
    #allocation14 [shape = 'u8[8192]{0}', space=vmem, size = 0x2000, scoped, tag = 'output window, operand 0, single buffered']
    %13 = vsyncpa [#allocation6], 0
    %14 = vsyncpa [#allocation9], 0
    %15 = vsyncpa [#allocation12], 0
    %16 = vsyncpa [#allocation7], 0
    // Predicated region
    $region2: #{tpu_custom_call.1} parent=1 // pred_check
      _
    $region3: #{tpu_custom_call.1} parent=1 // pred_check_branch
      %18 = sbr.rel (0) target = $region5
    $region4: #{tpu_custom_call.1} parent=1 // pred_region
      %s20 = ssub.s32 1024, 1024
      %21 = vsyncadd [#allocation6], %s20
      %s22 = sshll.u32 [#allocation5], 4
      %s23 = int_to_ptr.vmem [resolvable:$true] %s22
      %28 = dma.hbm_to_vmem [thread:$0]  %s0, 1024, %s23, [#allocation6], 64, 64, 4
    $region5: #{tpu_custom_call.1} parent=1 // pred_fallthru
      _
    // Predicated region
    $region6: #{tpu_custom_call.1} parent=1 // pred_check
      _
    $region7: #{tpu_custom_call.1} parent=1 // pred_check_branch
      %30 = sbr.rel (0) target = $region9
    $region8: #{tpu_custom_call.1} parent=1 // pred_region
      %s32 = ssub.s32 3072, 3072
      %33 = vsyncadd [#allocation9], %s32
      %s34 = sshll.u32 [#allocation8], 4
      %s35 = int_to_ptr.vmem [resolvable:$true] %s34
      %40 = dma.hbm_to_vmem [thread:$0]  %s1, 3072, %s35, [#allocation9], 192, 192, 12
    $region9: #{tpu_custom_call.1} parent=1 // pred_fallthru
      _
    // Predicated region
    $region10: #{tpu_custom_call.1} parent=1 // pred_check
      _
    $region11: #{tpu_custom_call.1} parent=1 // pred_check_branch
      %42 = sbr.rel (0) target = $region13
    $region12: #{tpu_custom_call.1} parent=1 // pred_region
      %s44 = ssub.s32 3072, 3072
      %45 = vsyncadd [#allocation9], %s44
      %s46 = sshll.u32 [#allocation10], 4
      %s47 = int_to_ptr.vmem [resolvable:$true] %s46
      %52 = dma.hbm_to_vmem [thread:$0]  %s2, 3072, %s47, [#allocation9], 192, 192, 12
    $region13: #{tpu_custom_call.1} parent=1 // pred_fallthru
      _
    // Predicated region
    $region14: #{tpu_custom_call.1} parent=1 // pred_check
      _
    $region15: #{tpu_custom_call.1} parent=1 // pred_check_branch
      %54 = sbr.rel (0) target = $region17
    $region16: #{tpu_custom_call.1} parent=1 // pred_region
      %s56 = ssub.s32 6144, 6144
      %57 = vsyncadd [#allocation12], %s56
      %s58 = sshll.u32 [#allocation11], 4
      %s59 = int_to_ptr.vmem [resolvable:$true] %s58
      %64 = dma.hbm_to_vmem [thread:$0]  %s3, 6144, %s59, [#allocation12], 192, 192, 12
    $region17: #{tpu_custom_call.1} parent=1 // pred_fallthru
      _
    // Predicated region
    $region18: #{tpu_custom_call.1} parent=1 // pred_check
      _
    $region19: #{tpu_custom_call.1} parent=1 // pred_check_branch
      %66 = sbr.rel (0) target = $region21
    $region20: #{tpu_custom_call.1} parent=1 // pred_region
      _
    $region21: #{tpu_custom_call.1} parent=1 // pred_fallthru
      _
    // Predicated region
    $region22: #{tpu_custom_call.1} parent=1 // pred_check
      _
    $region23: #{tpu_custom_call.1} parent=1 // pred_check_branch
      %68 = sbr.rel (0) target = $region25
    $region24: #{tpu_custom_call.1} parent=1 // pred_region
      _
    $region25: #{tpu_custom_call.1} parent=1 // pred_fallthru
      _
    // Predicated region
    $region26: #{tpu_custom_call.1} parent=1 // pred_check
      _
    $region27: #{tpu_custom_call.1} parent=1 // pred_check_branch
      %70 = sbr.rel (0) target = $region29
    $region28: #{tpu_custom_call.1} parent=1 // pred_region
      %s72 = ssub.s32 1024, 1024
      %73 = vsyncadd [#allocation12], %s72
      %s74 = sshll.u32 [#allocation13], 4
      %s75 = int_to_ptr.vmem [resolvable:$true] %s74
      %80 = dma.hbm_to_vmem [thread:$0]  %s6, 1024, %s75, [#allocation12], 64, 64, 4
    $region29: #{tpu_custom_call.1} parent=1 // pred_fallthru
      _
    // Predicated region
    $region30: #{tpu_custom_call.1} parent=1 // pred_check
      _
    $region31: #{tpu_custom_call.1} parent=1 // pred_check_branch
      %82 = sbr.rel (0) target = $region33
    $region32: #{tpu_custom_call.1} parent=1 // pred_region
      _
    $region33: #{tpu_custom_call.1} parent=1 // pred_fallthru
      _
    // Predicated region
    $region34: #{tpu_custom_call.1} parent=1 // pred_check
      _
    $region35: #{tpu_custom_call.1} parent=1 // pred_check_branch
      %84 = sbr.rel (0) target = $region37
    $region36: #{tpu_custom_call.1} parent=1 // pred_region
      %85 = dma.done [#allocation6], 1024
    $region37: #{tpu_custom_call.1} parent=1 // pred_fallthru
      _
    // Predicated region
    $region38: #{tpu_custom_call.1} parent=1 // pred_check
      _
    $region39: #{tpu_custom_call.1} parent=1 // pred_check_branch
      %87 = sbr.rel (0) target = $region41
    $region40: #{tpu_custom_call.1} parent=1 // pred_region
      %88 = dma.done [#allocation9], 3072
    $region41: #{tpu_custom_call.1} parent=1 // pred_fallthru
      _
    // Predicated region
    $region42: #{tpu_custom_call.1} parent=1 // pred_check
      _
    $region43: #{tpu_custom_call.1} parent=1 // pred_check_branch
      %90 = sbr.rel (0) target = $region45
    $region44: #{tpu_custom_call.1} parent=1 // pred_region
      %91 = dma.done [#allocation9], 3072
    $region45: #{tpu_custom_call.1} parent=1 // pred_fallthru
      _
    // Predicated region
    $region46: #{tpu_custom_call.1} parent=1 // pred_check
      _
    $region47: #{tpu_custom_call.1} parent=1 // pred_check_branch
      %93 = sbr.rel (0) target = $region49
    $region48: #{tpu_custom_call.1} parent=1 // pred_region
      %94 = dma.done [#allocation12], 6144
    $region49: #{tpu_custom_call.1} parent=1 // pred_fallthru
      _
    // Predicated region
    $region50: #{tpu_custom_call.1} parent=1 // pred_check
      _
    $region51: #{tpu_custom_call.1} parent=1 // pred_check_branch
      %96 = sbr.rel (0) target = $region53
    $region52: #{tpu_custom_call.1} parent=1 // pred_region
      %97 = dma.done [#allocation12], 1024
    $region53: #{tpu_custom_call.1} parent=1 // pred_fallthru
      _
    %v99 = vld [vmem:[#allocation5] sm:$0xf]
    %v100 = vld [vmem:[#allocation5 + $0x4] sm:$0xf]
    %v101 = vld [vmem:[#allocation5 + $0x8] sm:$0xf]
    %v102 = vld [vmem:[#allocation5 + $0xc] sm:$0xf]
    %v103 = vld [vmem:[#allocation5 + $0x10] sm:$0xf]
    %v104 = vld [vmem:[#allocation5 + $0x14] sm:$0xf]
    %v105 = vld [vmem:[#allocation5 + $0x18] sm:$0xf]
    %v106 = vld [vmem:[#allocation5 + $0x1c] sm:$0xf]
    %v107 = vld [vmem:[#allocation5 + $0x20] sm:$0xf]
    %v108 = vld [vmem:[#allocation5 + $0x24] sm:$0xf]
    %v109 = vld [vmem:[#allocation5 + $0x28] sm:$0xf]
    %v110 = vld [vmem:[#allocation5 + $0x2c] sm:$0xf]
    %v111 = vld [vmem:[#allocation5 + $0x30] sm:$0xf]
    %v112 = vld [vmem:[#allocation5 + $0x34] sm:$0xf]
    %v113 = vld [vmem:[#allocation5 + $0x38] sm:$0xf]
    %v114 = vld [vmem:[#allocation5 + $0x3c] sm:$0xf]
    %v115 = vld [vmem:[#allocation8] sm:$0xff]
    %v116 = vld [vmem:[#allocation8 + $0x8] sm:$0xf]
    %v117 = vld [vmem:[#allocation8 + $0xc] sm:$0xff]
    %v118 = vld [vmem:[#allocation8 + $0x14] sm:$0xf]
    %v119 = vld [vmem:[#allocation8 + $0x18] sm:$0xff]
    %v120 = vld [vmem:[#allocation8 + $0x20] sm:$0xf]
    %v121 = vld [vmem:[#allocation8 + $0x24] sm:$0xff]
    %v122 = vld [vmem:[#allocation8 + $0x2c] sm:$0xf]
    %v123 = vld [vmem:[#allocation8 + $0x30] sm:$0xff]
    %v124 = vld [vmem:[#allocation8 + $0x38] sm:$0xf]
    %v125 = vld [vmem:[#allocation8 + $0x3c] sm:$0xff]
    %v126 = vld [vmem:[#allocation8 + $0x44] sm:$0xf]
    %v127 = vld [vmem:[#allocation8 + $0x48] sm:$0xff]
    %v128 = vld [vmem:[#allocation8 + $0x50] sm:$0xf]
    %v129 = vld [vmem:[#allocation8 + $0x54] sm:$0xff]
    %v130 = vld [vmem:[#allocation8 + $0x5c] sm:$0xf]
    %v131 = vld [vmem:[#allocation8 + $0x60] sm:$0xff]
    %v132 = vld [vmem:[#allocation8 + $0x68] sm:$0xf]
    %v133 = vld [vmem:[#allocation8 + $0x6c] sm:$0xff]
    %v134 = vld [vmem:[#allocation8 + $0x74] sm:$0xf]
    %v135 = vld [vmem:[#allocation8 + $0x78] sm:$0xff]
    %v136 = vld [vmem:[#allocation8 + $0x80] sm:$0xf]
    %v137 = vld [vmem:[#allocation8 + $0x84] sm:$0xff]
    %v138 = vld [vmem:[#allocation8 + $0x8c] sm:$0xf]
    %v139 = vld [vmem:[#allocation8 + $0x90] sm:$0xff]
    %v140 = vld [vmem:[#allocation8 + $0x98] sm:$0xf]
    %v141 = vld [vmem:[#allocation8 + $0x9c] sm:$0xff]
    %v142 = vld [vmem:[#allocation8 + $0xa4] sm:$0xf]
    %v143 = vld [vmem:[#allocation8 + $0xa8] sm:$0xff]
    %v144 = vld [vmem:[#allocation8 + $0xb0] sm:$0xf]
    %v145 = vld [vmem:[#allocation8 + $0xb4] sm:$0xff]
    %v146 = vld [vmem:[#allocation8 + $0xbc] sm:$0xf]
    %v147 = vld [vmem:[%s4] sm:$0x7]
    %v149 = vlaneseq
    %v150 = vshrl.u32 %v149, 7
    %v151 = vsub.s32 0, %v150
    %v152 = vrot.slane %v147, %v151
    %v153 = vlaneseq
    %v154 = vshrl.u32 %v153, 7
    %v155 = vsub.s32 1, %v154
    %v156 = vrot.slane %v147, %v155
    %v157 = vlaneseq
    %v158 = vshrl.u32 %v157, 7
    %v159 = vsub.s32 2, %v158
    %v160 = vrot.slane %v147, %v159
    %v180 = vunpack.c.l.b16 %v99
    %v181 = vunpack.c.l.b16 %v100
    %v182 = vunpack.c.l.b16 %v101
    %v183 = vunpack.c.l.b16 %v102
    %v184 = vunpack.c.l.b16 %v103
    %v185 = vunpack.c.l.b16 %v104
    %v186 = vunpack.c.l.b16 %v105
    %v187 = vunpack.c.l.b16 %v106
    %v188 = vunpack.c.l.b16 %v107
    %v189 = vunpack.c.l.b16 %v108
    %v190 = vunpack.c.l.b16 %v109
    %v191 = vunpack.c.l.b16 %v110
    %v192 = vunpack.c.l.b16 %v111
    %v193 = vunpack.c.l.b16 %v112
    %v194 = vunpack.c.l.b16 %v113
    %v195 = vunpack.c.l.b16 %v114
    %v196 = vpack.c.b16 %v181, %v180
    %v197 = vpack.c.b16 %v183, %v182
    %v198 = vpack.c.b16 %v185, %v184
    %v199 = vpack.c.b16 %v187, %v186
    %v200 = vpack.c.b16 %v189, %v188
    %v201 = vpack.c.b16 %v191, %v190
    %v202 = vpack.c.b16 %v193, %v192
    %v203 = vpack.c.b16 %v195, %v194
    %v244 = vunpack.c.l.b16 %v115
    %v245 = vunpack.c.h.b16 %v115
    %v246 = vunpack.c.l.b16 %v116
    %v247 = vunpack.c.l.b16 %v117
    %v248 = vunpack.c.h.b16 %v117
    %v249 = vunpack.c.l.b16 %v118
    %v250 = vunpack.c.l.b16 %v119
    %v251 = vunpack.c.h.b16 %v119
    %v252 = vunpack.c.l.b16 %v120
    %v253 = vunpack.c.l.b16 %v121
    %v254 = vunpack.c.h.b16 %v121
    %v255 = vunpack.c.l.b16 %v122
    %v256 = vunpack.c.l.b16 %v123
    %v257 = vunpack.c.h.b16 %v123
    %v258 = vunpack.c.l.b16 %v124
    %v259 = vunpack.c.l.b16 %v125
    %v260 = vunpack.c.h.b16 %v125
    %v261 = vunpack.c.l.b16 %v126
    %v262 = vunpack.c.l.b16 %v127
    %v263 = vunpack.c.h.b16 %v127
    %v264 = vunpack.c.l.b16 %v128
    %v265 = vunpack.c.l.b16 %v129
    %v266 = vunpack.c.h.b16 %v129
    %v267 = vunpack.c.l.b16 %v130
    %v268 = vunpack.c.l.b16 %v131
    %v269 = vunpack.c.h.b16 %v131
    %v270 = vunpack.c.l.b16 %v132
    %v271 = vunpack.c.l.b16 %v133
    %v272 = vunpack.c.h.b16 %v133
    %v273 = vunpack.c.l.b16 %v134
    %v274 = vunpack.c.l.b16 %v135
    %v275 = vunpack.c.h.b16 %v135
    %v276 = vunpack.c.l.b16 %v136
    %v277 = vunpack.c.l.b16 %v137
    %v278 = vunpack.c.h.b16 %v137
    %v279 = vunpack.c.l.b16 %v138
    %v280 = vunpack.c.l.b16 %v139
    %v281 = vunpack.c.h.b16 %v139
    %v282 = vunpack.c.l.b16 %v140
    %v283 = vunpack.c.l.b16 %v141
    %v284 = vunpack.c.h.b16 %v141
    %v285 = vunpack.c.l.b16 %v142
    %v286 = vunpack.c.l.b16 %v143
    %v287 = vunpack.c.h.b16 %v143
    %v288 = vunpack.c.l.b16 %v144
    %v289 = vunpack.c.l.b16 %v145
    %v290 = vunpack.c.h.b16 %v145
    %v291 = vunpack.c.l.b16 %v146
    %v292 = vpack.c.b16 %v247, %v244
    %v293 = vpack.c.b16 %v248, %v245
    %v294 = vpack.c.b16 %v249, %v246
    %v295 = vpack.c.b16 %v253, %v250
    %v296 = vpack.c.b16 %v254, %v251
    %v297 = vpack.c.b16 %v255, %v252
    %v298 = vpack.c.b16 %v259, %v256
    %v299 = vpack.c.b16 %v260, %v257
    %v300 = vpack.c.b16 %v261, %v258
    %v301 = vpack.c.b16 %v265, %v262
    %v302 = vpack.c.b16 %v266, %v263
    %v303 = vpack.c.b16 %v267, %v264
    %v304 = vpack.c.b16 %v271, %v268
    %v305 = vpack.c.b16 %v272, %v269
    %v306 = vpack.c.b16 %v273, %v270
    %v307 = vpack.c.b16 %v277, %v274
    %v308 = vpack.c.b16 %v278, %v275
    %v309 = vpack.c.b16 %v279, %v276
    %v310 = vpack.c.b16 %v283, %v280
    %v311 = vpack.c.b16 %v284, %v281
    %v312 = vpack.c.b16 %v285, %v282
    %v313 = vpack.c.b16 %v289, %v286
    %v314 = vpack.c.b16 %v290, %v287
    %v315 = vpack.c.b16 %v291, %v288
    %340 = vmatprep.subr.bf16.mxu0 %v314
    %341 = vmatpush1.bf16.msra.mxu0 %v313
    %342 = vmatprep.subr.bf16.mxu0 %v311
    %343 = vmatpush1.bf16.msra.mxu0 %v310
    %344 = vmatprep.subr.bf16.mxu0 %v308
    %345 = vmatpush1.bf16.msra.mxu0 %v307
    %346 = vmatprep.subr.bf16.mxu0 %v305
    %347 = vmatpush1.bf16.msra.mxu0 %v304
    %348 = vmatprep.subr.bf16.mxu0 %v302
    %349 = vmatpush1.bf16.msra.mxu0 %v301
    %350 = vmatprep.subr.bf16.mxu0 %v299
    %351 = vmatpush1.bf16.msra.mxu0 %v298
    %352 = vmatprep.subr.bf16.mxu0 %v296
    %353 = vmatpush1.bf16.msra.mxu0 %v295
    %354 = vmatprep.subr.bf16.mxu0 %v293
    %355 = vmatpush1.bf16.msra.mxu0 %v292
    %356 = vmatprep.subr.bf16.mxu0 0
    %357 = vmatpush2.bf16.msra.mxu0 0
    %358 = vmatprep.subr.bf16.mxu0 0
    %359 = vmatpush2.bf16.msra.mxu0 0
    %360 = vmatprep.subr.bf16.mxu0 0
    %361 = vmatpush2.bf16.msra.mxu0 0
    %362 = vmatprep.subr.bf16.mxu0 0
    %363 = vmatpush2.bf16.msra.mxu0 0
    %364 = vmatprep.subr.bf16.mxu0 0
    %365 = vmatpush2.bf16.msra.mxu0 0
    %366 = vmatprep.subr.bf16.mxu0 0
    %367 = vmatpush2.bf16.msra.mxu0 0
    %368 = vmatprep.subr.bf16.mxu0 0
    %369 = vmatpush2.bf16.msra.mxu0 0
    %370 = vmatprep.subr.bf16.mxu0 0
    %371 = vmatpush2.bf16.msra.mxu0 0
    %372 = vmatprep.mubr.bf16.mxu0 0
    %373 = vmatmul.mubr.bf16.gmra.mxu0 %v196
    %v374 = vpop.f32.mrf.mxu0
    %v375 = vadd.f32 %v152, %v374
    %v376 = vpop.f32.mrf.mxu0
    %v377 = vadd.f32 %v156, %v376
    %v378 = vpop.f32.mrf.mxu0
    %v379 = vadd.f32 %v152, %v378
    %v380 = vpop.f32.mrf.mxu0
    %v381 = vadd.f32 %v156, %v380
    %382 = vmatprep.mubr.bf16.mxu0 0
    %383 = vmatmul.mubr.bf16.gmra.mxu0 %v197
    %v384 = vpop.f32.mrf.mxu0
    %v385 = vadd.f32 %v152, %v384
    %v386 = vpop.f32.mrf.mxu0
    %v387 = vadd.f32 %v156, %v386
    %v388 = vpop.f32.mrf.mxu0
    %v389 = vadd.f32 %v152, %v388
    %v390 = vpop.f32.mrf.mxu0
    %v391 = vadd.f32 %v156, %v390
    %392 = vmatprep.mubr.bf16.mxu0 0
    %393 = vmatmul.mubr.bf16.gmra.mxu0 %v198
    %v394 = vpop.f32.mrf.mxu0
    %v395 = vadd.f32 %v152, %v394
    %v396 = vpop.f32.mrf.mxu0
    %v397 = vadd.f32 %v156, %v396
    %v398 = vpop.f32.mrf.mxu0
    %v399 = vadd.f32 %v152, %v398
    %v400 = vpop.f32.mrf.mxu0
    %v401 = vadd.f32 %v156, %v400
    %402 = vmatprep.mubr.bf16.mxu0 0
    %403 = vmatmul.mubr.bf16.gmra.mxu0 %v199
    %v404 = vpop.f32.mrf.mxu0
    %v405 = vadd.f32 %v152, %v404
    %v406 = vpop.f32.mrf.mxu0
    %v407 = vadd.f32 %v156, %v406
    %v408 = vpop.f32.mrf.mxu0
    %v409 = vadd.f32 %v152, %v408
    %v410 = vpop.f32.mrf.mxu0
    %v411 = vadd.f32 %v156, %v410
    %412 = vmatprep.mubr.bf16.mxu0 0
    %413 = vmatmul.mubr.bf16.gmra.mxu0 %v200
    %v414 = vpop.f32.mrf.mxu0
    %v415 = vadd.f32 %v152, %v414
    %v416 = vpop.f32.mrf.mxu0
    %v417 = vadd.f32 %v156, %v416
    %v418 = vpop.f32.mrf.mxu0
    %v419 = vadd.f32 %v152, %v418
    %v420 = vpop.f32.mrf.mxu0
    %v421 = vadd.f32 %v156, %v420
    %422 = vmatprep.mubr.bf16.mxu0 0
    %423 = vmatmul.mubr.bf16.gmra.mxu0 %v201
    %v424 = vpop.f32.mrf.mxu0
    %v425 = vadd.f32 %v152, %v424
    %v426 = vpop.f32.mrf.mxu0
    %v427 = vadd.f32 %v156, %v426
    %v428 = vpop.f32.mrf.mxu0
    %v429 = vadd.f32 %v152, %v428
    %v430 = vpop.f32.mrf.mxu0
    %v431 = vadd.f32 %v156, %v430
    %432 = vmatprep.mubr.bf16.mxu0 0
    %433 = vmatmul.mubr.bf16.gmra.mxu0 %v202
    %v434 = vpop.f32.mrf.mxu0
    %v435 = vadd.f32 %v152, %v434
    %v436 = vpop.f32.mrf.mxu0
    %v437 = vadd.f32 %v156, %v436
    %v438 = vpop.f32.mrf.mxu0
    %v439 = vadd.f32 %v152, %v438
    %v440 = vpop.f32.mrf.mxu0
    %v441 = vadd.f32 %v156, %v440
    %442 = vmatprep.mubr.bf16.mxu0 0
    %443 = vmatmul.mubr.bf16.gmra.mxu0 %v203
    %v444 = vpop.f32.mrf.mxu0
    %v445 = vadd.f32 %v152, %v444
    %v446 = vpop.f32.mrf.mxu0
    %v447 = vadd.f32 %v156, %v446
    %v448 = vpop.f32.mrf.mxu0
    %v449 = vadd.f32 %v152, %v448
    %v450 = vpop.f32.mrf.mxu0
    %v451 = vadd.f32 %v156, %v450
    %452 = vdwg.mxu0
    %453 = vmatprep.subr.bf16.mxu0 0
    %454 = vmatpush1.bf16.msra.mxu0 %v315
    %455 = vmatprep.subr.bf16.mxu0 0
    %456 = vmatpush1.bf16.msra.mxu0 %v312
    %457 = vmatprep.subr.bf16.mxu0 0
    %458 = vmatpush1.bf16.msra.mxu0 %v309
    %459 = vmatprep.subr.bf16.mxu0 0
    %460 = vmatpush1.bf16.msra.mxu0 %v306
    %461 = vmatprep.subr.bf16.mxu0 0
    %462 = vmatpush1.bf16.msra.mxu0 %v303
    %463 = vmatprep.subr.bf16.mxu0 0
    %464 = vmatpush1.bf16.msra.mxu0 %v300
    %465 = vmatprep.subr.bf16.mxu0 0
    %466 = vmatpush1.bf16.msra.mxu0 %v297
    %467 = vmatprep.subr.bf16.mxu0 0
    %468 = vmatpush1.bf16.msra.mxu0 %v294
    %469 = vmatprep.subr.bf16.mxu0 0
    %470 = vmatpush2.bf16.msra.mxu0 0
    %471 = vmatprep.subr.bf16.mxu0 0
    %472 = vmatpush2.bf16.msra.mxu0 0
    %473 = vmatprep.subr.bf16.mxu0 0
    %474 = vmatpush2.bf16.msra.mxu0 0
    %475 = vmatprep.subr.bf16.mxu0 0
    %476 = vmatpush2.bf16.msra.mxu0 0
    %477 = vmatprep.subr.bf16.mxu0 0
    %478 = vmatpush2.bf16.msra.mxu0 0
    %479 = vmatprep.subr.bf16.mxu0 0
    %480 = vmatpush2.bf16.msra.mxu0 0
    %481 = vmatprep.subr.bf16.mxu0 0
    %482 = vmatpush2.bf16.msra.mxu0 0
    %483 = vmatprep.subr.bf16.mxu0 0
    %484 = vmatpush2.bf16.msra.mxu0 0
    %485 = vmatprep.mubr.bf16.mxu0 0
    %486 = vmatmul.mubr.bf16.gmra.mxu0 %v196
    %v487 = vpop.f32.mrf.mxu0
    %v488 = vadd.f32 %v160, %v487
    %v489 = vpop.f32.mrf.mxu0
    %v490 = vpop.f32.mrf.mxu0
    %v491 = vadd.f32 %v160, %v490
    %v492 = vpop.f32.mrf.mxu0
    %493 = vmatprep.mubr.bf16.mxu0 0
    %494 = vmatmul.mubr.bf16.gmra.mxu0 %v197
    %v495 = vpop.f32.mrf.mxu0
    %v496 = vadd.f32 %v160, %v495
    %v497 = vpop.f32.mrf.mxu0
    %v498 = vpop.f32.mrf.mxu0
    %v499 = vadd.f32 %v160, %v498
    %v500 = vpop.f32.mrf.mxu0
    %501 = vmatprep.mubr.bf16.mxu0 0
    %502 = vmatmul.mubr.bf16.gmra.mxu0 %v198
    %v503 = vpop.f32.mrf.mxu0
    %v504 = vadd.f32 %v160, %v503
    %v505 = vpop.f32.mrf.mxu0
    %v506 = vpop.f32.mrf.mxu0
    %v507 = vadd.f32 %v160, %v506
    %v508 = vpop.f32.mrf.mxu0
    %509 = vmatprep.mubr.bf16.mxu0 0
    %510 = vmatmul.mubr.bf16.gmra.mxu0 %v199
    %v511 = vpop.f32.mrf.mxu0
    %v512 = vadd.f32 %v160, %v511
    %v513 = vpop.f32.mrf.mxu0
    %v514 = vpop.f32.mrf.mxu0
    %v515 = vadd.f32 %v160, %v514
    %v516 = vpop.f32.mrf.mxu0
    %517 = vmatprep.mubr.bf16.mxu0 0
    %518 = vmatmul.mubr.bf16.gmra.mxu0 %v200
    %v519 = vpop.f32.mrf.mxu0
    %v520 = vadd.f32 %v160, %v519
    %v521 = vpop.f32.mrf.mxu0
    %v522 = vpop.f32.mrf.mxu0
    %v523 = vadd.f32 %v160, %v522
    %v524 = vpop.f32.mrf.mxu0
    %525 = vmatprep.mubr.bf16.mxu0 0
    %526 = vmatmul.mubr.bf16.gmra.mxu0 %v201
    %v527 = vpop.f32.mrf.mxu0
    %v528 = vadd.f32 %v160, %v527
    %v529 = vpop.f32.mrf.mxu0
    %v530 = vpop.f32.mrf.mxu0
    %v531 = vadd.f32 %v160, %v530
    %v532 = vpop.f32.mrf.mxu0
    %533 = vmatprep.mubr.bf16.mxu0 0
    %534 = vmatmul.mubr.bf16.gmra.mxu0 %v202
    %v535 = vpop.f32.mrf.mxu0
    %v536 = vadd.f32 %v160, %v535
    %v537 = vpop.f32.mrf.mxu0
    %v538 = vpop.f32.mrf.mxu0
    %v539 = vadd.f32 %v160, %v538
    %v540 = vpop.f32.mrf.mxu0
    %541 = vmatprep.mubr.bf16.mxu0 0
    %542 = vmatmul.mubr.bf16.gmra.mxu0 %v203
    %v543 = vpop.f32.mrf.mxu0
    %v544 = vadd.f32 %v160, %v543
    %v545 = vpop.f32.mrf.mxu0
    %v546 = vpop.f32.mrf.mxu0
    %v547 = vadd.f32 %v160, %v546
    %v548 = vpop.f32.mrf.mxu0
    %549 = vdwg.mxu0
    %v550 = vpack.c.bf16 %v379, %v375
    %v551 = vpack.c.bf16 %v381, %v377
    %v552 = vpack.c.bf16 %v491, %v488
    %v553 = vpack.c.bf16 %v389, %v385
    %v554 = vpack.c.bf16 %v391, %v387
    %v555 = vpack.c.bf16 %v499, %v496
    %v556 = vpack.c.bf16 %v399, %v395
    %v557 = vpack.c.bf16 %v401, %v397
    %v558 = vpack.c.bf16 %v507, %v504
    %v559 = vpack.c.bf16 %v409, %v405
    %v560 = vpack.c.bf16 %v411, %v407
    %v561 = vpack.c.bf16 %v515, %v512
    %v562 = vpack.c.bf16 %v419, %v415
    %v563 = vpack.c.bf16 %v421, %v417
    %v564 = vpack.c.bf16 %v523, %v520
    %v565 = vpack.c.bf16 %v429, %v425
    %v566 = vpack.c.bf16 %v431, %v427
    %v567 = vpack.c.bf16 %v531, %v528
    %v568 = vpack.c.bf16 %v439, %v435
    %v569 = vpack.c.bf16 %v441, %v437
    %v570 = vpack.c.bf16 %v539, %v536
    %v571 = vpack.c.bf16 %v449, %v445
    %v572 = vpack.c.bf16 %v451, %v447
    %v573 = vpack.c.bf16 %v547, %v544
    %v598 = vunpack.c.l.b16 %v550
    %v599 = vunpack.c.l.b16 %v551
    %v600 = vunpack.c.l.b16 %v552
    %v601 = vunpack.c.h.b16 %v550
    %v602 = vunpack.c.h.b16 %v551
    %v603 = vunpack.c.h.b16 %v552
    %v604 = vunpack.c.l.b16 %v553
    %v605 = vunpack.c.l.b16 %v554
    %v606 = vunpack.c.l.b16 %v555
    %v607 = vunpack.c.h.b16 %v553
    %v608 = vunpack.c.h.b16 %v554
    %v609 = vunpack.c.h.b16 %v555
    %v610 = vunpack.c.l.b16 %v556
    %v611 = vunpack.c.l.b16 %v557
    %v612 = vunpack.c.l.b16 %v558
    %v613 = vunpack.c.h.b16 %v556
    %v614 = vunpack.c.h.b16 %v557
    %v615 = vunpack.c.h.b16 %v558
    %v616 = vunpack.c.l.b16 %v559
    %v617 = vunpack.c.l.b16 %v560
    %v618 = vunpack.c.l.b16 %v561
    %v619 = vunpack.c.h.b16 %v559
    %v620 = vunpack.c.h.b16 %v560
    %v621 = vunpack.c.h.b16 %v561
    %v622 = vunpack.c.l.b16 %v562
    %v623 = vunpack.c.l.b16 %v563
    %v624 = vunpack.c.l.b16 %v564
    %v625 = vunpack.c.h.b16 %v562
    %v626 = vunpack.c.h.b16 %v563
    %v627 = vunpack.c.h.b16 %v564
    %v628 = vunpack.c.l.b16 %v565
    %v629 = vunpack.c.l.b16 %v566
    %v630 = vunpack.c.l.b16 %v567
    %v631 = vunpack.c.h.b16 %v565
    %v632 = vunpack.c.h.b16 %v566
    %v633 = vunpack.c.h.b16 %v567
    %v634 = vunpack.c.l.b16 %v568
    %v635 = vunpack.c.l.b16 %v569
    %v636 = vunpack.c.l.b16 %v570
    %v637 = vunpack.c.h.b16 %v568
    %v638 = vunpack.c.h.b16 %v569
    %v639 = vunpack.c.h.b16 %v570
    %v640 = vunpack.c.l.b16 %v571
    %v641 = vunpack.c.l.b16 %v572
    %v642 = vunpack.c.l.b16 %v573
    %v643 = vunpack.c.h.b16 %v571
    %v644 = vunpack.c.h.b16 %v572
    %v645 = vunpack.c.h.b16 %v573
    %v646 = vpack.c.b16 %v599, %v598
    %v647 = vpack.c.b16 %v600, %v600
    %v648 = vpack.c.b16 %v602, %v601
    %v649 = vpack.c.b16 %v603, %v603
    %v650 = vpack.c.b16 %v605, %v604
    %v651 = vpack.c.b16 %v606, %v606
    %v652 = vpack.c.b16 %v608, %v607
    %v653 = vpack.c.b16 %v609, %v609
    %v654 = vpack.c.b16 %v611, %v610
    %v655 = vpack.c.b16 %v612, %v612
    %v656 = vpack.c.b16 %v614, %v613
    %v657 = vpack.c.b16 %v615, %v615
    %v658 = vpack.c.b16 %v617, %v616
    %v659 = vpack.c.b16 %v618, %v618
    %v660 = vpack.c.b16 %v620, %v619
    %v661 = vpack.c.b16 %v621, %v621
    %v662 = vpack.c.b16 %v623, %v622
    %v663 = vpack.c.b16 %v624, %v624
    %v664 = vpack.c.b16 %v626, %v625
    %v665 = vpack.c.b16 %v627, %v627
    %v666 = vpack.c.b16 %v629, %v628
    %v667 = vpack.c.b16 %v630, %v630
    %v668 = vpack.c.b16 %v632, %v631
    %v669 = vpack.c.b16 %v633, %v633
    %v670 = vpack.c.b16 %v635, %v634
    %v671 = vpack.c.b16 %v636, %v636
    %v672 = vpack.c.b16 %v638, %v637
    %v673 = vpack.c.b16 %v639, %v639
    %v674 = vpack.c.b16 %v641, %v640
    %v675 = vpack.c.b16 %v642, %v642
    %v676 = vpack.c.b16 %v644, %v643
    %v677 = vpack.c.b16 %v645, %v645
    %710 = vst [vmem:[#allocation2] sm:$0xff] %v646
    %711 = vst [vmem:[#allocation2 + $0x8] sm:$0xf] %v647
    %712 = vst [vmem:[#allocation2 + $0xc] sm:$0xff] %v648
    %713 = vst [vmem:[#allocation2 + $0x14] sm:$0xf] %v649
    %714 = vst [vmem:[#allocation2 + $0x18] sm:$0xff] %v650
    %715 = vst [vmem:[#allocation2 + $0x20] sm:$0xf] %v651
    %716 = vst [vmem:[#allocation2 + $0x24] sm:$0xff] %v652
    %717 = vst [vmem:[#allocation2 + $0x2c] sm:$0xf] %v653
    %718 = vst [vmem:[#allocation2 + $0x30] sm:$0xff] %v654
    %719 = vst [vmem:[#allocation2 + $0x38] sm:$0xf] %v655
    %720 = vst [vmem:[#allocation2 + $0x3c] sm:$0xff] %v656
    %721 = vst [vmem:[#allocation2 + $0x44] sm:$0xf] %v657
    %722 = vst [vmem:[#allocation2 + $0x48] sm:$0xff] %v658
    %723 = vst [vmem:[#allocation2 + $0x50] sm:$0xf] %v659
    %724 = vst [vmem:[#allocation2 + $0x54] sm:$0xff] %v660
    %725 = vst [vmem:[#allocation2 + $0x5c] sm:$0xf] %v661
    %726 = vst [vmem:[#allocation2 + $0x60] sm:$0xff] %v662
    %727 = vst [vmem:[#allocation2 + $0x68] sm:$0xf] %v663
    %728 = vst [vmem:[#allocation2 + $0x6c] sm:$0xff] %v664
    %729 = vst [vmem:[#allocation2 + $0x74] sm:$0xf] %v665
    %730 = vst [vmem:[#allocation2 + $0x78] sm:$0xff] %v666
    %731 = vst [vmem:[#allocation2 + $0x80] sm:$0xf] %v667
    %732 = vst [vmem:[#allocation2 + $0x84] sm:$0xff] %v668
    %733 = vst [vmem:[#allocation2 + $0x8c] sm:$0xf] %v669
    %734 = vst [vmem:[#allocation2 + $0x90] sm:$0xff] %v670
    %735 = vst [vmem:[#allocation2 + $0x98] sm:$0xf] %v671
    %736 = vst [vmem:[#allocation2 + $0x9c] sm:$0xff] %v672
    %737 = vst [vmem:[#allocation2 + $0xa4] sm:$0xf] %v673
    %738 = vst [vmem:[#allocation2 + $0xa8] sm:$0xff] %v674
    %739 = vst [vmem:[#allocation2 + $0xb0] sm:$0xf] %v675
    %740 = vst [vmem:[#allocation2 + $0xb4] sm:$0xff] %v676
    %741 = vst [vmem:[#allocation2 + $0xbc] sm:$0xf] %v677
    %v742 = vld [vmem:[#allocation11] sm:$0xff]
    %v743 = vld [vmem:[#allocation11 + $0x8] sm:$0xf]
    %v744 = vld [vmem:[#allocation11 + $0xc] sm:$0xff]
    %v745 = vld [vmem:[#allocation11 + $0x14] sm:$0xf]
    %v746 = vld [vmem:[#allocation11 + $0x18] sm:$0xff]
    %v747 = vld [vmem:[#allocation11 + $0x20] sm:$0xf]
    %v748 = vld [vmem:[#allocation11 + $0x24] sm:$0xff]
    %v749 = vld [vmem:[#allocation11 + $0x2c] sm:$0xf]
    %v750 = vld [vmem:[#allocation11 + $0x30] sm:$0xff]
    %v751 = vld [vmem:[#allocation11 + $0x38] sm:$0xf]
    %v752 = vld [vmem:[#allocation11 + $0x3c] sm:$0xff]
    %v753 = vld [vmem:[#allocation11 + $0x44] sm:$0xf]
    %v754 = vld [vmem:[#allocation11 + $0x48] sm:$0xff]
    %v755 = vld [vmem:[#allocation11 + $0x50] sm:$0xf]
    %v756 = vld [vmem:[#allocation11 + $0x54] sm:$0xff]
    %v757 = vld [vmem:[#allocation11 + $0x5c] sm:$0xf]
    %v758 = vld [vmem:[#allocation11 + $0x60] sm:$0xff]
    %v759 = vld [vmem:[#allocation11 + $0x68] sm:$0xf]
    %v760 = vld [vmem:[#allocation11 + $0x6c] sm:$0xff]
    %v761 = vld [vmem:[#allocation11 + $0x74] sm:$0xf]
    %v762 = vld [vmem:[#allocation11 + $0x78] sm:$0xff]
    %v763 = vld [vmem:[#allocation11 + $0x80] sm:$0xf]
    %v764 = vld [vmem:[#allocation11 + $0x84] sm:$0xff]
    %v765 = vld [vmem:[#allocation11 + $0x8c] sm:$0xf]
    %v766 = vld [vmem:[#allocation11 + $0x90] sm:$0xff]
    %v767 = vld [vmem:[#allocation11 + $0x98] sm:$0xf]
    %v768 = vld [vmem:[#allocation11 + $0x9c] sm:$0xff]
    %v769 = vld [vmem:[#allocation11 + $0xa4] sm:$0xf]
    %v770 = vld [vmem:[#allocation11 + $0xa8] sm:$0xff]
    %v771 = vld [vmem:[#allocation11 + $0xb0] sm:$0xf]
    %v772 = vld [vmem:[#allocation11 + $0xb4] sm:$0xff]
    %v773 = vld [vmem:[#allocation11 + $0xbc] sm:$0xf]
    %v774 = vld [vmem:[%s5] sm:$0x1]
    %v776 = vlaneseq
    %v777 = vshrl.u32 %v776, 7
    %v778 = vsub.s32 0, %v777
    %v779 = vrot.slane %v774, %v778
    %781 = vst [vmem:[#allocation4] sm:$0xff] 0.0
    %782 = vst [vmem:[#allocation4 + $0x8] sm:$0xff] 0.0
    %v783 = vld [vmem:[#allocation4] sm:$0xff]
    %v784 = vld [vmem:[#allocation4 + $0x8] sm:$0xff]
    %v785 = vpack.c.bf16 %v784, %v783
    %v818 = vunpack.c.l.b16 %v742
    %v819 = vunpack.c.h.b16 %v742
    %v820 = vunpack.c.l.b16 %v743
    %v821 = vunpack.c.l.b16 %v744
    %v822 = vunpack.c.h.b16 %v744
    %v823 = vunpack.c.l.b16 %v745
    %v824 = vunpack.c.l.b16 %v746
    %v825 = vunpack.c.h.b16 %v746
    %v826 = vunpack.c.l.b16 %v747
    %v827 = vunpack.c.l.b16 %v748
    %v828 = vunpack.c.h.b16 %v748
    %v829 = vunpack.c.l.b16 %v749
    %v830 = vunpack.c.l.b16 %v750
    %v831 = vunpack.c.h.b16 %v750
    %v832 = vunpack.c.l.b16 %v751
    %v833 = vunpack.c.l.b16 %v752
    %v834 = vunpack.c.h.b16 %v752
    %v835 = vunpack.c.l.b16 %v753
    %v836 = vunpack.c.l.b16 %v754
    %v837 = vunpack.c.h.b16 %v754
    %v838 = vunpack.c.l.b16 %v755
    %v839 = vunpack.c.l.b16 %v756
    %v840 = vunpack.c.h.b16 %v756
    %v841 = vunpack.c.l.b16 %v757
    %v842 = vunpack.c.l.b16 %v758
    %v843 = vunpack.c.h.b16 %v758
    %v844 = vunpack.c.l.b16 %v759
    %v845 = vunpack.c.l.b16 %v760
    %v846 = vunpack.c.h.b16 %v760
    %v847 = vunpack.c.l.b16 %v761
    %v848 = vunpack.c.l.b16 %v762
    %v849 = vunpack.c.h.b16 %v762
    %v850 = vunpack.c.l.b16 %v763
    %v851 = vunpack.c.l.b16 %v764
    %v852 = vunpack.c.h.b16 %v764
    %v853 = vunpack.c.l.b16 %v765
    %v854 = vunpack.c.l.b16 %v766
    %v855 = vunpack.c.h.b16 %v766
    %v856 = vunpack.c.l.b16 %v767
    %v857 = vunpack.c.l.b16 %v768
    %v858 = vunpack.c.h.b16 %v768
    %v859 = vunpack.c.l.b16 %v769
    %v860 = vunpack.c.l.b16 %v770
    %v861 = vunpack.c.h.b16 %v770
    %v862 = vunpack.c.l.b16 %v771
    %v863 = vunpack.c.l.b16 %v772
    %v864 = vunpack.c.h.b16 %v772
    %v865 = vunpack.c.l.b16 %v773
    %v866 = vpack.c.b16 %v821, %v818
    %v867 = vpack.c.b16 %v822, %v819
    %v868 = vpack.c.b16 %v823, %v820
    %v869 = vpack.c.b16 %v827, %v824
    %v870 = vpack.c.b16 %v828, %v825
    %v871 = vpack.c.b16 %v829, %v826
    %v872 = vpack.c.b16 %v833, %v830
    %v873 = vpack.c.b16 %v834, %v831
    %v874 = vpack.c.b16 %v835, %v832
    %v875 = vpack.c.b16 %v839, %v836
    %v876 = vpack.c.b16 %v840, %v837
    %v877 = vpack.c.b16 %v841, %v838
    %v878 = vpack.c.b16 %v845, %v842
    %v879 = vpack.c.b16 %v846, %v843
    %v880 = vpack.c.b16 %v847, %v844
    %v881 = vpack.c.b16 %v851, %v848
    %v882 = vpack.c.b16 %v852, %v849
    %v883 = vpack.c.b16 %v853, %v850
    %v884 = vpack.c.b16 %v857, %v854
    %v885 = vpack.c.b16 %v858, %v855
    %v886 = vpack.c.b16 %v859, %v856
    %v887 = vpack.c.b16 %v863, %v860
    %v888 = vpack.c.b16 %v864, %v861
    %v889 = vpack.c.b16 %v865, %v862
    %914 = vmatprep.subr.bf16.mxu0 %v888
    %915 = vmatpush1.bf16.msra.mxu0 %v887
    %916 = vmatprep.subr.bf16.mxu0 %v885
    %917 = vmatpush1.bf16.msra.mxu0 %v884
    %918 = vmatprep.subr.bf16.mxu0 %v882
    %919 = vmatpush1.bf16.msra.mxu0 %v881
    %920 = vmatprep.subr.bf16.mxu0 %v879
    %921 = vmatpush1.bf16.msra.mxu0 %v878
    %922 = vmatprep.subr.bf16.mxu0 %v876
    %923 = vmatpush1.bf16.msra.mxu0 %v875
    %924 = vmatprep.subr.bf16.mxu0 %v873
    %925 = vmatpush1.bf16.msra.mxu0 %v872
    %926 = vmatprep.subr.bf16.mxu0 %v870
    %927 = vmatpush1.bf16.msra.mxu0 %v869
    %928 = vmatprep.subr.bf16.mxu0 %v867
    %929 = vmatpush1.bf16.msra.mxu0 %v866
    %930 = vmatprep.subr.bf16.mxu0 0
    %931 = vmatpush2.bf16.msra.mxu0 0
    %932 = vmatprep.subr.bf16.mxu0 0
    %933 = vmatpush2.bf16.msra.mxu0 0
    %934 = vmatprep.subr.bf16.mxu0 0
    %935 = vmatpush2.bf16.msra.mxu0 0
    %936 = vmatprep.subr.bf16.mxu0 0
    %937 = vmatpush2.bf16.msra.mxu0 0
    %938 = vmatprep.subr.bf16.mxu0 0
    %939 = vmatpush2.bf16.msra.mxu0 0
    %940 = vmatprep.subr.bf16.mxu0 0
    %941 = vmatpush2.bf16.msra.mxu0 0
    %942 = vmatprep.subr.bf16.mxu0 0
    %943 = vmatpush2.bf16.msra.mxu0 0
    %944 = vmatprep.subr.bf16.mxu0 0
    %945 = vmatpush2.bf16.msra.mxu0 0
    %946 = vmatprep.mubr.bf16.mxu0 0
    %947 = vmatmul.mubr.bf16.gmra.mxu0 %v785
    %v948 = vpop.f32.mrf.mxu0
    %v949 = vadd.f32 0.0, %v948
    %v950 = vpop.f32.mrf.mxu0
    %v951 = vadd.f32 0.0, %v950
    %v952 = vpop.f32.mrf.mxu0
    %v953 = vadd.f32 0.0, %v952
    %v954 = vpop.f32.mrf.mxu0
    %v955 = vadd.f32 0.0, %v954
    %956 = vdwg.mxu0
    %957 = vmatprep.subr.bf16.mxu0 0
    %958 = vmatpush1.bf16.msra.mxu0 %v889
    %959 = vmatprep.subr.bf16.mxu0 0
    %960 = vmatpush1.bf16.msra.mxu0 %v886
    %961 = vmatprep.subr.bf16.mxu0 0
    %962 = vmatpush1.bf16.msra.mxu0 %v883
    %963 = vmatprep.subr.bf16.mxu0 0
    %964 = vmatpush1.bf16.msra.mxu0 %v880
    %965 = vmatprep.subr.bf16.mxu0 0
    %966 = vmatpush1.bf16.msra.mxu0 %v877
    %967 = vmatprep.subr.bf16.mxu0 0
    %968 = vmatpush1.bf16.msra.mxu0 %v874
    %969 = vmatprep.subr.bf16.mxu0 0
    %970 = vmatpush1.bf16.msra.mxu0 %v871
    %971 = vmatprep.subr.bf16.mxu0 0
    %972 = vmatpush1.bf16.msra.mxu0 %v868
    %973 = vmatprep.subr.bf16.mxu0 0
    %974 = vmatpush2.bf16.msra.mxu0 0
    %975 = vmatprep.subr.bf16.mxu0 0
    %976 = vmatpush2.bf16.msra.mxu0 0
    %977 = vmatprep.subr.bf16.mxu0 0
    %978 = vmatpush2.bf16.msra.mxu0 0
    %979 = vmatprep.subr.bf16.mxu0 0
    %980 = vmatpush2.bf16.msra.mxu0 0
    %981 = vmatprep.subr.bf16.mxu0 0
    %982 = vmatpush2.bf16.msra.mxu0 0
    %983 = vmatprep.subr.bf16.mxu0 0
    %984 = vmatpush2.bf16.msra.mxu0 0
    %985 = vmatprep.subr.bf16.mxu0 0
    %986 = vmatpush2.bf16.msra.mxu0 0
    %987 = vmatprep.subr.bf16.mxu0 0
    %988 = vmatpush2.bf16.msra.mxu0 0
    %989 = vmatprep.mubr.bf16.mxu0 0
    %990 = vmatmul.mubr.bf16.gmra.mxu0 %v785
    %v991 = vpop.f32.mrf.mxu0
    %v992 = vadd.f32 0.0, %v991
    %v993 = vpop.f32.mrf.mxu0
    %v994 = vpop.f32.mrf.mxu0
    %v995 = vadd.f32 0.0, %v994
    %v996 = vpop.f32.mrf.mxu0
    %997 = vdwg.mxu0
    %v998 = vld [vmem:[#allocation2] sm:$0xff]
    %v999 = vld [vmem:[#allocation2 + $0x8] sm:$0xf]
    %v1000 = vld [vmem:[#allocation2 + $0xc] sm:$0xff]
    %v1001 = vld [vmem:[#allocation2 + $0x14] sm:$0xf]
    %v1002 = vunpack.c.l.bf16 %v998
    %v1003 = vunpack.c.h.bf16 %v998
    %v1004 = vunpack.c.l.bf16 %v999
    %v1005 = vunpack.c.l.bf16 %v1000
    %v1006 = vunpack.c.h.bf16 %v1000
    %v1007 = vunpack.c.l.bf16 %v1001
    %v1008 = vadd.f32 %v1002, %v949
    %v1009 = vadd.f32 %v1003, %v951
    %v1010 = vadd.f32 %v1005, %v953
    %v1011 = vadd.f32 %v1006, %v955
    %v1012 = vxor.u32 %v1008, 2147483648
    %v1013 = vxor.u32 %v1009, 2147483648
    %v1014 = vxor.u32 %v1010, 2147483648
    %v1015 = vxor.u32 %v1011, 2147483648
    %v1016 = vmul.f32 %v1012, 1.442695
    %v1017 = vpow.pop %v1016
    %v1018 = vmul.f32 %v1013, 1.442695
    %v1019 = vpow.pop %v1018
    %v1020 = vmul.f32 %v1014, 1.442695
    %v1021 = vpow.pop %v1020
    %v1022 = vmul.f32 %v1015, 1.442695
    %v1023 = vpow.pop %v1022
    %v1024 = vadd.f32 %v1017, 1.0
    %v1025 = vadd.f32 %v1019, 1.0
    %v1026 = vadd.f32 %v1021, 1.0
    %v1027 = vadd.f32 %v1023, 1.0
    %v1028 = vrcp.pop %v1024
    %v1029 = vmul.f32 1.0, %v1028
    %v1030 = vrcp.pop %v1025
    %v1031 = vmul.f32 1.0, %v1030
    %v1032 = vrcp.pop %v1026
    %v1033 = vmul.f32 1.0, %v1032
    %v1034 = vrcp.pop %v1027
    %v1035 = vmul.f32 1.0, %v1034
    %v1036 = vadd.f32 %v992, %v779
    %v1037 = vadd.f32 %v995, %v779
    %v1038 = vmul.f32 %v1029, %v1036
    %v1039 = vmul.f32 %v1033, %v1037
    %v1040 = vadd.f32 %v1004, %v1038
    %v1041 = vadd.f32 %v1007, %v1039
    %v1042 = vtanh.pop %v1040
    %v1043 = vtanh.pop %v1041
    %v1044 = vsub.f32 1.0, %v1031
    %v1045 = vsub.f32 1.0, %v1035
    %v1046 = vmul.f32 %v1044, %v1042
    %v1047 = vmul.f32 %v1045, %v1043
    %v1048 = vmul.f32 %v1031, %v783
    %v1049 = vmul.f32 %v1035, %v784
    %v1050 = vadd.f32 %v1046, %v1048
    %v1051 = vadd.f32 %v1047, %v1049
    %1052 = vst [vmem:[#allocation4] sm:$0xff] %v1050
    %1053 = vst [vmem:[#allocation4 + $0x8] sm:$0xff] %v1051
    %v1054 = vpack.c.bf16 %v1051, %v1050
    %v1056 = vunpack.c.l.b16 %v1054
    %v1057 = vunpack.c.h.b16 %v1054
    %v1058 = vpack.c.b16 %v1056, %v1056
    %v1059 = vpack.c.b16 %v1057, %v1057
    %1062 = vst [vmem:[#allocation3] sm:$0xf] %v1058
    %1063 = vst [vmem:[#allocation3 + $0x4] sm:$0xf] %v1059
    %v1064 = vld [vmem:[#allocation4] sm:$0xff]
    %v1065 = vld [vmem:[#allocation4 + $0x8] sm:$0xff]
    %v1066 = vpack.c.bf16 %v1065, %v1064
    %1067 = vmatprep.subr.bf16.mxu0 %v888
    %1068 = vmatpush1.bf16.msra.mxu0 %v887
    %1069 = vmatprep.subr.bf16.mxu0 %v885
    %1070 = vmatpush1.bf16.msra.mxu0 %v884
    %1071 = vmatprep.subr.bf16.mxu0 %v882
    %1072 = vmatpush1.bf16.msra.mxu0 %v881
    %1073 = vmatprep.subr.bf16.mxu0 %v879
    %1074 = vmatpush1.bf16.msra.mxu0 %v878
    %1075 = vmatprep.subr.bf16.mxu0 %v876
    %1076 = vmatpush1.bf16.msra.mxu0 %v875
    %1077 = vmatprep.subr.bf16.mxu0 %v873
    %1078 = vmatpush1.bf16.msra.mxu0 %v872
    %1079 = vmatprep.subr.bf16.mxu0 %v870
    %1080 = vmatpush1.bf16.msra.mxu0 %v869
    %1081 = vmatprep.subr.bf16.mxu0 %v867
    %1082 = vmatpush1.bf16.msra.mxu0 %v866
    %1083 = vmatprep.subr.bf16.mxu0 0
    %1084 = vmatpush2.bf16.msra.mxu0 0
    %1085 = vmatprep.subr.bf16.mxu0 0
    %1086 = vmatpush2.bf16.msra.mxu0 0
    %1087 = vmatprep.subr.bf16.mxu0 0
    %1088 = vmatpush2.bf16.msra.mxu0 0
    %1089 = vmatprep.subr.bf16.mxu0 0
    %1090 = vmatpush2.bf16.msra.mxu0 0
    %1091 = vmatprep.subr.bf16.mxu0 0
    %1092 = vmatpush2.bf16.msra.mxu0 0
    %1093 = vmatprep.subr.bf16.mxu0 0
    %1094 = vmatpush2.bf16.msra.mxu0 0
    %1095 = vmatprep.subr.bf16.mxu0 0
    %1096 = vmatpush2.bf16.msra.mxu0 0
    %1097 = vmatprep.subr.bf16.mxu0 0
    %1098 = vmatpush2.bf16.msra.mxu0 0
    %1099 = vmatprep.mubr.bf16.mxu0 0
    %1100 = vmatmul.mubr.bf16.gmra.mxu0 %v1066
    %v1101 = vpop.f32.mrf.mxu0
    %v1102 = vadd.f32 0.0, %v1101
    %v1103 = vpop.f32.mrf.mxu0
    %v1104 = vadd.f32 0.0, %v1103
    %v1105 = vpop.f32.mrf.mxu0
    %v1106 = vadd.f32 0.0, %v1105
    %v1107 = vpop.f32.mrf.mxu0
    %v1108 = vadd.f32 0.0, %v1107
    %1109 = vdwg.mxu0
    %1110 = vmatprep.subr.bf16.mxu0 0
    %1111 = vmatpush1.bf16.msra.mxu0 %v889
    %1112 = vmatprep.subr.bf16.mxu0 0
    %1113 = vmatpush1.bf16.msra.mxu0 %v886
    %1114 = vmatprep.subr.bf16.mxu0 0
    %1115 = vmatpush1.bf16.msra.mxu0 %v883
    %1116 = vmatprep.subr.bf16.mxu0 0
    %1117 = vmatpush1.bf16.msra.mxu0 %v880
    %1118 = vmatprep.subr.bf16.mxu0 0
    %1119 = vmatpush1.bf16.msra.mxu0 %v877
    %1120 = vmatprep.subr.bf16.mxu0 0
    %1121 = vmatpush1.bf16.msra.mxu0 %v874
    %1122 = vmatprep.subr.bf16.mxu0 0
    %1123 = vmatpush1.bf16.msra.mxu0 %v871
    %1124 = vmatprep.subr.bf16.mxu0 0
    %1125 = vmatpush1.bf16.msra.mxu0 %v868
    %1126 = vmatprep.subr.bf16.mxu0 0
    %1127 = vmatpush2.bf16.msra.mxu0 0
    %1128 = vmatprep.subr.bf16.mxu0 0
    %1129 = vmatpush2.bf16.msra.mxu0 0
    %1130 = vmatprep.subr.bf16.mxu0 0
    %1131 = vmatpush2.bf16.msra.mxu0 0
    %1132 = vmatprep.subr.bf16.mxu0 0
    %1133 = vmatpush2.bf16.msra.mxu0 0
    %1134 = vmatprep.subr.bf16.mxu0 0
    %1135 = vmatpush2.bf16.msra.mxu0 0
    %1136 = vmatprep.subr.bf16.mxu0 0
    %1137 = vmatpush2.bf16.msra.mxu0 0
    %1138 = vmatprep.subr.bf16.mxu0 0
    %1139 = vmatpush2.bf16.msra.mxu0 0
    %1140 = vmatprep.subr.bf16.mxu0 0
    %1141 = vmatpush2.bf16.msra.mxu0 0
    %1142 = vmatprep.mubr.bf16.mxu0 0
    %1143 = vmatmul.mubr.bf16.gmra.mxu0 %v1066
    %v1144 = vpop.f32.mrf.mxu0
    %v1145 = vadd.f32 0.0, %v1144
    %v1146 = vpop.f32.mrf.mxu0
    %v1147 = vpop.f32.mrf.mxu0
    %v1148 = vadd.f32 0.0, %v1147
    %v1149 = vpop.f32.mrf.mxu0
    %1150 = vdwg.mxu0
    %s1151 = scalar_lea.vmem [#allocation2], 24
    %v1152 = vld [vmem:[%s1151] sm:$0xff]
    %v1153 = vld [vmem:[%s1151 + $0x8] sm:$0xf]
    %v1154 = vld [vmem:[%s1151 + $0xc] sm:$0xff]
    %v1155 = vld [vmem:[%s1151 + $0x14] sm:$0xf]
    %v1156 = vunpack.c.l.bf16 %v1152
    %v1157 = vunpack.c.h.bf16 %v1152
    %v1158 = vunpack.c.l.bf16 %v1153
    %v1159 = vunpack.c.l.bf16 %v1154
    %v1160 = vunpack.c.h.bf16 %v1154
    %v1161 = vunpack.c.l.bf16 %v1155
    %v1162 = vadd.f32 %v1156, %v1102
    %v1163 = vadd.f32 %v1157, %v1104
    %v1164 = vadd.f32 %v1159, %v1106
    %v1165 = vadd.f32 %v1160, %v1108
    %v1166 = vxor.u32 %v1162, 2147483648
    %v1167 = vxor.u32 %v1163, 2147483648
    %v1168 = vxor.u32 %v1164, 2147483648
    %v1169 = vxor.u32 %v1165, 2147483648
    %v1170 = vmul.f32 %v1166, 1.442695
    %v1171 = vpow.pop %v1170
    %v1172 = vmul.f32 %v1167, 1.442695
    %v1173 = vpow.pop %v1172
    %v1174 = vmul.f32 %v1168, 1.442695
    %v1175 = vpow.pop %v1174
    %v1176 = vmul.f32 %v1169, 1.442695
    %v1177 = vpow.pop %v1176
    %v1178 = vadd.f32 %v1171, 1.0
    %v1179 = vadd.f32 %v1173, 1.0
    %v1180 = vadd.f32 %v1175, 1.0
    %v1181 = vadd.f32 %v1177, 1.0
    %v1182 = vrcp.pop %v1178
    %v1183 = vmul.f32 1.0, %v1182
    %v1184 = vrcp.pop %v1179
    %v1185 = vmul.f32 1.0, %v1184
    %v1186 = vrcp.pop %v1180
    %v1187 = vmul.f32 1.0, %v1186
    %v1188 = vrcp.pop %v1181
    %v1189 = vmul.f32 1.0, %v1188
    %v1190 = vadd.f32 %v1145, %v779
    %v1191 = vadd.f32 %v1148, %v779
    %v1192 = vmul.f32 %v1183, %v1190
    %v1193 = vmul.f32 %v1187, %v1191
    %v1194 = vadd.f32 %v1158, %v1192
    %v1195 = vadd.f32 %v1161, %v1193
    %v1196 = vtanh.pop %v1194
    %v1197 = vtanh.pop %v1195
    %v1198 = vsub.f32 1.0, %v1185
    %v1199 = vsub.f32 1.0, %v1189
    %v1200 = vmul.f32 %v1198, %v1196
    %v1201 = vmul.f32 %v1199, %v1197
    %v1202 = vmul.f32 %v1185, %v1064
    %v1203 = vmul.f32 %v1189, %v1065
    %v1204 = vadd.f32 %v1200, %v1202
    %v1205 = vadd.f32 %v1201, %v1203
    %1206 = vst [vmem:[#allocation4] sm:$0xff] %v1204
    %1207 = vst [vmem:[#allocation4 + $0x8] sm:$0xff] %v1205
    %v1208 = vpack.c.bf16 %v1205, %v1204
    %v1210 = vunpack.c.l.b16 %v1208
    %v1211 = vunpack.c.h.b16 %v1208
    %v1212 = vpack.c.b16 %v1210, %v1210
    %v1213 = vpack.c.b16 %v1211, %v1211
    %s1216 = scalar_lea.vmem [#allocation3], 8
    %1217 = vst [vmem:[%s1216] sm:$0xf] %v1212
    %1218 = vst [vmem:[%s1216 + $0x4] sm:$0xf] %v1213
    %v1219 = vld [vmem:[#allocation4] sm:$0xff]
    %v1220 = vld [vmem:[#allocation4 + $0x8] sm:$0xff]
    %v1221 = vpack.c.bf16 %v1220, %v1219
    %1222 = vmatprep.subr.bf16.mxu0 %v888
    %1223 = vmatpush1.bf16.msra.mxu0 %v887
    %1224 = vmatprep.subr.bf16.mxu0 %v885
    %1225 = vmatpush1.bf16.msra.mxu0 %v884
    %1226 = vmatprep.subr.bf16.mxu0 %v882
    %1227 = vmatpush1.bf16.msra.mxu0 %v881
    %1228 = vmatprep.subr.bf16.mxu0 %v879
    %1229 = vmatpush1.bf16.msra.mxu0 %v878
    %1230 = vmatprep.subr.bf16.mxu0 %v876
    %1231 = vmatpush1.bf16.msra.mxu0 %v875
    %1232 = vmatprep.subr.bf16.mxu0 %v873
    %1233 = vmatpush1.bf16.msra.mxu0 %v872
    %1234 = vmatprep.subr.bf16.mxu0 %v870
    %1235 = vmatpush1.bf16.msra.mxu0 %v869
    %1236 = vmatprep.subr.bf16.mxu0 %v867
    %1237 = vmatpush1.bf16.msra.mxu0 %v866
    %1238 = vmatprep.subr.bf16.mxu0 0
    %1239 = vmatpush2.bf16.msra.mxu0 0
    %1240 = vmatprep.subr.bf16.mxu0 0
    %1241 = vmatpush2.bf16.msra.mxu0 0
    %1242 = vmatprep.subr.bf16.mxu0 0
    %1243 = vmatpush2.bf16.msra.mxu0 0
    %1244 = vmatprep.subr.bf16.mxu0 0
    %1245 = vmatpush2.bf16.msra.mxu0 0
    %1246 = vmatprep.subr.bf16.mxu0 0
    %1247 = vmatpush2.bf16.msra.mxu0 0
    %1248 = vmatprep.subr.bf16.mxu0 0
    %1249 = vmatpush2.bf16.msra.mxu0 0
    %1250 = vmatprep.subr.bf16.mxu0 0
    %1251 = vmatpush2.bf16.msra.mxu0 0
    %1252 = vmatprep.subr.bf16.mxu0 0
    %1253 = vmatpush2.bf16.msra.mxu0 0
    %1254 = vmatprep.mubr.bf16.mxu0 0
    %1255 = vmatmul.mubr.bf16.gmra.mxu0 %v1221
    %v1256 = vpop.f32.mrf.mxu0
    %v1257 = vadd.f32 0.0, %v1256
    %v1258 = vpop.f32.mrf.mxu0
    %v1259 = vadd.f32 0.0, %v1258
    %v1260 = vpop.f32.mrf.mxu0
    %v1261 = vadd.f32 0.0, %v1260
    %v1262 = vpop.f32.mrf.mxu0
    %v1263 = vadd.f32 0.0, %v1262
    %1264 = vdwg.mxu0
    %1265 = vmatprep.subr.bf16.mxu0 0
    %1266 = vmatpush1.bf16.msra.mxu0 %v889
    %1267 = vmatprep.subr.bf16.mxu0 0
    %1268 = vmatpush1.bf16.msra.mxu0 %v886
    %1269 = vmatprep.subr.bf16.mxu0 0
    %1270 = vmatpush1.bf16.msra.mxu0 %v883
    %1271 = vmatprep.subr.bf16.mxu0 0
    %1272 = vmatpush1.bf16.msra.mxu0 %v880
    %1273 = vmatprep.subr.bf16.mxu0 0
    %1274 = vmatpush1.bf16.msra.mxu0 %v877
    %1275 = vmatprep.subr.bf16.mxu0 0
    %1276 = vmatpush1.bf16.msra.mxu0 %v874
    %1277 = vmatprep.subr.bf16.mxu0 0
    %1278 = vmatpush1.bf16.msra.mxu0 %v871
    %1279 = vmatprep.subr.bf16.mxu0 0
    %1280 = vmatpush1.bf16.msra.mxu0 %v868
    %1281 = vmatprep.subr.bf16.mxu0 0
    %1282 = vmatpush2.bf16.msra.mxu0 0
    %1283 = vmatprep.subr.bf16.mxu0 0
    %1284 = vmatpush2.bf16.msra.mxu0 0
    %1285 = vmatprep.subr.bf16.mxu0 0
    %1286 = vmatpush2.bf16.msra.mxu0 0
    %1287 = vmatprep.subr.bf16.mxu0 0
    %1288 = vmatpush2.bf16.msra.mxu0 0
    %1289 = vmatprep.subr.bf16.mxu0 0
    %1290 = vmatpush2.bf16.msra.mxu0 0
    %1291 = vmatprep.subr.bf16.mxu0 0
    %1292 = vmatpush2.bf16.msra.mxu0 0
    %1293 = vmatprep.subr.bf16.mxu0 0
    %1294 = vmatpush2.bf16.msra.mxu0 0
    %1295 = vmatprep.subr.bf16.mxu0 0
    %1296 = vmatpush2.bf16.msra.mxu0 0
    %1297 = vmatprep.mubr.bf16.mxu0 0
    %1298 = vmatmul.mubr.bf16.gmra.mxu0 %v1221
    %v1299 = vpop.f32.mrf.mxu0
    %v1300 = vadd.f32 0.0, %v1299
    %v1301 = vpop.f32.mrf.mxu0
    %v1302 = vpop.f32.mrf.mxu0
    %v1303 = vadd.f32 0.0, %v1302
    %v1304 = vpop.f32.mrf.mxu0
    %1305 = vdwg.mxu0
    %s1306 = scalar_lea.vmem [#allocation2], 48
    %v1307 = vld [vmem:[%s1306] sm:$0xff]
    %v1308 = vld [vmem:[%s1306 + $0x8] sm:$0xf]
    %v1309 = vld [vmem:[%s1306 + $0xc] sm:$0xff]
    %v1310 = vld [vmem:[%s1306 + $0x14] sm:$0xf]
    %v1311 = vunpack.c.l.bf16 %v1307
    %v1312 = vunpack.c.h.bf16 %v1307
    %v1313 = vunpack.c.l.bf16 %v1308
    %v1314 = vunpack.c.l.bf16 %v1309
    %v1315 = vunpack.c.h.bf16 %v1309
    %v1316 = vunpack.c.l.bf16 %v1310
    %v1317 = vadd.f32 %v1311, %v1257
    %v1318 = vadd.f32 %v1312, %v1259
    %v1319 = vadd.f32 %v1314, %v1261
    %v1320 = vadd.f32 %v1315, %v1263
    %v1321 = vxor.u32 %v1317, 2147483648
    %v1322 = vxor.u32 %v1318, 2147483648
    %v1323 = vxor.u32 %v1319, 2147483648
    %v1324 = vxor.u32 %v1320, 2147483648
    %v1325 = vmul.f32 %v1321, 1.442695
    %v1326 = vpow.pop %v1325
    %v1327 = vmul.f32 %v1322, 1.442695
    %v1328 = vpow.pop %v1327
    %v1329 = vmul.f32 %v1323, 1.442695
    %v1330 = vpow.pop %v1329
    %v1331 = vmul.f32 %v1324, 1.442695
    %v1332 = vpow.pop %v1331
    %v1333 = vadd.f32 %v1326, 1.0
    %v1334 = vadd.f32 %v1328, 1.0
    %v1335 = vadd.f32 %v1330, 1.0
    %v1336 = vadd.f32 %v1332, 1.0
    %v1337 = vrcp.pop %v1333
    %v1338 = vmul.f32 1.0, %v1337
    %v1339 = vrcp.pop %v1334
    %v1340 = vmul.f32 1.0, %v1339
    %v1341 = vrcp.pop %v1335
    %v1342 = vmul.f32 1.0, %v1341
    %v1343 = vrcp.pop %v1336
    %v1344 = vmul.f32 1.0, %v1343
    %v1345 = vadd.f32 %v1300, %v779
    %v1346 = vadd.f32 %v1303, %v779
    %v1347 = vmul.f32 %v1338, %v1345
    %v1348 = vmul.f32 %v1342, %v1346
    %v1349 = vadd.f32 %v1313, %v1347
    %v1350 = vadd.f32 %v1316, %v1348
    %v1351 = vtanh.pop %v1349
    %v1352 = vtanh.pop %v1350
    %v1353 = vsub.f32 1.0, %v1340
    %v1354 = vsub.f32 1.0, %v1344
    %v1355 = vmul.f32 %v1353, %v1351
    %v1356 = vmul.f32 %v1354, %v1352
    %v1357 = vmul.f32 %v1340, %v1219
    %v1358 = vmul.f32 %v1344, %v1220
    %v1359 = vadd.f32 %v1355, %v1357
    %v1360 = vadd.f32 %v1356, %v1358
    %1361 = vst [vmem:[#allocation4] sm:$0xff] %v1359
    %1362 = vst [vmem:[#allocation4 + $0x8] sm:$0xff] %v1360
    %v1363 = vpack.c.bf16 %v1360, %v1359
    %v1365 = vunpack.c.l.b16 %v1363
    %v1366 = vunpack.c.h.b16 %v1363
    %v1367 = vpack.c.b16 %v1365, %v1365
    %v1368 = vpack.c.b16 %v1366, %v1366
    %s1371 = scalar_lea.vmem [#allocation3], 16
    %1372 = vst [vmem:[%s1371] sm:$0xf] %v1367
    %1373 = vst [vmem:[%s1371 + $0x4] sm:$0xf] %v1368
    %v1374 = vld [vmem:[#allocation4] sm:$0xff]
    %v1375 = vld [vmem:[#allocation4 + $0x8] sm:$0xff]
    %v1376 = vpack.c.bf16 %v1375, %v1374
    %1377 = vmatprep.subr.bf16.mxu0 %v888
    %1378 = vmatpush1.bf16.msra.mxu0 %v887
    %1379 = vmatprep.subr.bf16.mxu0 %v885
    %1380 = vmatpush1.bf16.msra.mxu0 %v884
    %1381 = vmatprep.subr.bf16.mxu0 %v882
    %1382 = vmatpush1.bf16.msra.mxu0 %v881
    %1383 = vmatprep.subr.bf16.mxu0 %v879
    %1384 = vmatpush1.bf16.msra.mxu0 %v878
    %1385 = vmatprep.subr.bf16.mxu0 %v876
    %1386 = vmatpush1.bf16.msra.mxu0 %v875
    %1387 = vmatprep.subr.bf16.mxu0 %v873
    %1388 = vmatpush1.bf16.msra.mxu0 %v872
    %1389 = vmatprep.subr.bf16.mxu0 %v870
    %1390 = vmatpush1.bf16.msra.mxu0 %v869
    %1391 = vmatprep.subr.bf16.mxu0 %v867
    %1392 = vmatpush1.bf16.msra.mxu0 %v866
    %1393 = vmatprep.subr.bf16.mxu0 0
    %1394 = vmatpush2.bf16.msra.mxu0 0
    %1395 = vmatprep.subr.bf16.mxu0 0
    %1396 = vmatpush2.bf16.msra.mxu0 0
    %1397 = vmatprep.subr.bf16.mxu0 0
    %1398 = vmatpush2.bf16.msra.mxu0 0
    %1399 = vmatprep.subr.bf16.mxu0 0
    %1400 = vmatpush2.bf16.msra.mxu0 0
    %1401 = vmatprep.subr.bf16.mxu0 0
    %1402 = vmatpush2.bf16.msra.mxu0 0
    %1403 = vmatprep.subr.bf16.mxu0 0
    %1404 = vmatpush2.bf16.msra.mxu0 0
    %1405 = vmatprep.subr.bf16.mxu0 0
    %1406 = vmatpush2.bf16.msra.mxu0 0
    %1407 = vmatprep.subr.bf16.mxu0 0
    %1408 = vmatpush2.bf16.msra.mxu0 0
    %1409 = vmatprep.mubr.bf16.mxu0 0
    %1410 = vmatmul.mubr.bf16.gmra.mxu0 %v1376
    %v1411 = vpop.f32.mrf.mxu0
    %v1412 = vadd.f32 0.0, %v1411
    %v1413 = vpop.f32.mrf.mxu0
    %v1414 = vadd.f32 0.0, %v1413
    %v1415 = vpop.f32.mrf.mxu0
    %v1416 = vadd.f32 0.0, %v1415
    %v1417 = vpop.f32.mrf.mxu0
    %v1418 = vadd.f32 0.0, %v1417
    %1419 = vdwg.mxu0
    %1420 = vmatprep.subr.bf16.mxu0 0
    %1421 = vmatpush1.bf16.msra.mxu0 %v889
    %1422 = vmatprep.subr.bf16.mxu0 0
    %1423 = vmatpush1.bf16.msra.mxu0 %v886
    %1424 = vmatprep.subr.bf16.mxu0 0
    %1425 = vmatpush1.bf16.msra.mxu0 %v883
    %1426 = vmatprep.subr.bf16.mxu0 0
    %1427 = vmatpush1.bf16.msra.mxu0 %v880
    %1428 = vmatprep.subr.bf16.mxu0 0
    %1429 = vmatpush1.bf16.msra.mxu0 %v877
    %1430 = vmatprep.subr.bf16.mxu0 0
    %1431 = vmatpush1.bf16.msra.mxu0 %v874
    %1432 = vmatprep.subr.bf16.mxu0 0
    %1433 = vmatpush1.bf16.msra.mxu0 %v871
    %1434 = vmatprep.subr.bf16.mxu0 0
    %1435 = vmatpush1.bf16.msra.mxu0 %v868
    %1436 = vmatprep.subr.bf16.mxu0 0
    %1437 = vmatpush2.bf16.msra.mxu0 0
    %1438 = vmatprep.subr.bf16.mxu0 0
    %1439 = vmatpush2.bf16.msra.mxu0 0
    %1440 = vmatprep.subr.bf16.mxu0 0
    %1441 = vmatpush2.bf16.msra.mxu0 0
    %1442 = vmatprep.subr.bf16.mxu0 0
    %1443 = vmatpush2.bf16.msra.mxu0 0
    %1444 = vmatprep.subr.bf16.mxu0 0
    %1445 = vmatpush2.bf16.msra.mxu0 0
    %1446 = vmatprep.subr.bf16.mxu0 0
    %1447 = vmatpush2.bf16.msra.mxu0 0
    %1448 = vmatprep.subr.bf16.mxu0 0
    %1449 = vmatpush2.bf16.msra.mxu0 0
    %1450 = vmatprep.subr.bf16.mxu0 0
    %1451 = vmatpush2.bf16.msra.mxu0 0
    %1452 = vmatprep.mubr.bf16.mxu0 0
    %1453 = vmatmul.mubr.bf16.gmra.mxu0 %v1376
    %v1454 = vpop.f32.mrf.mxu0
    %v1455 = vadd.f32 0.0, %v1454
    %v1456 = vpop.f32.mrf.mxu0
    %v1457 = vpop.f32.mrf.mxu0
    %v1458 = vadd.f32 0.0, %v1457
    %v1459 = vpop.f32.mrf.mxu0
    %1460 = vdwg.mxu0
    %s1461 = scalar_lea.vmem [#allocation2], 72
    %v1462 = vld [vmem:[%s1461] sm:$0xff]
    %v1463 = vld [vmem:[%s1461 + $0x8] sm:$0xf]
    %v1464 = vld [vmem:[%s1461 + $0xc] sm:$0xff]
    %v1465 = vld [vmem:[%s1461 + $0x14] sm:$0xf]
    %v1466 = vunpack.c.l.bf16 %v1462
    %v1467 = vunpack.c.h.bf16 %v1462
    %v1468 = vunpack.c.l.bf16 %v1463
    %v1469 = vunpack.c.l.bf16 %v1464
    %v1470 = vunpack.c.h.bf16 %v1464
    %v1471 = vunpack.c.l.bf16 %v1465
    %v1472 = vadd.f32 %v1466, %v1412
    %v1473 = vadd.f32 %v1467, %v1414
    %v1474 = vadd.f32 %v1469, %v1416
    %v1475 = vadd.f32 %v1470, %v1418
    %v1476 = vxor.u32 %v1472, 2147483648
    %v1477 = vxor.u32 %v1473, 2147483648
    %v1478 = vxor.u32 %v1474, 2147483648
    %v1479 = vxor.u32 %v1475, 2147483648
    %v1480 = vmul.f32 %v1476, 1.442695
    %v1481 = vpow.pop %v1480
    %v1482 = vmul.f32 %v1477, 1.442695
    %v1483 = vpow.pop %v1482
    %v1484 = vmul.f32 %v1478, 1.442695
    %v1485 = vpow.pop %v1484
    %v1486 = vmul.f32 %v1479, 1.442695
    %v1487 = vpow.pop %v1486
    %v1488 = vadd.f32 %v1481, 1.0
    %v1489 = vadd.f32 %v1483, 1.0
    %v1490 = vadd.f32 %v1485, 1.0
    %v1491 = vadd.f32 %v1487, 1.0
    %v1492 = vrcp.pop %v1488
    %v1493 = vmul.f32 1.0, %v1492
    %v1494 = vrcp.pop %v1489
    %v1495 = vmul.f32 1.0, %v1494
    %v1496 = vrcp.pop %v1490
    %v1497 = vmul.f32 1.0, %v1496
    %v1498 = vrcp.pop %v1491
    %v1499 = vmul.f32 1.0, %v1498
    %v1500 = vadd.f32 %v1455, %v779
    %v1501 = vadd.f32 %v1458, %v779
    %v1502 = vmul.f32 %v1493, %v1500
    %v1503 = vmul.f32 %v1497, %v1501
    %v1504 = vadd.f32 %v1468, %v1502
    %v1505 = vadd.f32 %v1471, %v1503
    %v1506 = vtanh.pop %v1504
    %v1507 = vtanh.pop %v1505
    %v1508 = vsub.f32 1.0, %v1495
    %v1509 = vsub.f32 1.0, %v1499
    %v1510 = vmul.f32 %v1508, %v1506
    %v1511 = vmul.f32 %v1509, %v1507
    %v1512 = vmul.f32 %v1495, %v1374
    %v1513 = vmul.f32 %v1499, %v1375
    %v1514 = vadd.f32 %v1510, %v1512
    %v1515 = vadd.f32 %v1511, %v1513
    %1516 = vst [vmem:[#allocation4] sm:$0xff] %v1514
    %1517 = vst [vmem:[#allocation4 + $0x8] sm:$0xff] %v1515
    %v1518 = vpack.c.bf16 %v1515, %v1514
    %v1520 = vunpack.c.l.b16 %v1518
    %v1521 = vunpack.c.h.b16 %v1518
    %v1522 = vpack.c.b16 %v1520, %v1520
    %v1523 = vpack.c.b16 %v1521, %v1521
    %s1526 = scalar_lea.vmem [#allocation3], 24
    %1527 = vst [vmem:[%s1526] sm:$0xf] %v1522
    %1528 = vst [vmem:[%s1526 + $0x4] sm:$0xf] %v1523
    %v1529 = vld [vmem:[#allocation4] sm:$0xff]
    %v1530 = vld [vmem:[#allocation4 + $0x8] sm:$0xff]
    %v1531 = vpack.c.bf16 %v1530, %v1529
    %1532 = vmatprep.subr.bf16.mxu0 %v888
    %1533 = vmatpush1.bf16.msra.mxu0 %v887
    %1534 = vmatprep.subr.bf16.mxu0 %v885
    %1535 = vmatpush1.bf16.msra.mxu0 %v884
    %1536 = vmatprep.subr.bf16.mxu0 %v882
    %1537 = vmatpush1.bf16.msra.mxu0 %v881
    %1538 = vmatprep.subr.bf16.mxu0 %v879
    %1539 = vmatpush1.bf16.msra.mxu0 %v878
    %1540 = vmatprep.subr.bf16.mxu0 %v876
    %1541 = vmatpush1.bf16.msra.mxu0 %v875
    %1542 = vmatprep.subr.bf16.mxu0 %v873
    %1543 = vmatpush1.bf16.msra.mxu0 %v872
    %1544 = vmatprep.subr.bf16.mxu0 %v870
    %1545 = vmatpush1.bf16.msra.mxu0 %v869
    %1546 = vmatprep.subr.bf16.mxu0 %v867
    %1547 = vmatpush1.bf16.msra.mxu0 %v866
    %1548 = vmatprep.subr.bf16.mxu0 0
    %1549 = vmatpush2.bf16.msra.mxu0 0
    %1550 = vmatprep.subr.bf16.mxu0 0
    %1551 = vmatpush2.bf16.msra.mxu0 0
    %1552 = vmatprep.subr.bf16.mxu0 0
    %1553 = vmatpush2.bf16.msra.mxu0 0
    %1554 = vmatprep.subr.bf16.mxu0 0
    %1555 = vmatpush2.bf16.msra.mxu0 0
    %1556 = vmatprep.subr.bf16.mxu0 0
    %1557 = vmatpush2.bf16.msra.mxu0 0
    %1558 = vmatprep.subr.bf16.mxu0 0
    %1559 = vmatpush2.bf16.msra.mxu0 0
    %1560 = vmatprep.subr.bf16.mxu0 0
    %1561 = vmatpush2.bf16.msra.mxu0 0
    %1562 = vmatprep.subr.bf16.mxu0 0
    %1563 = vmatpush2.bf16.msra.mxu0 0
    %1564 = vmatprep.mubr.bf16.mxu0 0
    %1565 = vmatmul.mubr.bf16.gmra.mxu0 %v1531
    %v1566 = vpop.f32.mrf.mxu0
    %v1567 = vadd.f32 0.0, %v1566
    %v1568 = vpop.f32.mrf.mxu0
    %v1569 = vadd.f32 0.0, %v1568
    %v1570 = vpop.f32.mrf.mxu0
    %v1571 = vadd.f32 0.0, %v1570
    %v1572 = vpop.f32.mrf.mxu0
    %v1573 = vadd.f32 0.0, %v1572
    %1574 = vdwg.mxu0
    %1575 = vmatprep.subr.bf16.mxu0 0
    %1576 = vmatpush1.bf16.msra.mxu0 %v889
    %1577 = vmatprep.subr.bf16.mxu0 0
    %1578 = vmatpush1.bf16.msra.mxu0 %v886
    %1579 = vmatprep.subr.bf16.mxu0 0
    %1580 = vmatpush1.bf16.msra.mxu0 %v883
    %1581 = vmatprep.subr.bf16.mxu0 0
    %1582 = vmatpush1.bf16.msra.mxu0 %v880
    %1583 = vmatprep.subr.bf16.mxu0 0
    %1584 = vmatpush1.bf16.msra.mxu0 %v877
    %1585 = vmatprep.subr.bf16.mxu0 0
    %1586 = vmatpush1.bf16.msra.mxu0 %v874
    %1587 = vmatprep.subr.bf16.mxu0 0
    %1588 = vmatpush1.bf16.msra.mxu0 %v871
    %1589 = vmatprep.subr.bf16.mxu0 0
    %1590 = vmatpush1.bf16.msra.mxu0 %v868
    %1591 = vmatprep.subr.bf16.mxu0 0
    %1592 = vmatpush2.bf16.msra.mxu0 0
    %1593 = vmatprep.subr.bf16.mxu0 0
    %1594 = vmatpush2.bf16.msra.mxu0 0
    %1595 = vmatprep.subr.bf16.mxu0 0
    %1596 = vmatpush2.bf16.msra.mxu0 0
    %1597 = vmatprep.subr.bf16.mxu0 0
    %1598 = vmatpush2.bf16.msra.mxu0 0
    %1599 = vmatprep.subr.bf16.mxu0 0
    %1600 = vmatpush2.bf16.msra.mxu0 0
    %1601 = vmatprep.subr.bf16.mxu0 0
    %1602 = vmatpush2.bf16.msra.mxu0 0
    %1603 = vmatprep.subr.bf16.mxu0 0
    %1604 = vmatpush2.bf16.msra.mxu0 0
    %1605 = vmatprep.subr.bf16.mxu0 0
    %1606 = vmatpush2.bf16.msra.mxu0 0
    %1607 = vmatprep.mubr.bf16.mxu0 0
    %1608 = vmatmul.mubr.bf16.gmra.mxu0 %v1531
    %v1609 = vpop.f32.mrf.mxu0
    %v1610 = vadd.f32 0.0, %v1609
    %v1611 = vpop.f32.mrf.mxu0
    %v1612 = vpop.f32.mrf.mxu0
    %v1613 = vadd.f32 0.0, %v1612
    %v1614 = vpop.f32.mrf.mxu0
    %1615 = vdwg.mxu0
    %s1616 = scalar_lea.vmem [#allocation2], 96
    %v1617 = vld [vmem:[%s1616] sm:$0xff]
    %v1618 = vld [vmem:[%s1616 + $0x8] sm:$0xf]
    %v1619 = vld [vmem:[%s1616 + $0xc] sm:$0xff]
    %v1620 = vld [vmem:[%s1616 + $0x14] sm:$0xf]
    %v1621 = vunpack.c.l.bf16 %v1617
    %v1622 = vunpack.c.h.bf16 %v1617
    %v1623 = vunpack.c.l.bf16 %v1618
    %v1624 = vunpack.c.l.bf16 %v1619
    %v1625 = vunpack.c.h.bf16 %v1619
    %v1626 = vunpack.c.l.bf16 %v1620
    %v1627 = vadd.f32 %v1621, %v1567
    %v1628 = vadd.f32 %v1622, %v1569
    %v1629 = vadd.f32 %v1624, %v1571
    %v1630 = vadd.f32 %v1625, %v1573
    %v1631 = vxor.u32 %v1627, 2147483648
    %v1632 = vxor.u32 %v1628, 2147483648
    %v1633 = vxor.u32 %v1629, 2147483648
    %v1634 = vxor.u32 %v1630, 2147483648
    %v1635 = vmul.f32 %v1631, 1.442695
    %v1636 = vpow.pop %v1635
    %v1637 = vmul.f32 %v1632, 1.442695
    %v1638 = vpow.pop %v1637
    %v1639 = vmul.f32 %v1633, 1.442695
    %v1640 = vpow.pop %v1639
    %v1641 = vmul.f32 %v1634, 1.442695
    %v1642 = vpow.pop %v1641
    %v1643 = vadd.f32 %v1636, 1.0
    %v1644 = vadd.f32 %v1638, 1.0
    %v1645 = vadd.f32 %v1640, 1.0
    %v1646 = vadd.f32 %v1642, 1.0
    %v1647 = vrcp.pop %v1643
    %v1648 = vmul.f32 1.0, %v1647
    %v1649 = vrcp.pop %v1644
    %v1650 = vmul.f32 1.0, %v1649
    %v1651 = vrcp.pop %v1645
    %v1652 = vmul.f32 1.0, %v1651
    %v1653 = vrcp.pop %v1646
    %v1654 = vmul.f32 1.0, %v1653
    %v1655 = vadd.f32 %v1610, %v779
    %v1656 = vadd.f32 %v1613, %v779
    %v1657 = vmul.f32 %v1648, %v1655
    %v1658 = vmul.f32 %v1652, %v1656
    %v1659 = vadd.f32 %v1623, %v1657
    %v1660 = vadd.f32 %v1626, %v1658
    %v1661 = vtanh.pop %v1659
    %v1662 = vtanh.pop %v1660
    %v1663 = vsub.f32 1.0, %v1650
    %v1664 = vsub.f32 1.0, %v1654
    %v1665 = vmul.f32 %v1663, %v1661
    %v1666 = vmul.f32 %v1664, %v1662
    %v1667 = vmul.f32 %v1650, %v1529
    %v1668 = vmul.f32 %v1654, %v1530
    %v1669 = vadd.f32 %v1665, %v1667
    %v1670 = vadd.f32 %v1666, %v1668
    %1671 = vst [vmem:[#allocation4] sm:$0xff] %v1669
    %1672 = vst [vmem:[#allocation4 + $0x8] sm:$0xff] %v1670
    %v1673 = vpack.c.bf16 %v1670, %v1669
    %v1675 = vunpack.c.l.b16 %v1673
    %v1676 = vunpack.c.h.b16 %v1673
    %v1677 = vpack.c.b16 %v1675, %v1675
    %v1678 = vpack.c.b16 %v1676, %v1676
    %s1681 = scalar_lea.vmem [#allocation3], 32
    %1682 = vst [vmem:[%s1681] sm:$0xf] %v1677
    %1683 = vst [vmem:[%s1681 + $0x4] sm:$0xf] %v1678
    %v1684 = vld [vmem:[#allocation4] sm:$0xff]
    %v1685 = vld [vmem:[#allocation4 + $0x8] sm:$0xff]
    %v1686 = vpack.c.bf16 %v1685, %v1684
    %1687 = vmatprep.subr.bf16.mxu0 %v888
    %1688 = vmatpush1.bf16.msra.mxu0 %v887
    %1689 = vmatprep.subr.bf16.mxu0 %v885
    %1690 = vmatpush1.bf16.msra.mxu0 %v884
    %1691 = vmatprep.subr.bf16.mxu0 %v882
    %1692 = vmatpush1.bf16.msra.mxu0 %v881
    %1693 = vmatprep.subr.bf16.mxu0 %v879
    %1694 = vmatpush1.bf16.msra.mxu0 %v878
    %1695 = vmatprep.subr.bf16.mxu0 %v876
    %1696 = vmatpush1.bf16.msra.mxu0 %v875
    %1697 = vmatprep.subr.bf16.mxu0 %v873
    %1698 = vmatpush1.bf16.msra.mxu0 %v872
    %1699 = vmatprep.subr.bf16.mxu0 %v870
    %1700 = vmatpush1.bf16.msra.mxu0 %v869
    %1701 = vmatprep.subr.bf16.mxu0 %v867
    %1702 = vmatpush1.bf16.msra.mxu0 %v866
    %1703 = vmatprep.subr.bf16.mxu0 0
    %1704 = vmatpush2.bf16.msra.mxu0 0
    %1705 = vmatprep.subr.bf16.mxu0 0
    %1706 = vmatpush2.bf16.msra.mxu0 0
    %1707 = vmatprep.subr.bf16.mxu0 0
    %1708 = vmatpush2.bf16.msra.mxu0 0
    %1709 = vmatprep.subr.bf16.mxu0 0
    %1710 = vmatpush2.bf16.msra.mxu0 0
    %1711 = vmatprep.subr.bf16.mxu0 0
    %1712 = vmatpush2.bf16.msra.mxu0 0
    %1713 = vmatprep.subr.bf16.mxu0 0
    %1714 = vmatpush2.bf16.msra.mxu0 0
    %1715 = vmatprep.subr.bf16.mxu0 0
    %1716 = vmatpush2.bf16.msra.mxu0 0
    %1717 = vmatprep.subr.bf16.mxu0 0
    %1718 = vmatpush2.bf16.msra.mxu0 0
    %1719 = vmatprep.mubr.bf16.mxu0 0
    %1720 = vmatmul.mubr.bf16.gmra.mxu0 %v1686
    %v1721 = vpop.f32.mrf.mxu0
    %v1722 = vadd.f32 0.0, %v1721
    %v1723 = vpop.f32.mrf.mxu0
    %v1724 = vadd.f32 0.0, %v1723
    %v1725 = vpop.f32.mrf.mxu0
    %v1726 = vadd.f32 0.0, %v1725
    %v1727 = vpop.f32.mrf.mxu0
    %v1728 = vadd.f32 0.0, %v1727
    %1729 = vdwg.mxu0
    %1730 = vmatprep.subr.bf16.mxu0 0
    %1731 = vmatpush1.bf16.msra.mxu0 %v889
    %1732 = vmatprep.subr.bf16.mxu0 0
    %1733 = vmatpush1.bf16.msra.mxu0 %v886
    %1734 = vmatprep.subr.bf16.mxu0 0
    %1735 = vmatpush1.bf16.msra.mxu0 %v883
    %1736 = vmatprep.subr.bf16.mxu0 0
    %1737 = vmatpush1.bf16.msra.mxu0 %v880
    %1738 = vmatprep.subr.bf16.mxu0 0
    %1739 = vmatpush1.bf16.msra.mxu0 %v877
    %1740 = vmatprep.subr.bf16.mxu0 0
    %1741 = vmatpush1.bf16.msra.mxu0 %v874
    %1742 = vmatprep.subr.bf16.mxu0 0
    %1743 = vmatpush1.bf16.msra.mxu0 %v871
    %1744 = vmatprep.subr.bf16.mxu0 0
    %1745 = vmatpush1.bf16.msra.mxu0 %v868
    %1746 = vmatprep.subr.bf16.mxu0 0
    %1747 = vmatpush2.bf16.msra.mxu0 0
    %1748 = vmatprep.subr.bf16.mxu0 0
    %1749 = vmatpush2.bf16.msra.mxu0 0
    %1750 = vmatprep.subr.bf16.mxu0 0
    %1751 = vmatpush2.bf16.msra.mxu0 0
    %1752 = vmatprep.subr.bf16.mxu0 0
    %1753 = vmatpush2.bf16.msra.mxu0 0
    %1754 = vmatprep.subr.bf16.mxu0 0
    %1755 = vmatpush2.bf16.msra.mxu0 0
    %1756 = vmatprep.subr.bf16.mxu0 0
    %1757 = vmatpush2.bf16.msra.mxu0 0
    %1758 = vmatprep.subr.bf16.mxu0 0
    %1759 = vmatpush2.bf16.msra.mxu0 0
    %1760 = vmatprep.subr.bf16.mxu0 0
    %1761 = vmatpush2.bf16.msra.mxu0 0
    %1762 = vmatprep.mubr.bf16.mxu0 0
    %1763 = vmatmul.mubr.bf16.gmra.mxu0 %v1686
    %v1764 = vpop.f32.mrf.mxu0
    %v1765 = vadd.f32 0.0, %v1764
    %v1766 = vpop.f32.mrf.mxu0
    %v1767 = vpop.f32.mrf.mxu0
    %v1768 = vadd.f32 0.0, %v1767
    %v1769 = vpop.f32.mrf.mxu0
    %1770 = vdwg.mxu0
    %s1771 = scalar_lea.vmem [#allocation2], 120
    %v1772 = vld [vmem:[%s1771] sm:$0xff]
    %v1773 = vld [vmem:[%s1771 + $0x8] sm:$0xf]
    %v1774 = vld [vmem:[%s1771 + $0xc] sm:$0xff]
    %v1775 = vld [vmem:[%s1771 + $0x14] sm:$0xf]
    %v1776 = vunpack.c.l.bf16 %v1772
    %v1777 = vunpack.c.h.bf16 %v1772
    %v1778 = vunpack.c.l.bf16 %v1773
    %v1779 = vunpack.c.l.bf16 %v1774
    %v1780 = vunpack.c.h.bf16 %v1774
    %v1781 = vunpack.c.l.bf16 %v1775
    %v1782 = vadd.f32 %v1776, %v1722
    %v1783 = vadd.f32 %v1777, %v1724
    %v1784 = vadd.f32 %v1779, %v1726
    %v1785 = vadd.f32 %v1780, %v1728
    %v1786 = vxor.u32 %v1782, 2147483648
    %v1787 = vxor.u32 %v1783, 2147483648
    %v1788 = vxor.u32 %v1784, 2147483648
    %v1789 = vxor.u32 %v1785, 2147483648
    %v1790 = vmul.f32 %v1786, 1.442695
    %v1791 = vpow.pop %v1790
    %v1792 = vmul.f32 %v1787, 1.442695
    %v1793 = vpow.pop %v1792
    %v1794 = vmul.f32 %v1788, 1.442695
    %v1795 = vpow.pop %v1794
    %v1796 = vmul.f32 %v1789, 1.442695
    %v1797 = vpow.pop %v1796
    %v1798 = vadd.f32 %v1791, 1.0
    %v1799 = vadd.f32 %v1793, 1.0
    %v1800 = vadd.f32 %v1795, 1.0
    %v1801 = vadd.f32 %v1797, 1.0
    %v1802 = vrcp.pop %v1798
    %v1803 = vmul.f32 1.0, %v1802
    %v1804 = vrcp.pop %v1799
    %v1805 = vmul.f32 1.0, %v1804
    %v1806 = vrcp.pop %v1800
    %v1807 = vmul.f32 1.0, %v1806
    %v1808 = vrcp.pop %v1801
    %v1809 = vmul.f32 1.0, %v1808
    %v1810 = vadd.f32 %v1765, %v779
    %v1811 = vadd.f32 %v1768, %v779
    %v1812 = vmul.f32 %v1803, %v1810
    %v1813 = vmul.f32 %v1807, %v1811
    %v1814 = vadd.f32 %v1778, %v1812
    %v1815 = vadd.f32 %v1781, %v1813
    %v1816 = vtanh.pop %v1814
    %v1817 = vtanh.pop %v1815
    %v1818 = vsub.f32 1.0, %v1805
    %v1819 = vsub.f32 1.0, %v1809
    %v1820 = vmul.f32 %v1818, %v1816
    %v1821 = vmul.f32 %v1819, %v1817
    %v1822 = vmul.f32 %v1805, %v1684
    %v1823 = vmul.f32 %v1809, %v1685
    %v1824 = vadd.f32 %v1820, %v1822
    %v1825 = vadd.f32 %v1821, %v1823
    %1826 = vst [vmem:[#allocation4] sm:$0xff] %v1824
    %1827 = vst [vmem:[#allocation4 + $0x8] sm:$0xff] %v1825
    %v1828 = vpack.c.bf16 %v1825, %v1824
    %v1830 = vunpack.c.l.b16 %v1828
    %v1831 = vunpack.c.h.b16 %v1828
    %v1832 = vpack.c.b16 %v1830, %v1830
    %v1833 = vpack.c.b16 %v1831, %v1831
    %s1836 = scalar_lea.vmem [#allocation3], 40
    %1837 = vst [vmem:[%s1836] sm:$0xf] %v1832
    %1838 = vst [vmem:[%s1836 + $0x4] sm:$0xf] %v1833
    %v1839 = vld [vmem:[#allocation4] sm:$0xff]
    %v1840 = vld [vmem:[#allocation4 + $0x8] sm:$0xff]
    %v1841 = vpack.c.bf16 %v1840, %v1839
    %1842 = vmatprep.subr.bf16.mxu0 %v888
    %1843 = vmatpush1.bf16.msra.mxu0 %v887
    %1844 = vmatprep.subr.bf16.mxu0 %v885
    %1845 = vmatpush1.bf16.msra.mxu0 %v884
    %1846 = vmatprep.subr.bf16.mxu0 %v882
    %1847 = vmatpush1.bf16.msra.mxu0 %v881
    %1848 = vmatprep.subr.bf16.mxu0 %v879
    %1849 = vmatpush1.bf16.msra.mxu0 %v878
    %1850 = vmatprep.subr.bf16.mxu0 %v876
    %1851 = vmatpush1.bf16.msra.mxu0 %v875
    %1852 = vmatprep.subr.bf16.mxu0 %v873
    %1853 = vmatpush1.bf16.msra.mxu0 %v872
    %1854 = vmatprep.subr.bf16.mxu0 %v870
    %1855 = vmatpush1.bf16.msra.mxu0 %v869
    %1856 = vmatprep.subr.bf16.mxu0 %v867
    %1857 = vmatpush1.bf16.msra.mxu0 %v866
    %1858 = vmatprep.subr.bf16.mxu0 0
    %1859 = vmatpush2.bf16.msra.mxu0 0
    %1860 = vmatprep.subr.bf16.mxu0 0
    %1861 = vmatpush2.bf16.msra.mxu0 0
    %1862 = vmatprep.subr.bf16.mxu0 0
    %1863 = vmatpush2.bf16.msra.mxu0 0
    %1864 = vmatprep.subr.bf16.mxu0 0
    %1865 = vmatpush2.bf16.msra.mxu0 0
    %1866 = vmatprep.subr.bf16.mxu0 0
    %1867 = vmatpush2.bf16.msra.mxu0 0
    %1868 = vmatprep.subr.bf16.mxu0 0
    %1869 = vmatpush2.bf16.msra.mxu0 0
    %1870 = vmatprep.subr.bf16.mxu0 0
    %1871 = vmatpush2.bf16.msra.mxu0 0
    %1872 = vmatprep.subr.bf16.mxu0 0
    %1873 = vmatpush2.bf16.msra.mxu0 0
    %1874 = vmatprep.mubr.bf16.mxu0 0
    %1875 = vmatmul.mubr.bf16.gmra.mxu0 %v1841
    %v1876 = vpop.f32.mrf.mxu0
    %v1877 = vadd.f32 0.0, %v1876
    %v1878 = vpop.f32.mrf.mxu0
    %v1879 = vadd.f32 0.0, %v1878
    %v1880 = vpop.f32.mrf.mxu0
    %v1881 = vadd.f32 0.0, %v1880
    %v1882 = vpop.f32.mrf.mxu0
    %v1883 = vadd.f32 0.0, %v1882
    %1884 = vdwg.mxu0
    %1885 = vmatprep.subr.bf16.mxu0 0
    %1886 = vmatpush1.bf16.msra.mxu0 %v889
    %1887 = vmatprep.subr.bf16.mxu0 0
    %1888 = vmatpush1.bf16.msra.mxu0 %v886
    %1889 = vmatprep.subr.bf16.mxu0 0
    %1890 = vmatpush1.bf16.msra.mxu0 %v883
    %1891 = vmatprep.subr.bf16.mxu0 0
    %1892 = vmatpush1.bf16.msra.mxu0 %v880
    %1893 = vmatprep.subr.bf16.mxu0 0
    %1894 = vmatpush1.bf16.msra.mxu0 %v877
    %1895 = vmatprep.subr.bf16.mxu0 0
    %1896 = vmatpush1.bf16.msra.mxu0 %v874
    %1897 = vmatprep.subr.bf16.mxu0 0
    %1898 = vmatpush1.bf16.msra.mxu0 %v871
    %1899 = vmatprep.subr.bf16.mxu0 0
    %1900 = vmatpush1.bf16.msra.mxu0 %v868
    %1901 = vmatprep.subr.bf16.mxu0 0
    %1902 = vmatpush2.bf16.msra.mxu0 0
    %1903 = vmatprep.subr.bf16.mxu0 0
    %1904 = vmatpush2.bf16.msra.mxu0 0
    %1905 = vmatprep.subr.bf16.mxu0 0
    %1906 = vmatpush2.bf16.msra.mxu0 0
    %1907 = vmatprep.subr.bf16.mxu0 0
    %1908 = vmatpush2.bf16.msra.mxu0 0
    %1909 = vmatprep.subr.bf16.mxu0 0
    %1910 = vmatpush2.bf16.msra.mxu0 0
    %1911 = vmatprep.subr.bf16.mxu0 0
    %1912 = vmatpush2.bf16.msra.mxu0 0
    %1913 = vmatprep.subr.bf16.mxu0 0
    %1914 = vmatpush2.bf16.msra.mxu0 0
    %1915 = vmatprep.subr.bf16.mxu0 0
    %1916 = vmatpush2.bf16.msra.mxu0 0
    %1917 = vmatprep.mubr.bf16.mxu0 0
    %1918 = vmatmul.mubr.bf16.gmra.mxu0 %v1841
    %v1919 = vpop.f32.mrf.mxu0
    %v1920 = vadd.f32 0.0, %v1919
    %v1921 = vpop.f32.mrf.mxu0
    %v1922 = vpop.f32.mrf.mxu0
    %v1923 = vadd.f32 0.0, %v1922
    %v1924 = vpop.f32.mrf.mxu0
    %1925 = vdwg.mxu0
    %s1926 = scalar_lea.vmem [#allocation2], 144
    %v1927 = vld [vmem:[%s1926] sm:$0xff]
    %v1928 = vld [vmem:[%s1926 + $0x8] sm:$0xf]
    %v1929 = vld [vmem:[%s1926 + $0xc] sm:$0xff]
    %v1930 = vld [vmem:[%s1926 + $0x14] sm:$0xf]
    %v1931 = vunpack.c.l.bf16 %v1927
    %v1932 = vunpack.c.h.bf16 %v1927
    %v1933 = vunpack.c.l.bf16 %v1928
    %v1934 = vunpack.c.l.bf16 %v1929
    %v1935 = vunpack.c.h.bf16 %v1929
    %v1936 = vunpack.c.l.bf16 %v1930
    %v1937 = vadd.f32 %v1931, %v1877
    %v1938 = vadd.f32 %v1932, %v1879
    %v1939 = vadd.f32 %v1934, %v1881
    %v1940 = vadd.f32 %v1935, %v1883
    %v1941 = vxor.u32 %v1937, 2147483648
    %v1942 = vxor.u32 %v1938, 2147483648
    %v1943 = vxor.u32 %v1939, 2147483648
    %v1944 = vxor.u32 %v1940, 2147483648
    %v1945 = vmul.f32 %v1941, 1.442695
    %v1946 = vpow.pop %v1945
    %v1947 = vmul.f32 %v1942, 1.442695
    %v1948 = vpow.pop %v1947
    %v1949 = vmul.f32 %v1943, 1.442695
    %v1950 = vpow.pop %v1949
    %v1951 = vmul.f32 %v1944, 1.442695
    %v1952 = vpow.pop %v1951
    %v1953 = vadd.f32 %v1946, 1.0
    %v1954 = vadd.f32 %v1948, 1.0
    %v1955 = vadd.f32 %v1950, 1.0
    %v1956 = vadd.f32 %v1952, 1.0
    %v1957 = vrcp.pop %v1953
    %v1958 = vmul.f32 1.0, %v1957
    %v1959 = vrcp.pop %v1954
    %v1960 = vmul.f32 1.0, %v1959
    %v1961 = vrcp.pop %v1955
    %v1962 = vmul.f32 1.0, %v1961
    %v1963 = vrcp.pop %v1956
    %v1964 = vmul.f32 1.0, %v1963
    %v1965 = vadd.f32 %v1920, %v779
    %v1966 = vadd.f32 %v1923, %v779
    %v1967 = vmul.f32 %v1958, %v1965
    %v1968 = vmul.f32 %v1962, %v1966
    %v1969 = vadd.f32 %v1933, %v1967
    %v1970 = vadd.f32 %v1936, %v1968
    %v1971 = vtanh.pop %v1969
    %v1972 = vtanh.pop %v1970
    %v1973 = vsub.f32 1.0, %v1960
    %v1974 = vsub.f32 1.0, %v1964
    %v1975 = vmul.f32 %v1973, %v1971
    %v1976 = vmul.f32 %v1974, %v1972
    %v1977 = vmul.f32 %v1960, %v1839
    %v1978 = vmul.f32 %v1964, %v1840
    %v1979 = vadd.f32 %v1975, %v1977
    %v1980 = vadd.f32 %v1976, %v1978
    %1981 = vst [vmem:[#allocation4] sm:$0xff] %v1979
    %1982 = vst [vmem:[#allocation4 + $0x8] sm:$0xff] %v1980
    %v1983 = vpack.c.bf16 %v1980, %v1979
    %v1985 = vunpack.c.l.b16 %v1983
    %v1986 = vunpack.c.h.b16 %v1983
    %v1987 = vpack.c.b16 %v1985, %v1985
    %v1988 = vpack.c.b16 %v1986, %v1986
    %s1991 = scalar_lea.vmem [#allocation3], 48
    %1992 = vst [vmem:[%s1991] sm:$0xf] %v1987
    %1993 = vst [vmem:[%s1991 + $0x4] sm:$0xf] %v1988
    %v1994 = vld [vmem:[#allocation4] sm:$0xff]
    %v1995 = vld [vmem:[#allocation4 + $0x8] sm:$0xff]
    %v1996 = vpack.c.bf16 %v1995, %v1994
    %1997 = vmatprep.subr.bf16.mxu0 %v888
    %1998 = vmatpush1.bf16.msra.mxu0 %v887
    %1999 = vmatprep.subr.bf16.mxu0 %v885
    %2000 = vmatpush1.bf16.msra.mxu0 %v884
    %2001 = vmatprep.subr.bf16.mxu0 %v882
    %2002 = vmatpush1.bf16.msra.mxu0 %v881
    %2003 = vmatprep.subr.bf16.mxu0 %v879
    %2004 = vmatpush1.bf16.msra.mxu0 %v878
    %2005 = vmatprep.subr.bf16.mxu0 %v876
    %2006 = vmatpush1.bf16.msra.mxu0 %v875
    %2007 = vmatprep.subr.bf16.mxu0 %v873
    %2008 = vmatpush1.bf16.msra.mxu0 %v872
    %2009 = vmatprep.subr.bf16.mxu0 %v870
    %2010 = vmatpush1.bf16.msra.mxu0 %v869
    %2011 = vmatprep.subr.bf16.mxu0 %v867
    %2012 = vmatpush1.bf16.msra.mxu0 %v866
    %2013 = vmatprep.subr.bf16.mxu0 0
    %2014 = vmatpush2.bf16.msra.mxu0 0
    %2015 = vmatprep.subr.bf16.mxu0 0
    %2016 = vmatpush2.bf16.msra.mxu0 0
    %2017 = vmatprep.subr.bf16.mxu0 0
    %2018 = vmatpush2.bf16.msra.mxu0 0
    %2019 = vmatprep.subr.bf16.mxu0 0
    %2020 = vmatpush2.bf16.msra.mxu0 0
    %2021 = vmatprep.subr.bf16.mxu0 0
    %2022 = vmatpush2.bf16.msra.mxu0 0
    %2023 = vmatprep.subr.bf16.mxu0 0
    %2024 = vmatpush2.bf16.msra.mxu0 0
    %2025 = vmatprep.subr.bf16.mxu0 0
    %2026 = vmatpush2.bf16.msra.mxu0 0
    %2027 = vmatprep.subr.bf16.mxu0 0
    %2028 = vmatpush2.bf16.msra.mxu0 0
    %2029 = vmatprep.mubr.bf16.mxu0 0
    %2030 = vmatmul.mubr.bf16.gmra.mxu0 %v1996
    %v2031 = vpop.f32.mrf.mxu0
    %v2032 = vadd.f32 0.0, %v2031
    %v2033 = vpop.f32.mrf.mxu0
    %v2034 = vadd.f32 0.0, %v2033
    %v2035 = vpop.f32.mrf.mxu0
    %v2036 = vadd.f32 0.0, %v2035
    %v2037 = vpop.f32.mrf.mxu0
    %v2038 = vadd.f32 0.0, %v2037
    %2039 = vdwg.mxu0
    %2040 = vmatprep.subr.bf16.mxu0 0
    %2041 = vmatpush1.bf16.msra.mxu0 %v889
    %2042 = vmatprep.subr.bf16.mxu0 0
    %2043 = vmatpush1.bf16.msra.mxu0 %v886
    %2044 = vmatprep.subr.bf16.mxu0 0
    %2045 = vmatpush1.bf16.msra.mxu0 %v883
    %2046 = vmatprep.subr.bf16.mxu0 0
    %2047 = vmatpush1.bf16.msra.mxu0 %v880
    %2048 = vmatprep.subr.bf16.mxu0 0
    %2049 = vmatpush1.bf16.msra.mxu0 %v877
    %2050 = vmatprep.subr.bf16.mxu0 0
    %2051 = vmatpush1.bf16.msra.mxu0 %v874
    %2052 = vmatprep.subr.bf16.mxu0 0
    %2053 = vmatpush1.bf16.msra.mxu0 %v871
    %2054 = vmatprep.subr.bf16.mxu0 0
    %2055 = vmatpush1.bf16.msra.mxu0 %v868
    %2056 = vmatprep.subr.bf16.mxu0 0
    %2057 = vmatpush2.bf16.msra.mxu0 0
    %2058 = vmatprep.subr.bf16.mxu0 0
    %2059 = vmatpush2.bf16.msra.mxu0 0
    %2060 = vmatprep.subr.bf16.mxu0 0
    %2061 = vmatpush2.bf16.msra.mxu0 0
    %2062 = vmatprep.subr.bf16.mxu0 0
    %2063 = vmatpush2.bf16.msra.mxu0 0
    %2064 = vmatprep.subr.bf16.mxu0 0
    %2065 = vmatpush2.bf16.msra.mxu0 0
    %2066 = vmatprep.subr.bf16.mxu0 0
    %2067 = vmatpush2.bf16.msra.mxu0 0
    %2068 = vmatprep.subr.bf16.mxu0 0
    %2069 = vmatpush2.bf16.msra.mxu0 0
    %2070 = vmatprep.subr.bf16.mxu0 0
    %2071 = vmatpush2.bf16.msra.mxu0 0
    %2072 = vmatprep.mubr.bf16.mxu0 0
    %2073 = vmatmul.mubr.bf16.gmra.mxu0 %v1996
    %v2074 = vpop.f32.mrf.mxu0
    %v2075 = vadd.f32 0.0, %v2074
    %v2076 = vpop.f32.mrf.mxu0
    %v2077 = vpop.f32.mrf.mxu0
    %v2078 = vadd.f32 0.0, %v2077
    %v2079 = vpop.f32.mrf.mxu0
    %2080 = vdwg.mxu0
    %s2081 = scalar_lea.vmem [#allocation2], 168
    %v2082 = vld [vmem:[%s2081] sm:$0xff]
    %v2083 = vld [vmem:[%s2081 + $0x8] sm:$0xf]
    %v2084 = vld [vmem:[%s2081 + $0xc] sm:$0xff]
    %v2085 = vld [vmem:[%s2081 + $0x14] sm:$0xf]
    %v2086 = vunpack.c.l.bf16 %v2082
    %v2087 = vunpack.c.h.bf16 %v2082
    %v2088 = vunpack.c.l.bf16 %v2083
    %v2089 = vunpack.c.l.bf16 %v2084
    %v2090 = vunpack.c.h.bf16 %v2084
    %v2091 = vunpack.c.l.bf16 %v2085
    %v2092 = vadd.f32 %v2086, %v2032
    %v2093 = vadd.f32 %v2087, %v2034
    %v2094 = vadd.f32 %v2089, %v2036
    %v2095 = vadd.f32 %v2090, %v2038
    %v2096 = vxor.u32 %v2092, 2147483648
    %v2097 = vxor.u32 %v2093, 2147483648
    %v2098 = vxor.u32 %v2094, 2147483648
    %v2099 = vxor.u32 %v2095, 2147483648
    %v2100 = vmul.f32 %v2096, 1.442695
    %v2101 = vpow.pop %v2100
    %v2102 = vmul.f32 %v2097, 1.442695
    %v2103 = vpow.pop %v2102
    %v2104 = vmul.f32 %v2098, 1.442695
    %v2105 = vpow.pop %v2104
    %v2106 = vmul.f32 %v2099, 1.442695
    %v2107 = vpow.pop %v2106
    %v2108 = vadd.f32 %v2101, 1.0
    %v2109 = vadd.f32 %v2103, 1.0
    %v2110 = vadd.f32 %v2105, 1.0
    %v2111 = vadd.f32 %v2107, 1.0
    %v2112 = vrcp.pop %v2108
    %v2113 = vmul.f32 1.0, %v2112
    %v2114 = vrcp.pop %v2109
    %v2115 = vmul.f32 1.0, %v2114
    %v2116 = vrcp.pop %v2110
    %v2117 = vmul.f32 1.0, %v2116
    %v2118 = vrcp.pop %v2111
    %v2119 = vmul.f32 1.0, %v2118
    %v2120 = vadd.f32 %v2075, %v779
    %v2121 = vadd.f32 %v2078, %v779
    %v2122 = vmul.f32 %v2113, %v2120
    %v2123 = vmul.f32 %v2117, %v2121
    %v2124 = vadd.f32 %v2088, %v2122
    %v2125 = vadd.f32 %v2091, %v2123
    %v2126 = vtanh.pop %v2124
    %v2127 = vtanh.pop %v2125
    %v2128 = vsub.f32 1.0, %v2115
    %v2129 = vsub.f32 1.0, %v2119
    %v2130 = vmul.f32 %v2128, %v2126
    %v2131 = vmul.f32 %v2129, %v2127
    %v2132 = vmul.f32 %v2115, %v1994
    %v2133 = vmul.f32 %v2119, %v1995
    %v2134 = vadd.f32 %v2130, %v2132
    %v2135 = vadd.f32 %v2131, %v2133
    %2136 = vst [vmem:[#allocation4] sm:$0xff] %v2134
    %2137 = vst [vmem:[#allocation4 + $0x8] sm:$0xff] %v2135
    %v2138 = vpack.c.bf16 %v2135, %v2134
    %v2140 = vunpack.c.l.b16 %v2138
    %v2141 = vunpack.c.h.b16 %v2138
    %v2142 = vpack.c.b16 %v2140, %v2140
    %v2143 = vpack.c.b16 %v2141, %v2141
    %s2146 = scalar_lea.vmem [#allocation3], 56
    %2147 = vst [vmem:[%s2146] sm:$0xf] %v2142
    %2148 = vst [vmem:[%s2146 + $0x4] sm:$0xf] %v2143
    %v2149 = vld [vmem:[#allocation3] sm:$0xf]
    %v2150 = vld [vmem:[#allocation3 + $0x4] sm:$0xf]
    %v2151 = vld [vmem:[#allocation3 + $0x8] sm:$0xf]
    %v2152 = vld [vmem:[#allocation3 + $0xc] sm:$0xf]
    %v2153 = vld [vmem:[#allocation3 + $0x10] sm:$0xf]
    %v2154 = vld [vmem:[#allocation3 + $0x14] sm:$0xf]
    %v2155 = vld [vmem:[#allocation3 + $0x18] sm:$0xf]
    %v2156 = vld [vmem:[#allocation3 + $0x1c] sm:$0xf]
    %v2157 = vld [vmem:[#allocation3 + $0x20] sm:$0xf]
    %v2158 = vld [vmem:[#allocation3 + $0x24] sm:$0xf]
    %v2159 = vld [vmem:[#allocation3 + $0x28] sm:$0xf]
    %v2160 = vld [vmem:[#allocation3 + $0x2c] sm:$0xf]
    %v2161 = vld [vmem:[#allocation3 + $0x30] sm:$0xf]
    %v2162 = vld [vmem:[#allocation3 + $0x34] sm:$0xf]
    %v2163 = vld [vmem:[#allocation3 + $0x38] sm:$0xf]
    %v2164 = vld [vmem:[#allocation3 + $0x3c] sm:$0xf]
    %v2165 = vld [vmem:[#allocation10] sm:$0xff]
    %v2166 = vld [vmem:[#allocation10 + $0x8] sm:$0xf]
    %v2167 = vld [vmem:[#allocation10 + $0xc] sm:$0xff]
    %v2168 = vld [vmem:[#allocation10 + $0x14] sm:$0xf]
    %v2169 = vld [vmem:[#allocation10 + $0x18] sm:$0xff]
    %v2170 = vld [vmem:[#allocation10 + $0x20] sm:$0xf]
    %v2171 = vld [vmem:[#allocation10 + $0x24] sm:$0xff]
    %v2172 = vld [vmem:[#allocation10 + $0x2c] sm:$0xf]
    %v2173 = vld [vmem:[#allocation10 + $0x30] sm:$0xff]
    %v2174 = vld [vmem:[#allocation10 + $0x38] sm:$0xf]
    %v2175 = vld [vmem:[#allocation10 + $0x3c] sm:$0xff]
    %v2176 = vld [vmem:[#allocation10 + $0x44] sm:$0xf]
    %v2177 = vld [vmem:[#allocation10 + $0x48] sm:$0xff]
    %v2178 = vld [vmem:[#allocation10 + $0x50] sm:$0xf]
    %v2179 = vld [vmem:[#allocation10 + $0x54] sm:$0xff]
    %v2180 = vld [vmem:[#allocation10 + $0x5c] sm:$0xf]
    %v2181 = vld [vmem:[#allocation10 + $0x60] sm:$0xff]
    %v2182 = vld [vmem:[#allocation10 + $0x68] sm:$0xf]
    %v2183 = vld [vmem:[#allocation10 + $0x6c] sm:$0xff]
    %v2184 = vld [vmem:[#allocation10 + $0x74] sm:$0xf]
    %v2185 = vld [vmem:[#allocation10 + $0x78] sm:$0xff]
    %v2186 = vld [vmem:[#allocation10 + $0x80] sm:$0xf]
    %v2187 = vld [vmem:[#allocation10 + $0x84] sm:$0xff]
    %v2188 = vld [vmem:[#allocation10 + $0x8c] sm:$0xf]
    %v2189 = vld [vmem:[#allocation10 + $0x90] sm:$0xff]
    %v2190 = vld [vmem:[#allocation10 + $0x98] sm:$0xf]
    %v2191 = vld [vmem:[#allocation10 + $0x9c] sm:$0xff]
    %v2192 = vld [vmem:[#allocation10 + $0xa4] sm:$0xf]
    %v2193 = vld [vmem:[#allocation10 + $0xa8] sm:$0xff]
    %v2194 = vld [vmem:[#allocation10 + $0xb0] sm:$0xf]
    %v2195 = vld [vmem:[#allocation10 + $0xb4] sm:$0xff]
    %v2196 = vld [vmem:[#allocation10 + $0xbc] sm:$0xf]
    %s2197 = scalar_lea.vmem %s4, 3
    %v2198 = vld [vmem:[%s2197] sm:$0x7]
    %v2200 = vlaneseq
    %v2201 = vshrl.u32 %v2200, 7
    %v2202 = vsub.s32 0, %v2201
    %v2203 = vrot.slane %v2198, %v2202
    %v2204 = vlaneseq
    %v2205 = vshrl.u32 %v2204, 7
    %v2206 = vsub.s32 1, %v2205
    %v2207 = vrot.slane %v2198, %v2206
    %v2208 = vlaneseq
    %v2209 = vshrl.u32 %v2208, 7
    %v2210 = vsub.s32 2, %v2209
    %v2211 = vrot.slane %v2198, %v2210
    %v2231 = vunpack.c.l.b16 %v2149
    %v2232 = vunpack.c.l.b16 %v2150
    %v2233 = vunpack.c.l.b16 %v2151
    %v2234 = vunpack.c.l.b16 %v2152
    %v2235 = vunpack.c.l.b16 %v2153
    %v2236 = vunpack.c.l.b16 %v2154
    %v2237 = vunpack.c.l.b16 %v2155
    %v2238 = vunpack.c.l.b16 %v2156
    %v2239 = vunpack.c.l.b16 %v2157
    %v2240 = vunpack.c.l.b16 %v2158
    %v2241 = vunpack.c.l.b16 %v2159
    %v2242 = vunpack.c.l.b16 %v2160
    %v2243 = vunpack.c.l.b16 %v2161
    %v2244 = vunpack.c.l.b16 %v2162
    %v2245 = vunpack.c.l.b16 %v2163
    %v2246 = vunpack.c.l.b16 %v2164
    %v2247 = vpack.c.b16 %v2232, %v2231
    %v2248 = vpack.c.b16 %v2234, %v2233
    %v2249 = vpack.c.b16 %v2236, %v2235
    %v2250 = vpack.c.b16 %v2238, %v2237
    %v2251 = vpack.c.b16 %v2240, %v2239
    %v2252 = vpack.c.b16 %v2242, %v2241
    %v2253 = vpack.c.b16 %v2244, %v2243
    %v2254 = vpack.c.b16 %v2246, %v2245
    %v2295 = vunpack.c.l.b16 %v2165
    %v2296 = vunpack.c.h.b16 %v2165
    %v2297 = vunpack.c.l.b16 %v2166
    %v2298 = vunpack.c.l.b16 %v2167
    %v2299 = vunpack.c.h.b16 %v2167
    %v2300 = vunpack.c.l.b16 %v2168
    %v2301 = vunpack.c.l.b16 %v2169
    %v2302 = vunpack.c.h.b16 %v2169
    %v2303 = vunpack.c.l.b16 %v2170
    %v2304 = vunpack.c.l.b16 %v2171
    %v2305 = vunpack.c.h.b16 %v2171
    %v2306 = vunpack.c.l.b16 %v2172
    %v2307 = vunpack.c.l.b16 %v2173
    %v2308 = vunpack.c.h.b16 %v2173
    %v2309 = vunpack.c.l.b16 %v2174
    %v2310 = vunpack.c.l.b16 %v2175
    %v2311 = vunpack.c.h.b16 %v2175
    %v2312 = vunpack.c.l.b16 %v2176
    %v2313 = vunpack.c.l.b16 %v2177
    %v2314 = vunpack.c.h.b16 %v2177
    %v2315 = vunpack.c.l.b16 %v2178
    %v2316 = vunpack.c.l.b16 %v2179
    %v2317 = vunpack.c.h.b16 %v2179
    %v2318 = vunpack.c.l.b16 %v2180
    %v2319 = vunpack.c.l.b16 %v2181
    %v2320 = vunpack.c.h.b16 %v2181
    %v2321 = vunpack.c.l.b16 %v2182
    %v2322 = vunpack.c.l.b16 %v2183
    %v2323 = vunpack.c.h.b16 %v2183
    %v2324 = vunpack.c.l.b16 %v2184
    %v2325 = vunpack.c.l.b16 %v2185
    %v2326 = vunpack.c.h.b16 %v2185
    %v2327 = vunpack.c.l.b16 %v2186
    %v2328 = vunpack.c.l.b16 %v2187
    %v2329 = vunpack.c.h.b16 %v2187
    %v2330 = vunpack.c.l.b16 %v2188
    %v2331 = vunpack.c.l.b16 %v2189
    %v2332 = vunpack.c.h.b16 %v2189
    %v2333 = vunpack.c.l.b16 %v2190
    %v2334 = vunpack.c.l.b16 %v2191
    %v2335 = vunpack.c.h.b16 %v2191
    %v2336 = vunpack.c.l.b16 %v2192
    %v2337 = vunpack.c.l.b16 %v2193
    %v2338 = vunpack.c.h.b16 %v2193
    %v2339 = vunpack.c.l.b16 %v2194
    %v2340 = vunpack.c.l.b16 %v2195
    %v2341 = vunpack.c.h.b16 %v2195
    %v2342 = vunpack.c.l.b16 %v2196
    %v2343 = vpack.c.b16 %v2298, %v2295
    %v2344 = vpack.c.b16 %v2299, %v2296
    %v2345 = vpack.c.b16 %v2300, %v2297
    %v2346 = vpack.c.b16 %v2304, %v2301
    %v2347 = vpack.c.b16 %v2305, %v2302
    %v2348 = vpack.c.b16 %v2306, %v2303
    %v2349 = vpack.c.b16 %v2310, %v2307
    %v2350 = vpack.c.b16 %v2311, %v2308
    %v2351 = vpack.c.b16 %v2312, %v2309
    %v2352 = vpack.c.b16 %v2316, %v2313
    %v2353 = vpack.c.b16 %v2317, %v2314
    %v2354 = vpack.c.b16 %v2318, %v2315
    %v2355 = vpack.c.b16 %v2322, %v2319
    %v2356 = vpack.c.b16 %v2323, %v2320
    %v2357 = vpack.c.b16 %v2324, %v2321
    %v2358 = vpack.c.b16 %v2328, %v2325
    %v2359 = vpack.c.b16 %v2329, %v2326
    %v2360 = vpack.c.b16 %v2330, %v2327
    %v2361 = vpack.c.b16 %v2334, %v2331
    %v2362 = vpack.c.b16 %v2335, %v2332
    %v2363 = vpack.c.b16 %v2336, %v2333
    %v2364 = vpack.c.b16 %v2340, %v2337
    %v2365 = vpack.c.b16 %v2341, %v2338
    %v2366 = vpack.c.b16 %v2342, %v2339
    %2391 = vmatprep.subr.bf16.mxu0 %v2365
    %2392 = vmatpush1.bf16.msra.mxu0 %v2364
    %2393 = vmatprep.subr.bf16.mxu0 %v2362
    %2394 = vmatpush1.bf16.msra.mxu0 %v2361
    %2395 = vmatprep.subr.bf16.mxu0 %v2359
    %2396 = vmatpush1.bf16.msra.mxu0 %v2358
    %2397 = vmatprep.subr.bf16.mxu0 %v2356
    %2398 = vmatpush1.bf16.msra.mxu0 %v2355
    %2399 = vmatprep.subr.bf16.mxu0 %v2353
    %2400 = vmatpush1.bf16.msra.mxu0 %v2352
    %2401 = vmatprep.subr.bf16.mxu0 %v2350
    %2402 = vmatpush1.bf16.msra.mxu0 %v2349
    %2403 = vmatprep.subr.bf16.mxu0 %v2347
    %2404 = vmatpush1.bf16.msra.mxu0 %v2346
    %2405 = vmatprep.subr.bf16.mxu0 %v2344
    %2406 = vmatpush1.bf16.msra.mxu0 %v2343
    %2407 = vmatprep.subr.bf16.mxu0 0
    %2408 = vmatpush2.bf16.msra.mxu0 0
    %2409 = vmatprep.subr.bf16.mxu0 0
    %2410 = vmatpush2.bf16.msra.mxu0 0
    %2411 = vmatprep.subr.bf16.mxu0 0
    %2412 = vmatpush2.bf16.msra.mxu0 0
    %2413 = vmatprep.subr.bf16.mxu0 0
    %2414 = vmatpush2.bf16.msra.mxu0 0
    %2415 = vmatprep.subr.bf16.mxu0 0
    %2416 = vmatpush2.bf16.msra.mxu0 0
    %2417 = vmatprep.subr.bf16.mxu0 0
    %2418 = vmatpush2.bf16.msra.mxu0 0
    %2419 = vmatprep.subr.bf16.mxu0 0
    %2420 = vmatpush2.bf16.msra.mxu0 0
    %2421 = vmatprep.subr.bf16.mxu0 0
    %2422 = vmatpush2.bf16.msra.mxu0 0
    %2423 = vmatprep.mubr.bf16.mxu0 0
    %2424 = vmatmul.mubr.bf16.gmra.mxu0 %v2247
    %v2425 = vpop.f32.mrf.mxu0
    %v2426 = vadd.f32 %v2203, %v2425
    %v2427 = vpop.f32.mrf.mxu0
    %v2428 = vadd.f32 %v2207, %v2427
    %v2429 = vpop.f32.mrf.mxu0
    %v2430 = vadd.f32 %v2203, %v2429
    %v2431 = vpop.f32.mrf.mxu0
    %v2432 = vadd.f32 %v2207, %v2431
    %2433 = vmatprep.mubr.bf16.mxu0 0
    %2434 = vmatmul.mubr.bf16.gmra.mxu0 %v2248
    %v2435 = vpop.f32.mrf.mxu0
    %v2436 = vadd.f32 %v2203, %v2435
    %v2437 = vpop.f32.mrf.mxu0
    %v2438 = vadd.f32 %v2207, %v2437
    %v2439 = vpop.f32.mrf.mxu0
    %v2440 = vadd.f32 %v2203, %v2439
    %v2441 = vpop.f32.mrf.mxu0
    %v2442 = vadd.f32 %v2207, %v2441
    %2443 = vmatprep.mubr.bf16.mxu0 0
    %2444 = vmatmul.mubr.bf16.gmra.mxu0 %v2249
    %v2445 = vpop.f32.mrf.mxu0
    %v2446 = vadd.f32 %v2203, %v2445
    %v2447 = vpop.f32.mrf.mxu0
    %v2448 = vadd.f32 %v2207, %v2447
    %v2449 = vpop.f32.mrf.mxu0
    %v2450 = vadd.f32 %v2203, %v2449
    %v2451 = vpop.f32.mrf.mxu0
    %v2452 = vadd.f32 %v2207, %v2451
    %2453 = vmatprep.mubr.bf16.mxu0 0
    %2454 = vmatmul.mubr.bf16.gmra.mxu0 %v2250
    %v2455 = vpop.f32.mrf.mxu0
    %v2456 = vadd.f32 %v2203, %v2455
    %v2457 = vpop.f32.mrf.mxu0
    %v2458 = vadd.f32 %v2207, %v2457
    %v2459 = vpop.f32.mrf.mxu0
    %v2460 = vadd.f32 %v2203, %v2459
    %v2461 = vpop.f32.mrf.mxu0
    %v2462 = vadd.f32 %v2207, %v2461
    %2463 = vmatprep.mubr.bf16.mxu0 0
    %2464 = vmatmul.mubr.bf16.gmra.mxu0 %v2251
    %v2465 = vpop.f32.mrf.mxu0
    %v2466 = vadd.f32 %v2203, %v2465
    %v2467 = vpop.f32.mrf.mxu0
    %v2468 = vadd.f32 %v2207, %v2467
    %v2469 = vpop.f32.mrf.mxu0
    %v2470 = vadd.f32 %v2203, %v2469
    %v2471 = vpop.f32.mrf.mxu0
    %v2472 = vadd.f32 %v2207, %v2471
    %2473 = vmatprep.mubr.bf16.mxu0 0
    %2474 = vmatmul.mubr.bf16.gmra.mxu0 %v2252
    %v2475 = vpop.f32.mrf.mxu0
    %v2476 = vadd.f32 %v2203, %v2475
    %v2477 = vpop.f32.mrf.mxu0
    %v2478 = vadd.f32 %v2207, %v2477
    %v2479 = vpop.f32.mrf.mxu0
    %v2480 = vadd.f32 %v2203, %v2479
    %v2481 = vpop.f32.mrf.mxu0
    %v2482 = vadd.f32 %v2207, %v2481
    %2483 = vmatprep.mubr.bf16.mxu0 0
    %2484 = vmatmul.mubr.bf16.gmra.mxu0 %v2253
    %v2485 = vpop.f32.mrf.mxu0
    %v2486 = vadd.f32 %v2203, %v2485
    %v2487 = vpop.f32.mrf.mxu0
    %v2488 = vadd.f32 %v2207, %v2487
    %v2489 = vpop.f32.mrf.mxu0
    %v2490 = vadd.f32 %v2203, %v2489
    %v2491 = vpop.f32.mrf.mxu0
    %v2492 = vadd.f32 %v2207, %v2491
    %2493 = vmatprep.mubr.bf16.mxu0 0
    %2494 = vmatmul.mubr.bf16.gmra.mxu0 %v2254
    %v2495 = vpop.f32.mrf.mxu0
    %v2496 = vadd.f32 %v2203, %v2495
    %v2497 = vpop.f32.mrf.mxu0
    %v2498 = vadd.f32 %v2207, %v2497
    %v2499 = vpop.f32.mrf.mxu0
    %v2500 = vadd.f32 %v2203, %v2499
    %v2501 = vpop.f32.mrf.mxu0
    %v2502 = vadd.f32 %v2207, %v2501
    %2503 = vdwg.mxu0
    %2504 = vmatprep.subr.bf16.mxu0 0
    %2505 = vmatpush1.bf16.msra.mxu0 %v2366
    %2506 = vmatprep.subr.bf16.mxu0 0
    %2507 = vmatpush1.bf16.msra.mxu0 %v2363
    %2508 = vmatprep.subr.bf16.mxu0 0
    %2509 = vmatpush1.bf16.msra.mxu0 %v2360
    %2510 = vmatprep.subr.bf16.mxu0 0
    %2511 = vmatpush1.bf16.msra.mxu0 %v2357
    %2512 = vmatprep.subr.bf16.mxu0 0
    %2513 = vmatpush1.bf16.msra.mxu0 %v2354
    %2514 = vmatprep.subr.bf16.mxu0 0
    %2515 = vmatpush1.bf16.msra.mxu0 %v2351
    %2516 = vmatprep.subr.bf16.mxu0 0
    %2517 = vmatpush1.bf16.msra.mxu0 %v2348
    %2518 = vmatprep.subr.bf16.mxu0 0
    %2519 = vmatpush1.bf16.msra.mxu0 %v2345
    %2520 = vmatprep.subr.bf16.mxu0 0
    %2521 = vmatpush2.bf16.msra.mxu0 0
    %2522 = vmatprep.subr.bf16.mxu0 0
    %2523 = vmatpush2.bf16.msra.mxu0 0
    %2524 = vmatprep.subr.bf16.mxu0 0
    %2525 = vmatpush2.bf16.msra.mxu0 0
    %2526 = vmatprep.subr.bf16.mxu0 0
    %2527 = vmatpush2.bf16.msra.mxu0 0
    %2528 = vmatprep.subr.bf16.mxu0 0
    %2529 = vmatpush2.bf16.msra.mxu0 0
    %2530 = vmatprep.subr.bf16.mxu0 0
    %2531 = vmatpush2.bf16.msra.mxu0 0
    %2532 = vmatprep.subr.bf16.mxu0 0
    %2533 = vmatpush2.bf16.msra.mxu0 0
    %2534 = vmatprep.subr.bf16.mxu0 0
    %2535 = vmatpush2.bf16.msra.mxu0 0
    %2536 = vmatprep.mubr.bf16.mxu0 0
    %2537 = vmatmul.mubr.bf16.gmra.mxu0 %v2247
    %v2538 = vpop.f32.mrf.mxu0
    %v2539 = vadd.f32 %v2211, %v2538
    %v2540 = vpop.f32.mrf.mxu0
    %v2541 = vpop.f32.mrf.mxu0
    %v2542 = vadd.f32 %v2211, %v2541
    %v2543 = vpop.f32.mrf.mxu0
    %2544 = vmatprep.mubr.bf16.mxu0 0
    %2545 = vmatmul.mubr.bf16.gmra.mxu0 %v2248
    %v2546 = vpop.f32.mrf.mxu0
    %v2547 = vadd.f32 %v2211, %v2546
    %v2548 = vpop.f32.mrf.mxu0
    %v2549 = vpop.f32.mrf.mxu0
    %v2550 = vadd.f32 %v2211, %v2549
    %v2551 = vpop.f32.mrf.mxu0
    %2552 = vmatprep.mubr.bf16.mxu0 0
    %2553 = vmatmul.mubr.bf16.gmra.mxu0 %v2249
    %v2554 = vpop.f32.mrf.mxu0
    %v2555 = vadd.f32 %v2211, %v2554
    %v2556 = vpop.f32.mrf.mxu0
    %v2557 = vpop.f32.mrf.mxu0
    %v2558 = vadd.f32 %v2211, %v2557
    %v2559 = vpop.f32.mrf.mxu0
    %2560 = vmatprep.mubr.bf16.mxu0 0
    %2561 = vmatmul.mubr.bf16.gmra.mxu0 %v2250
    %v2562 = vpop.f32.mrf.mxu0
    %v2563 = vadd.f32 %v2211, %v2562
    %v2564 = vpop.f32.mrf.mxu0
    %v2565 = vpop.f32.mrf.mxu0
    %v2566 = vadd.f32 %v2211, %v2565
    %v2567 = vpop.f32.mrf.mxu0
    %2568 = vmatprep.mubr.bf16.mxu0 0
    %2569 = vmatmul.mubr.bf16.gmra.mxu0 %v2251
    %v2570 = vpop.f32.mrf.mxu0
    %v2571 = vadd.f32 %v2211, %v2570
    %v2572 = vpop.f32.mrf.mxu0
    %v2573 = vpop.f32.mrf.mxu0
    %v2574 = vadd.f32 %v2211, %v2573
    %v2575 = vpop.f32.mrf.mxu0
    %2576 = vmatprep.mubr.bf16.mxu0 0
    %2577 = vmatmul.mubr.bf16.gmra.mxu0 %v2252
    %v2578 = vpop.f32.mrf.mxu0
    %v2579 = vadd.f32 %v2211, %v2578
    %v2580 = vpop.f32.mrf.mxu0
    %v2581 = vpop.f32.mrf.mxu0
    %v2582 = vadd.f32 %v2211, %v2581
    %v2583 = vpop.f32.mrf.mxu0
    %2584 = vmatprep.mubr.bf16.mxu0 0
    %2585 = vmatmul.mubr.bf16.gmra.mxu0 %v2253
    %v2586 = vpop.f32.mrf.mxu0
    %v2587 = vadd.f32 %v2211, %v2586
    %v2588 = vpop.f32.mrf.mxu0
    %v2589 = vpop.f32.mrf.mxu0
    %v2590 = vadd.f32 %v2211, %v2589
    %v2591 = vpop.f32.mrf.mxu0
    %2592 = vmatprep.mubr.bf16.mxu0 0
    %2593 = vmatmul.mubr.bf16.gmra.mxu0 %v2254
    %v2594 = vpop.f32.mrf.mxu0
    %v2595 = vadd.f32 %v2211, %v2594
    %v2596 = vpop.f32.mrf.mxu0
    %v2597 = vpop.f32.mrf.mxu0
    %v2598 = vadd.f32 %v2211, %v2597
    %v2599 = vpop.f32.mrf.mxu0
    %2600 = vdwg.mxu0
    %v2601 = vpack.c.bf16 %v2430, %v2426
    %v2602 = vpack.c.bf16 %v2432, %v2428
    %v2603 = vpack.c.bf16 %v2542, %v2539
    %v2604 = vpack.c.bf16 %v2440, %v2436
    %v2605 = vpack.c.bf16 %v2442, %v2438
    %v2606 = vpack.c.bf16 %v2550, %v2547
    %v2607 = vpack.c.bf16 %v2450, %v2446
    %v2608 = vpack.c.bf16 %v2452, %v2448
    %v2609 = vpack.c.bf16 %v2558, %v2555
    %v2610 = vpack.c.bf16 %v2460, %v2456
    %v2611 = vpack.c.bf16 %v2462, %v2458
    %v2612 = vpack.c.bf16 %v2566, %v2563
    %v2613 = vpack.c.bf16 %v2470, %v2466
    %v2614 = vpack.c.bf16 %v2472, %v2468
    %v2615 = vpack.c.bf16 %v2574, %v2571
    %v2616 = vpack.c.bf16 %v2480, %v2476
    %v2617 = vpack.c.bf16 %v2482, %v2478
    %v2618 = vpack.c.bf16 %v2582, %v2579
    %v2619 = vpack.c.bf16 %v2490, %v2486
    %v2620 = vpack.c.bf16 %v2492, %v2488
    %v2621 = vpack.c.bf16 %v2590, %v2587
    %v2622 = vpack.c.bf16 %v2500, %v2496
    %v2623 = vpack.c.bf16 %v2502, %v2498
    %v2624 = vpack.c.bf16 %v2598, %v2595
    %v2649 = vunpack.c.l.b16 %v2601
    %v2650 = vunpack.c.l.b16 %v2602
    %v2651 = vunpack.c.l.b16 %v2603
    %v2652 = vunpack.c.h.b16 %v2601
    %v2653 = vunpack.c.h.b16 %v2602
    %v2654 = vunpack.c.h.b16 %v2603
    %v2655 = vunpack.c.l.b16 %v2604
    %v2656 = vunpack.c.l.b16 %v2605
    %v2657 = vunpack.c.l.b16 %v2606
    %v2658 = vunpack.c.h.b16 %v2604
    %v2659 = vunpack.c.h.b16 %v2605
    %v2660 = vunpack.c.h.b16 %v2606
    %v2661 = vunpack.c.l.b16 %v2607
    %v2662 = vunpack.c.l.b16 %v2608
    %v2663 = vunpack.c.l.b16 %v2609
    %v2664 = vunpack.c.h.b16 %v2607
    %v2665 = vunpack.c.h.b16 %v2608
    %v2666 = vunpack.c.h.b16 %v2609
    %v2667 = vunpack.c.l.b16 %v2610
    %v2668 = vunpack.c.l.b16 %v2611
    %v2669 = vunpack.c.l.b16 %v2612
    %v2670 = vunpack.c.h.b16 %v2610
    %v2671 = vunpack.c.h.b16 %v2611
    %v2672 = vunpack.c.h.b16 %v2612
    %v2673 = vunpack.c.l.b16 %v2613
    %v2674 = vunpack.c.l.b16 %v2614
    %v2675 = vunpack.c.l.b16 %v2615
    %v2676 = vunpack.c.h.b16 %v2613
    %v2677 = vunpack.c.h.b16 %v2614
    %v2678 = vunpack.c.h.b16 %v2615
    %v2679 = vunpack.c.l.b16 %v2616
    %v2680 = vunpack.c.l.b16 %v2617
    %v2681 = vunpack.c.l.b16 %v2618
    %v2682 = vunpack.c.h.b16 %v2616
    %v2683 = vunpack.c.h.b16 %v2617
    %v2684 = vunpack.c.h.b16 %v2618
    %v2685 = vunpack.c.l.b16 %v2619
    %v2686 = vunpack.c.l.b16 %v2620
    %v2687 = vunpack.c.l.b16 %v2621
    %v2688 = vunpack.c.h.b16 %v2619
    %v2689 = vunpack.c.h.b16 %v2620
    %v2690 = vunpack.c.h.b16 %v2621
    %v2691 = vunpack.c.l.b16 %v2622
    %v2692 = vunpack.c.l.b16 %v2623
    %v2693 = vunpack.c.l.b16 %v2624
    %v2694 = vunpack.c.h.b16 %v2622
    %v2695 = vunpack.c.h.b16 %v2623
    %v2696 = vunpack.c.h.b16 %v2624
    %v2697 = vpack.c.b16 %v2650, %v2649
    %v2698 = vpack.c.b16 %v2651, %v2651
    %v2699 = vpack.c.b16 %v2653, %v2652
    %v2700 = vpack.c.b16 %v2654, %v2654
    %v2701 = vpack.c.b16 %v2656, %v2655
    %v2702 = vpack.c.b16 %v2657, %v2657
    %v2703 = vpack.c.b16 %v2659, %v2658
    %v2704 = vpack.c.b16 %v2660, %v2660
    %v2705 = vpack.c.b16 %v2662, %v2661
    %v2706 = vpack.c.b16 %v2663, %v2663
    %v2707 = vpack.c.b16 %v2665, %v2664
    %v2708 = vpack.c.b16 %v2666, %v2666
    %v2709 = vpack.c.b16 %v2668, %v2667
    %v2710 = vpack.c.b16 %v2669, %v2669
    %v2711 = vpack.c.b16 %v2671, %v2670
    %v2712 = vpack.c.b16 %v2672, %v2672
    %v2713 = vpack.c.b16 %v2674, %v2673
    %v2714 = vpack.c.b16 %v2675, %v2675
    %v2715 = vpack.c.b16 %v2677, %v2676
    %v2716 = vpack.c.b16 %v2678, %v2678
    %v2717 = vpack.c.b16 %v2680, %v2679
    %v2718 = vpack.c.b16 %v2681, %v2681
    %v2719 = vpack.c.b16 %v2683, %v2682
    %v2720 = vpack.c.b16 %v2684, %v2684
    %v2721 = vpack.c.b16 %v2686, %v2685
    %v2722 = vpack.c.b16 %v2687, %v2687
    %v2723 = vpack.c.b16 %v2689, %v2688
    %v2724 = vpack.c.b16 %v2690, %v2690
    %v2725 = vpack.c.b16 %v2692, %v2691
    %v2726 = vpack.c.b16 %v2693, %v2693
    %v2727 = vpack.c.b16 %v2695, %v2694
    %v2728 = vpack.c.b16 %v2696, %v2696
    %2761 = vst [vmem:[#allocation2] sm:$0xff] %v2697
    %2762 = vst [vmem:[#allocation2 + $0x8] sm:$0xf] %v2698
    %2763 = vst [vmem:[#allocation2 + $0xc] sm:$0xff] %v2699
    %2764 = vst [vmem:[#allocation2 + $0x14] sm:$0xf] %v2700
    %2765 = vst [vmem:[#allocation2 + $0x18] sm:$0xff] %v2701
    %2766 = vst [vmem:[#allocation2 + $0x20] sm:$0xf] %v2702
    %2767 = vst [vmem:[#allocation2 + $0x24] sm:$0xff] %v2703
    %2768 = vst [vmem:[#allocation2 + $0x2c] sm:$0xf] %v2704
    %2769 = vst [vmem:[#allocation2 + $0x30] sm:$0xff] %v2705
    %2770 = vst [vmem:[#allocation2 + $0x38] sm:$0xf] %v2706
    %2771 = vst [vmem:[#allocation2 + $0x3c] sm:$0xff] %v2707
    %2772 = vst [vmem:[#allocation2 + $0x44] sm:$0xf] %v2708
    %2773 = vst [vmem:[#allocation2 + $0x48] sm:$0xff] %v2709
    %2774 = vst [vmem:[#allocation2 + $0x50] sm:$0xf] %v2710
    %2775 = vst [vmem:[#allocation2 + $0x54] sm:$0xff] %v2711
    %2776 = vst [vmem:[#allocation2 + $0x5c] sm:$0xf] %v2712
    %2777 = vst [vmem:[#allocation2 + $0x60] sm:$0xff] %v2713
    %2778 = vst [vmem:[#allocation2 + $0x68] sm:$0xf] %v2714
    %2779 = vst [vmem:[#allocation2 + $0x6c] sm:$0xff] %v2715
    %2780 = vst [vmem:[#allocation2 + $0x74] sm:$0xf] %v2716
    %2781 = vst [vmem:[#allocation2 + $0x78] sm:$0xff] %v2717
    %2782 = vst [vmem:[#allocation2 + $0x80] sm:$0xf] %v2718
    %2783 = vst [vmem:[#allocation2 + $0x84] sm:$0xff] %v2719
    %2784 = vst [vmem:[#allocation2 + $0x8c] sm:$0xf] %v2720
    %2785 = vst [vmem:[#allocation2 + $0x90] sm:$0xff] %v2721
    %2786 = vst [vmem:[#allocation2 + $0x98] sm:$0xf] %v2722
    %2787 = vst [vmem:[#allocation2 + $0x9c] sm:$0xff] %v2723
    %2788 = vst [vmem:[#allocation2 + $0xa4] sm:$0xf] %v2724
    %2789 = vst [vmem:[#allocation2 + $0xa8] sm:$0xff] %v2725
    %2790 = vst [vmem:[#allocation2 + $0xb0] sm:$0xf] %v2726
    %2791 = vst [vmem:[#allocation2 + $0xb4] sm:$0xff] %v2727
    %2792 = vst [vmem:[#allocation2 + $0xbc] sm:$0xf] %v2728
    %s2793 = scalar_lea.vmem [#allocation11], 192
    %v2794 = vld [vmem:[%s2793] sm:$0xff]
    %v2795 = vld [vmem:[%s2793 + $0x8] sm:$0xf]
    %v2796 = vld [vmem:[%s2793 + $0xc] sm:$0xff]
    %v2797 = vld [vmem:[%s2793 + $0x14] sm:$0xf]
    %v2798 = vld [vmem:[%s2793 + $0x18] sm:$0xff]
    %v2799 = vld [vmem:[%s2793 + $0x20] sm:$0xf]
    %v2800 = vld [vmem:[%s2793 + $0x24] sm:$0xff]
    %v2801 = vld [vmem:[%s2793 + $0x2c] sm:$0xf]
    %v2802 = vld [vmem:[%s2793 + $0x30] sm:$0xff]
    %v2803 = vld [vmem:[%s2793 + $0x38] sm:$0xf]
    %v2804 = vld [vmem:[%s2793 + $0x3c] sm:$0xff]
    %v2805 = vld [vmem:[%s2793 + $0x44] sm:$0xf]
    %v2806 = vld [vmem:[%s2793 + $0x48] sm:$0xff]
    %v2807 = vld [vmem:[%s2793 + $0x50] sm:$0xf]
    %v2808 = vld [vmem:[%s2793 + $0x54] sm:$0xff]
    %v2809 = vld [vmem:[%s2793 + $0x5c] sm:$0xf]
    %v2810 = vld [vmem:[%s2793 + $0x60] sm:$0xff]
    %v2811 = vld [vmem:[%s2793 + $0x68] sm:$0xf]
    %v2812 = vld [vmem:[%s2793 + $0x6c] sm:$0xff]
    %v2813 = vld [vmem:[%s2793 + $0x74] sm:$0xf]
    %v2814 = vld [vmem:[%s2793 + $0x78] sm:$0xff]
    %v2815 = vld [vmem:[%s2793 + $0x80] sm:$0xf]
    %v2816 = vld [vmem:[%s2793 + $0x84] sm:$0xff]
    %v2817 = vld [vmem:[%s2793 + $0x8c] sm:$0xf]
    %v2818 = vld [vmem:[%s2793 + $0x90] sm:$0xff]
    %v2819 = vld [vmem:[%s2793 + $0x98] sm:$0xf]
    %v2820 = vld [vmem:[%s2793 + $0x9c] sm:$0xff]
    %v2821 = vld [vmem:[%s2793 + $0xa4] sm:$0xf]
    %v2822 = vld [vmem:[%s2793 + $0xa8] sm:$0xff]
    %v2823 = vld [vmem:[%s2793 + $0xb0] sm:$0xf]
    %v2824 = vld [vmem:[%s2793 + $0xb4] sm:$0xff]
    %v2825 = vld [vmem:[%s2793 + $0xbc] sm:$0xf]
    %s2826 = scalar_lea.vmem %s5, 1
    %v2827 = vld [vmem:[%s2826] sm:$0x1]
    %v2829 = vlaneseq
    %v2830 = vshrl.u32 %v2829, 7
    %v2831 = vsub.s32 0, %v2830
    %v2832 = vrot.slane %v2827, %v2831
    %2834 = vst [vmem:[#allocation4] sm:$0xff] 0.0
    %2835 = vst [vmem:[#allocation4 + $0x8] sm:$0xff] 0.0
    %v2836 = vld [vmem:[#allocation4] sm:$0xff]
    %v2837 = vld [vmem:[#allocation4 + $0x8] sm:$0xff]
    %v2838 = vpack.c.bf16 %v2837, %v2836
    %v2871 = vunpack.c.l.b16 %v2794
    %v2872 = vunpack.c.h.b16 %v2794
    %v2873 = vunpack.c.l.b16 %v2795
    %v2874 = vunpack.c.l.b16 %v2796
    %v2875 = vunpack.c.h.b16 %v2796
    %v2876 = vunpack.c.l.b16 %v2797
    %v2877 = vunpack.c.l.b16 %v2798
    %v2878 = vunpack.c.h.b16 %v2798
    %v2879 = vunpack.c.l.b16 %v2799
    %v2880 = vunpack.c.l.b16 %v2800
    %v2881 = vunpack.c.h.b16 %v2800
    %v2882 = vunpack.c.l.b16 %v2801
    %v2883 = vunpack.c.l.b16 %v2802
    %v2884 = vunpack.c.h.b16 %v2802
    %v2885 = vunpack.c.l.b16 %v2803
    %v2886 = vunpack.c.l.b16 %v2804
    %v2887 = vunpack.c.h.b16 %v2804
    %v2888 = vunpack.c.l.b16 %v2805
    %v2889 = vunpack.c.l.b16 %v2806
    %v2890 = vunpack.c.h.b16 %v2806
    %v2891 = vunpack.c.l.b16 %v2807
    %v2892 = vunpack.c.l.b16 %v2808
    %v2893 = vunpack.c.h.b16 %v2808
    %v2894 = vunpack.c.l.b16 %v2809
    %v2895 = vunpack.c.l.b16 %v2810
    %v2896 = vunpack.c.h.b16 %v2810
    %v2897 = vunpack.c.l.b16 %v2811
    %v2898 = vunpack.c.l.b16 %v2812
    %v2899 = vunpack.c.h.b16 %v2812
    %v2900 = vunpack.c.l.b16 %v2813
    %v2901 = vunpack.c.l.b16 %v2814
    %v2902 = vunpack.c.h.b16 %v2814
    %v2903 = vunpack.c.l.b16 %v2815
    %v2904 = vunpack.c.l.b16 %v2816
    %v2905 = vunpack.c.h.b16 %v2816
    %v2906 = vunpack.c.l.b16 %v2817
    %v2907 = vunpack.c.l.b16 %v2818
    %v2908 = vunpack.c.h.b16 %v2818
    %v2909 = vunpack.c.l.b16 %v2819
    %v2910 = vunpack.c.l.b16 %v2820
    %v2911 = vunpack.c.h.b16 %v2820
    %v2912 = vunpack.c.l.b16 %v2821
    %v2913 = vunpack.c.l.b16 %v2822
    %v2914 = vunpack.c.h.b16 %v2822
    %v2915 = vunpack.c.l.b16 %v2823
    %v2916 = vunpack.c.l.b16 %v2824
    %v2917 = vunpack.c.h.b16 %v2824
    %v2918 = vunpack.c.l.b16 %v2825
    %v2919 = vpack.c.b16 %v2874, %v2871
    %v2920 = vpack.c.b16 %v2875, %v2872
    %v2921 = vpack.c.b16 %v2876, %v2873
    %v2922 = vpack.c.b16 %v2880, %v2877
    %v2923 = vpack.c.b16 %v2881, %v2878
    %v2924 = vpack.c.b16 %v2882, %v2879
    %v2925 = vpack.c.b16 %v2886, %v2883
    %v2926 = vpack.c.b16 %v2887, %v2884
    %v2927 = vpack.c.b16 %v2888, %v2885
    %v2928 = vpack.c.b16 %v2892, %v2889
    %v2929 = vpack.c.b16 %v2893, %v2890
    %v2930 = vpack.c.b16 %v2894, %v2891
    %v2931 = vpack.c.b16 %v2898, %v2895
    %v2932 = vpack.c.b16 %v2899, %v2896
    %v2933 = vpack.c.b16 %v2900, %v2897
    %v2934 = vpack.c.b16 %v2904, %v2901
    %v2935 = vpack.c.b16 %v2905, %v2902
    %v2936 = vpack.c.b16 %v2906, %v2903
    %v2937 = vpack.c.b16 %v2910, %v2907
    %v2938 = vpack.c.b16 %v2911, %v2908
    %v2939 = vpack.c.b16 %v2912, %v2909
    %v2940 = vpack.c.b16 %v2916, %v2913
    %v2941 = vpack.c.b16 %v2917, %v2914
    %v2942 = vpack.c.b16 %v2918, %v2915
    %2967 = vmatprep.subr.bf16.mxu0 %v2941
    %2968 = vmatpush1.bf16.msra.mxu0 %v2940
    %2969 = vmatprep.subr.bf16.mxu0 %v2938
    %2970 = vmatpush1.bf16.msra.mxu0 %v2937
    %2971 = vmatprep.subr.bf16.mxu0 %v2935
    %2972 = vmatpush1.bf16.msra.mxu0 %v2934
    %2973 = vmatprep.subr.bf16.mxu0 %v2932
    %2974 = vmatpush1.bf16.msra.mxu0 %v2931
    %2975 = vmatprep.subr.bf16.mxu0 %v2929
    %2976 = vmatpush1.bf16.msra.mxu0 %v2928
    %2977 = vmatprep.subr.bf16.mxu0 %v2926
    %2978 = vmatpush1.bf16.msra.mxu0 %v2925
    %2979 = vmatprep.subr.bf16.mxu0 %v2923
    %2980 = vmatpush1.bf16.msra.mxu0 %v2922
    %2981 = vmatprep.subr.bf16.mxu0 %v2920
    %2982 = vmatpush1.bf16.msra.mxu0 %v2919
    %2983 = vmatprep.subr.bf16.mxu0 0
    %2984 = vmatpush2.bf16.msra.mxu0 0
    %2985 = vmatprep.subr.bf16.mxu0 0
    %2986 = vmatpush2.bf16.msra.mxu0 0
    %2987 = vmatprep.subr.bf16.mxu0 0
    %2988 = vmatpush2.bf16.msra.mxu0 0
    %2989 = vmatprep.subr.bf16.mxu0 0
    %2990 = vmatpush2.bf16.msra.mxu0 0
    %2991 = vmatprep.subr.bf16.mxu0 0
    %2992 = vmatpush2.bf16.msra.mxu0 0
    %2993 = vmatprep.subr.bf16.mxu0 0
    %2994 = vmatpush2.bf16.msra.mxu0 0
    %2995 = vmatprep.subr.bf16.mxu0 0
    %2996 = vmatpush2.bf16.msra.mxu0 0
    %2997 = vmatprep.subr.bf16.mxu0 0
    %2998 = vmatpush2.bf16.msra.mxu0 0
    %2999 = vmatprep.mubr.bf16.mxu0 0
    %3000 = vmatmul.mubr.bf16.gmra.mxu0 %v2838
    %v3001 = vpop.f32.mrf.mxu0
    %v3002 = vadd.f32 0.0, %v3001
    %v3003 = vpop.f32.mrf.mxu0
    %v3004 = vadd.f32 0.0, %v3003
    %v3005 = vpop.f32.mrf.mxu0
    %v3006 = vadd.f32 0.0, %v3005
    %v3007 = vpop.f32.mrf.mxu0
    %v3008 = vadd.f32 0.0, %v3007
    %3009 = vdwg.mxu0
    %3010 = vmatprep.subr.bf16.mxu0 0
    %3011 = vmatpush1.bf16.msra.mxu0 %v2942
    %3012 = vmatprep.subr.bf16.mxu0 0
    %3013 = vmatpush1.bf16.msra.mxu0 %v2939
    %3014 = vmatprep.subr.bf16.mxu0 0
    %3015 = vmatpush1.bf16.msra.mxu0 %v2936
    %3016 = vmatprep.subr.bf16.mxu0 0
    %3017 = vmatpush1.bf16.msra.mxu0 %v2933
    %3018 = vmatprep.subr.bf16.mxu0 0
    %3019 = vmatpush1.bf16.msra.mxu0 %v2930
    %3020 = vmatprep.subr.bf16.mxu0 0
    %3021 = vmatpush1.bf16.msra.mxu0 %v2927
    %3022 = vmatprep.subr.bf16.mxu0 0
    %3023 = vmatpush1.bf16.msra.mxu0 %v2924
    %3024 = vmatprep.subr.bf16.mxu0 0
    %3025 = vmatpush1.bf16.msra.mxu0 %v2921
    %3026 = vmatprep.subr.bf16.mxu0 0
    %3027 = vmatpush2.bf16.msra.mxu0 0
    %3028 = vmatprep.subr.bf16.mxu0 0
    %3029 = vmatpush2.bf16.msra.mxu0 0
    %3030 = vmatprep.subr.bf16.mxu0 0
    %3031 = vmatpush2.bf16.msra.mxu0 0
    %3032 = vmatprep.subr.bf16.mxu0 0
    %3033 = vmatpush2.bf16.msra.mxu0 0
    %3034 = vmatprep.subr.bf16.mxu0 0
    %3035 = vmatpush2.bf16.msra.mxu0 0
    %3036 = vmatprep.subr.bf16.mxu0 0
    %3037 = vmatpush2.bf16.msra.mxu0 0
    %3038 = vmatprep.subr.bf16.mxu0 0
    %3039 = vmatpush2.bf16.msra.mxu0 0
    %3040 = vmatprep.subr.bf16.mxu0 0
    %3041 = vmatpush2.bf16.msra.mxu0 0
    %3042 = vmatprep.mubr.bf16.mxu0 0
    %3043 = vmatmul.mubr.bf16.gmra.mxu0 %v2838
    %v3044 = vpop.f32.mrf.mxu0
    %v3045 = vadd.f32 0.0, %v3044
    %v3046 = vpop.f32.mrf.mxu0
    %v3047 = vpop.f32.mrf.mxu0
    %v3048 = vadd.f32 0.0, %v3047
    %v3049 = vpop.f32.mrf.mxu0
    %3050 = vdwg.mxu0
    %v3051 = vld [vmem:[#allocation2] sm:$0xff]
    %v3052 = vld [vmem:[#allocation2 + $0x8] sm:$0xf]
    %v3053 = vld [vmem:[#allocation2 + $0xc] sm:$0xff]
    %v3054 = vld [vmem:[#allocation2 + $0x14] sm:$0xf]
    %v3055 = vunpack.c.l.bf16 %v3051
    %v3056 = vunpack.c.h.bf16 %v3051
    %v3057 = vunpack.c.l.bf16 %v3052
    %v3058 = vunpack.c.l.bf16 %v3053
    %v3059 = vunpack.c.h.bf16 %v3053
    %v3060 = vunpack.c.l.bf16 %v3054
    %v3061 = vadd.f32 %v3055, %v3002
    %v3062 = vadd.f32 %v3056, %v3004
    %v3063 = vadd.f32 %v3058, %v3006
    %v3064 = vadd.f32 %v3059, %v3008
    %v3065 = vxor.u32 %v3061, 2147483648
    %v3066 = vxor.u32 %v3062, 2147483648
    %v3067 = vxor.u32 %v3063, 2147483648
    %v3068 = vxor.u32 %v3064, 2147483648
    %v3069 = vmul.f32 %v3065, 1.442695
    %v3070 = vpow.pop %v3069
    %v3071 = vmul.f32 %v3066, 1.442695
    %v3072 = vpow.pop %v3071
    %v3073 = vmul.f32 %v3067, 1.442695
    %v3074 = vpow.pop %v3073
    %v3075 = vmul.f32 %v3068, 1.442695
    %v3076 = vpow.pop %v3075
    %v3077 = vadd.f32 %v3070, 1.0
    %v3078 = vadd.f32 %v3072, 1.0
    %v3079 = vadd.f32 %v3074, 1.0
    %v3080 = vadd.f32 %v3076, 1.0
    %v3081 = vrcp.pop %v3077
    %v3082 = vmul.f32 1.0, %v3081
    %v3083 = vrcp.pop %v3078
    %v3084 = vmul.f32 1.0, %v3083
    %v3085 = vrcp.pop %v3079
    %v3086 = vmul.f32 1.0, %v3085
    %v3087 = vrcp.pop %v3080
    %v3088 = vmul.f32 1.0, %v3087
    %v3089 = vadd.f32 %v3045, %v2832
    %v3090 = vadd.f32 %v3048, %v2832
    %v3091 = vmul.f32 %v3082, %v3089
    %v3092 = vmul.f32 %v3086, %v3090
    %v3093 = vadd.f32 %v3057, %v3091
    %v3094 = vadd.f32 %v3060, %v3092
    %v3095 = vtanh.pop %v3093
    %v3096 = vtanh.pop %v3094
    %v3097 = vsub.f32 1.0, %v3084
    %v3098 = vsub.f32 1.0, %v3088
    %v3099 = vmul.f32 %v3097, %v3095
    %v3100 = vmul.f32 %v3098, %v3096
    %v3101 = vmul.f32 %v3084, %v2836
    %v3102 = vmul.f32 %v3088, %v2837
    %v3103 = vadd.f32 %v3099, %v3101
    %v3104 = vadd.f32 %v3100, %v3102
    %3105 = vst [vmem:[#allocation4] sm:$0xff] %v3103
    %3106 = vst [vmem:[#allocation4 + $0x8] sm:$0xff] %v3104
    %v3107 = vld [vmem:[#allocation4] sm:$0xff]
    %v3108 = vld [vmem:[#allocation4 + $0x8] sm:$0xff]
    %v3109 = vpack.c.bf16 %v3108, %v3107
    %3110 = vmatprep.subr.bf16.mxu0 %v2941
    %3111 = vmatpush1.bf16.msra.mxu0 %v2940
    %3112 = vmatprep.subr.bf16.mxu0 %v2938
    %3113 = vmatpush1.bf16.msra.mxu0 %v2937
    %3114 = vmatprep.subr.bf16.mxu0 %v2935
    %3115 = vmatpush1.bf16.msra.mxu0 %v2934
    %3116 = vmatprep.subr.bf16.mxu0 %v2932
    %3117 = vmatpush1.bf16.msra.mxu0 %v2931
    %3118 = vmatprep.subr.bf16.mxu0 %v2929
    %3119 = vmatpush1.bf16.msra.mxu0 %v2928
    %3120 = vmatprep.subr.bf16.mxu0 %v2926
    %3121 = vmatpush1.bf16.msra.mxu0 %v2925
    %3122 = vmatprep.subr.bf16.mxu0 %v2923
    %3123 = vmatpush1.bf16.msra.mxu0 %v2922
    %3124 = vmatprep.subr.bf16.mxu0 %v2920
    %3125 = vmatpush1.bf16.msra.mxu0 %v2919
    %3126 = vmatprep.subr.bf16.mxu0 0
    %3127 = vmatpush2.bf16.msra.mxu0 0
    %3128 = vmatprep.subr.bf16.mxu0 0
    %3129 = vmatpush2.bf16.msra.mxu0 0
    %3130 = vmatprep.subr.bf16.mxu0 0
    %3131 = vmatpush2.bf16.msra.mxu0 0
    %3132 = vmatprep.subr.bf16.mxu0 0
    %3133 = vmatpush2.bf16.msra.mxu0 0
    %3134 = vmatprep.subr.bf16.mxu0 0
    %3135 = vmatpush2.bf16.msra.mxu0 0
    %3136 = vmatprep.subr.bf16.mxu0 0
    %3137 = vmatpush2.bf16.msra.mxu0 0
    %3138 = vmatprep.subr.bf16.mxu0 0
    %3139 = vmatpush2.bf16.msra.mxu0 0
    %3140 = vmatprep.subr.bf16.mxu0 0
    %3141 = vmatpush2.bf16.msra.mxu0 0
    %3142 = vmatprep.mubr.bf16.mxu0 0
    %3143 = vmatmul.mubr.bf16.gmra.mxu0 %v3109
    %v3144 = vpop.f32.mrf.mxu0
    %v3145 = vadd.f32 0.0, %v3144
    %v3146 = vpop.f32.mrf.mxu0
    %v3147 = vadd.f32 0.0, %v3146
    %v3148 = vpop.f32.mrf.mxu0
    %v3149 = vadd.f32 0.0, %v3148
    %v3150 = vpop.f32.mrf.mxu0
    %v3151 = vadd.f32 0.0, %v3150
    %3152 = vdwg.mxu0
    %3153 = vmatprep.subr.bf16.mxu0 0
    %3154 = vmatpush1.bf16.msra.mxu0 %v2942
    %3155 = vmatprep.subr.bf16.mxu0 0
    %3156 = vmatpush1.bf16.msra.mxu0 %v2939
    %3157 = vmatprep.subr.bf16.mxu0 0
    %3158 = vmatpush1.bf16.msra.mxu0 %v2936
    %3159 = vmatprep.subr.bf16.mxu0 0
    %3160 = vmatpush1.bf16.msra.mxu0 %v2933
    %3161 = vmatprep.subr.bf16.mxu0 0
    %3162 = vmatpush1.bf16.msra.mxu0 %v2930
    %3163 = vmatprep.subr.bf16.mxu0 0
    %3164 = vmatpush1.bf16.msra.mxu0 %v2927
    %3165 = vmatprep.subr.bf16.mxu0 0
    %3166 = vmatpush1.bf16.msra.mxu0 %v2924
    %3167 = vmatprep.subr.bf16.mxu0 0
    %3168 = vmatpush1.bf16.msra.mxu0 %v2921
    %3169 = vmatprep.subr.bf16.mxu0 0
    %3170 = vmatpush2.bf16.msra.mxu0 0
    %3171 = vmatprep.subr.bf16.mxu0 0
    %3172 = vmatpush2.bf16.msra.mxu0 0
    %3173 = vmatprep.subr.bf16.mxu0 0
    %3174 = vmatpush2.bf16.msra.mxu0 0
    %3175 = vmatprep.subr.bf16.mxu0 0
    %3176 = vmatpush2.bf16.msra.mxu0 0
    %3177 = vmatprep.subr.bf16.mxu0 0
    %3178 = vmatpush2.bf16.msra.mxu0 0
    %3179 = vmatprep.subr.bf16.mxu0 0
    %3180 = vmatpush2.bf16.msra.mxu0 0
    %3181 = vmatprep.subr.bf16.mxu0 0
    %3182 = vmatpush2.bf16.msra.mxu0 0
    %3183 = vmatprep.subr.bf16.mxu0 0
    %3184 = vmatpush2.bf16.msra.mxu0 0
    %3185 = vmatprep.mubr.bf16.mxu0 0
    %3186 = vmatmul.mubr.bf16.gmra.mxu0 %v3109
    %v3187 = vpop.f32.mrf.mxu0
    %v3188 = vadd.f32 0.0, %v3187
    %v3189 = vpop.f32.mrf.mxu0
    %v3190 = vpop.f32.mrf.mxu0
    %v3191 = vadd.f32 0.0, %v3190
    %v3192 = vpop.f32.mrf.mxu0
    %3193 = vdwg.mxu0
    %v3194 = vld [vmem:[%s1151] sm:$0xff]
    %v3195 = vld [vmem:[%s1151 + $0x8] sm:$0xf]
    %v3196 = vld [vmem:[%s1151 + $0xc] sm:$0xff]
    %v3197 = vld [vmem:[%s1151 + $0x14] sm:$0xf]
    %v3198 = vunpack.c.l.bf16 %v3194
    %v3199 = vunpack.c.h.bf16 %v3194
    %v3200 = vunpack.c.l.bf16 %v3195
    %v3201 = vunpack.c.l.bf16 %v3196
    %v3202 = vunpack.c.h.bf16 %v3196
    %v3203 = vunpack.c.l.bf16 %v3197
    %v3204 = vadd.f32 %v3198, %v3145
    %v3205 = vadd.f32 %v3199, %v3147
    %v3206 = vadd.f32 %v3201, %v3149
    %v3207 = vadd.f32 %v3202, %v3151
    %v3208 = vxor.u32 %v3204, 2147483648
    %v3209 = vxor.u32 %v3205, 2147483648
    %v3210 = vxor.u32 %v3206, 2147483648
    %v3211 = vxor.u32 %v3207, 2147483648
    %v3212 = vmul.f32 %v3208, 1.442695
    %v3213 = vpow.pop %v3212
    %v3214 = vmul.f32 %v3209, 1.442695
    %v3215 = vpow.pop %v3214
    %v3216 = vmul.f32 %v3210, 1.442695
    %v3217 = vpow.pop %v3216
    %v3218 = vmul.f32 %v3211, 1.442695
    %v3219 = vpow.pop %v3218
    %v3220 = vadd.f32 %v3213, 1.0
    %v3221 = vadd.f32 %v3215, 1.0
    %v3222 = vadd.f32 %v3217, 1.0
    %v3223 = vadd.f32 %v3219, 1.0
    %v3224 = vrcp.pop %v3220
    %v3225 = vmul.f32 1.0, %v3224
    %v3226 = vrcp.pop %v3221
    %v3227 = vmul.f32 1.0, %v3226
    %v3228 = vrcp.pop %v3222
    %v3229 = vmul.f32 1.0, %v3228
    %v3230 = vrcp.pop %v3223
    %v3231 = vmul.f32 1.0, %v3230
    %v3232 = vadd.f32 %v3188, %v2832
    %v3233 = vadd.f32 %v3191, %v2832
    %v3234 = vmul.f32 %v3225, %v3232
    %v3235 = vmul.f32 %v3229, %v3233
    %v3236 = vadd.f32 %v3200, %v3234
    %v3237 = vadd.f32 %v3203, %v3235
    %v3238 = vtanh.pop %v3236
    %v3239 = vtanh.pop %v3237
    %v3240 = vsub.f32 1.0, %v3227
    %v3241 = vsub.f32 1.0, %v3231
    %v3242 = vmul.f32 %v3240, %v3238
    %v3243 = vmul.f32 %v3241, %v3239
    %v3244 = vmul.f32 %v3227, %v3107
    %v3245 = vmul.f32 %v3231, %v3108
    %v3246 = vadd.f32 %v3242, %v3244
    %v3247 = vadd.f32 %v3243, %v3245
    %3248 = vst [vmem:[#allocation4] sm:$0xff] %v3246
    %3249 = vst [vmem:[#allocation4 + $0x8] sm:$0xff] %v3247
    %v3250 = vld [vmem:[#allocation4] sm:$0xff]
    %v3251 = vld [vmem:[#allocation4 + $0x8] sm:$0xff]
    %v3252 = vpack.c.bf16 %v3251, %v3250
    %3253 = vmatprep.subr.bf16.mxu0 %v2941
    %3254 = vmatpush1.bf16.msra.mxu0 %v2940
    %3255 = vmatprep.subr.bf16.mxu0 %v2938
    %3256 = vmatpush1.bf16.msra.mxu0 %v2937
    %3257 = vmatprep.subr.bf16.mxu0 %v2935
    %3258 = vmatpush1.bf16.msra.mxu0 %v2934
    %3259 = vmatprep.subr.bf16.mxu0 %v2932
    %3260 = vmatpush1.bf16.msra.mxu0 %v2931
    %3261 = vmatprep.subr.bf16.mxu0 %v2929
    %3262 = vmatpush1.bf16.msra.mxu0 %v2928
    %3263 = vmatprep.subr.bf16.mxu0 %v2926
    %3264 = vmatpush1.bf16.msra.mxu0 %v2925
    %3265 = vmatprep.subr.bf16.mxu0 %v2923
    %3266 = vmatpush1.bf16.msra.mxu0 %v2922
    %3267 = vmatprep.subr.bf16.mxu0 %v2920
    %3268 = vmatpush1.bf16.msra.mxu0 %v2919
    %3269 = vmatprep.subr.bf16.mxu0 0
    %3270 = vmatpush2.bf16.msra.mxu0 0
    %3271 = vmatprep.subr.bf16.mxu0 0
    %3272 = vmatpush2.bf16.msra.mxu0 0
    %3273 = vmatprep.subr.bf16.mxu0 0
    %3274 = vmatpush2.bf16.msra.mxu0 0
    %3275 = vmatprep.subr.bf16.mxu0 0
    %3276 = vmatpush2.bf16.msra.mxu0 0
    %3277 = vmatprep.subr.bf16.mxu0 0
    %3278 = vmatpush2.bf16.msra.mxu0 0
    %3279 = vmatprep.subr.bf16.mxu0 0
    %3280 = vmatpush2.bf16.msra.mxu0 0
    %3281 = vmatprep.subr.bf16.mxu0 0
    %3282 = vmatpush2.bf16.msra.mxu0 0
    %3283 = vmatprep.subr.bf16.mxu0 0
    %3284 = vmatpush2.bf16.msra.mxu0 0
    %3285 = vmatprep.mubr.bf16.mxu0 0
    %3286 = vmatmul.mubr.bf16.gmra.mxu0 %v3252
    %v3287 = vpop.f32.mrf.mxu0
    %v3288 = vadd.f32 0.0, %v3287
    %v3289 = vpop.f32.mrf.mxu0
    %v3290 = vadd.f32 0.0, %v3289
    %v3291 = vpop.f32.mrf.mxu0
    %v3292 = vadd.f32 0.0, %v3291
    %v3293 = vpop.f32.mrf.mxu0
    %v3294 = vadd.f32 0.0, %v3293
    %3295 = vdwg.mxu0
    %3296 = vmatprep.subr.bf16.mxu0 0
    %3297 = vmatpush1.bf16.msra.mxu0 %v2942
    %3298 = vmatprep.subr.bf16.mxu0 0
    %3299 = vmatpush1.bf16.msra.mxu0 %v2939
    %3300 = vmatprep.subr.bf16.mxu0 0
    %3301 = vmatpush1.bf16.msra.mxu0 %v2936
    %3302 = vmatprep.subr.bf16.mxu0 0
    %3303 = vmatpush1.bf16.msra.mxu0 %v2933
    %3304 = vmatprep.subr.bf16.mxu0 0
    %3305 = vmatpush1.bf16.msra.mxu0 %v2930
    %3306 = vmatprep.subr.bf16.mxu0 0
    %3307 = vmatpush1.bf16.msra.mxu0 %v2927
    %3308 = vmatprep.subr.bf16.mxu0 0
    %3309 = vmatpush1.bf16.msra.mxu0 %v2924
    %3310 = vmatprep.subr.bf16.mxu0 0
    %3311 = vmatpush1.bf16.msra.mxu0 %v2921
    %3312 = vmatprep.subr.bf16.mxu0 0
    %3313 = vmatpush2.bf16.msra.mxu0 0
    %3314 = vmatprep.subr.bf16.mxu0 0
    %3315 = vmatpush2.bf16.msra.mxu0 0
    %3316 = vmatprep.subr.bf16.mxu0 0
    %3317 = vmatpush2.bf16.msra.mxu0 0
    %3318 = vmatprep.subr.bf16.mxu0 0
    %3319 = vmatpush2.bf16.msra.mxu0 0
    %3320 = vmatprep.subr.bf16.mxu0 0
    %3321 = vmatpush2.bf16.msra.mxu0 0
    %3322 = vmatprep.subr.bf16.mxu0 0
    %3323 = vmatpush2.bf16.msra.mxu0 0
    %3324 = vmatprep.subr.bf16.mxu0 0
    %3325 = vmatpush2.bf16.msra.mxu0 0
    %3326 = vmatprep.subr.bf16.mxu0 0
    %3327 = vmatpush2.bf16.msra.mxu0 0
    %3328 = vmatprep.mubr.bf16.mxu0 0
    %3329 = vmatmul.mubr.bf16.gmra.mxu0 %v3252
    %v3330 = vpop.f32.mrf.mxu0
    %v3331 = vadd.f32 0.0, %v3330
    %v3332 = vpop.f32.mrf.mxu0
    %v3333 = vpop.f32.mrf.mxu0
    %v3334 = vadd.f32 0.0, %v3333
    %v3335 = vpop.f32.mrf.mxu0
    %3336 = vdwg.mxu0
    %v3337 = vld [vmem:[%s1306] sm:$0xff]
    %v3338 = vld [vmem:[%s1306 + $0x8] sm:$0xf]
    %v3339 = vld [vmem:[%s1306 + $0xc] sm:$0xff]
    %v3340 = vld [vmem:[%s1306 + $0x14] sm:$0xf]
    %v3341 = vunpack.c.l.bf16 %v3337
    %v3342 = vunpack.c.h.bf16 %v3337
    %v3343 = vunpack.c.l.bf16 %v3338
    %v3344 = vunpack.c.l.bf16 %v3339
    %v3345 = vunpack.c.h.bf16 %v3339
    %v3346 = vunpack.c.l.bf16 %v3340
    %v3347 = vadd.f32 %v3341, %v3288
    %v3348 = vadd.f32 %v3342, %v3290
    %v3349 = vadd.f32 %v3344, %v3292
    %v3350 = vadd.f32 %v3345, %v3294
    %v3351 = vxor.u32 %v3347, 2147483648
    %v3352 = vxor.u32 %v3348, 2147483648
    %v3353 = vxor.u32 %v3349, 2147483648
    %v3354 = vxor.u32 %v3350, 2147483648
    %v3355 = vmul.f32 %v3351, 1.442695
    %v3356 = vpow.pop %v3355
    %v3357 = vmul.f32 %v3352, 1.442695
    %v3358 = vpow.pop %v3357
    %v3359 = vmul.f32 %v3353, 1.442695
    %v3360 = vpow.pop %v3359
    %v3361 = vmul.f32 %v3354, 1.442695
    %v3362 = vpow.pop %v3361
    %v3363 = vadd.f32 %v3356, 1.0
    %v3364 = vadd.f32 %v3358, 1.0
    %v3365 = vadd.f32 %v3360, 1.0
    %v3366 = vadd.f32 %v3362, 1.0
    %v3367 = vrcp.pop %v3363
    %v3368 = vmul.f32 1.0, %v3367
    %v3369 = vrcp.pop %v3364
    %v3370 = vmul.f32 1.0, %v3369
    %v3371 = vrcp.pop %v3365
    %v3372 = vmul.f32 1.0, %v3371
    %v3373 = vrcp.pop %v3366
    %v3374 = vmul.f32 1.0, %v3373
    %v3375 = vadd.f32 %v3331, %v2832
    %v3376 = vadd.f32 %v3334, %v2832
    %v3377 = vmul.f32 %v3368, %v3375
    %v3378 = vmul.f32 %v3372, %v3376
    %v3379 = vadd.f32 %v3343, %v3377
    %v3380 = vadd.f32 %v3346, %v3378
    %v3381 = vtanh.pop %v3379
    %v3382 = vtanh.pop %v3380
    %v3383 = vsub.f32 1.0, %v3370
    %v3384 = vsub.f32 1.0, %v3374
    %v3385 = vmul.f32 %v3383, %v3381
    %v3386 = vmul.f32 %v3384, %v3382
    %v3387 = vmul.f32 %v3370, %v3250
    %v3388 = vmul.f32 %v3374, %v3251
    %v3389 = vadd.f32 %v3385, %v3387
    %v3390 = vadd.f32 %v3386, %v3388
    %3391 = vst [vmem:[#allocation4] sm:$0xff] %v3389
    %3392 = vst [vmem:[#allocation4 + $0x8] sm:$0xff] %v3390
    %v3393 = vld [vmem:[#allocation4] sm:$0xff]
    %v3394 = vld [vmem:[#allocation4 + $0x8] sm:$0xff]
    %v3395 = vpack.c.bf16 %v3394, %v3393
    %3396 = vmatprep.subr.bf16.mxu0 %v2941
    %3397 = vmatpush1.bf16.msra.mxu0 %v2940
    %3398 = vmatprep.subr.bf16.mxu0 %v2938
    %3399 = vmatpush1.bf16.msra.mxu0 %v2937
    %3400 = vmatprep.subr.bf16.mxu0 %v2935
    %3401 = vmatpush1.bf16.msra.mxu0 %v2934
    %3402 = vmatprep.subr.bf16.mxu0 %v2932
    %3403 = vmatpush1.bf16.msra.mxu0 %v2931
    %3404 = vmatprep.subr.bf16.mxu0 %v2929
    %3405 = vmatpush1.bf16.msra.mxu0 %v2928
    %3406 = vmatprep.subr.bf16.mxu0 %v2926
    %3407 = vmatpush1.bf16.msra.mxu0 %v2925
    %3408 = vmatprep.subr.bf16.mxu0 %v2923
    %3409 = vmatpush1.bf16.msra.mxu0 %v2922
    %3410 = vmatprep.subr.bf16.mxu0 %v2920
    %3411 = vmatpush1.bf16.msra.mxu0 %v2919
    %3412 = vmatprep.subr.bf16.mxu0 0
    %3413 = vmatpush2.bf16.msra.mxu0 0
    %3414 = vmatprep.subr.bf16.mxu0 0
    %3415 = vmatpush2.bf16.msra.mxu0 0
    %3416 = vmatprep.subr.bf16.mxu0 0
    %3417 = vmatpush2.bf16.msra.mxu0 0
    %3418 = vmatprep.subr.bf16.mxu0 0
    %3419 = vmatpush2.bf16.msra.mxu0 0
    %3420 = vmatprep.subr.bf16.mxu0 0
    %3421 = vmatpush2.bf16.msra.mxu0 0
    %3422 = vmatprep.subr.bf16.mxu0 0
    %3423 = vmatpush2.bf16.msra.mxu0 0
    %3424 = vmatprep.subr.bf16.mxu0 0
    %3425 = vmatpush2.bf16.msra.mxu0 0
    %3426 = vmatprep.subr.bf16.mxu0 0
    %3427 = vmatpush2.bf16.msra.mxu0 0
    %3428 = vmatprep.mubr.bf16.mxu0 0
    %3429 = vmatmul.mubr.bf16.gmra.mxu0 %v3395
    %v3430 = vpop.f32.mrf.mxu0
    %v3431 = vadd.f32 0.0, %v3430
    %v3432 = vpop.f32.mrf.mxu0
    %v3433 = vadd.f32 0.0, %v3432
    %v3434 = vpop.f32.mrf.mxu0
    %v3435 = vadd.f32 0.0, %v3434
    %v3436 = vpop.f32.mrf.mxu0
    %v3437 = vadd.f32 0.0, %v3436
    %3438 = vdwg.mxu0
    %3439 = vmatprep.subr.bf16.mxu0 0
    %3440 = vmatpush1.bf16.msra.mxu0 %v2942
    %3441 = vmatprep.subr.bf16.mxu0 0
    %3442 = vmatpush1.bf16.msra.mxu0 %v2939
    %3443 = vmatprep.subr.bf16.mxu0 0
    %3444 = vmatpush1.bf16.msra.mxu0 %v2936
    %3445 = vmatprep.subr.bf16.mxu0 0
    %3446 = vmatpush1.bf16.msra.mxu0 %v2933
    %3447 = vmatprep.subr.bf16.mxu0 0
    %3448 = vmatpush1.bf16.msra.mxu0 %v2930
    %3449 = vmatprep.subr.bf16.mxu0 0
    %3450 = vmatpush1.bf16.msra.mxu0 %v2927
    %3451 = vmatprep.subr.bf16.mxu0 0
    %3452 = vmatpush1.bf16.msra.mxu0 %v2924
    %3453 = vmatprep.subr.bf16.mxu0 0
    %3454 = vmatpush1.bf16.msra.mxu0 %v2921
    %3455 = vmatprep.subr.bf16.mxu0 0
    %3456 = vmatpush2.bf16.msra.mxu0 0
    %3457 = vmatprep.subr.bf16.mxu0 0
    %3458 = vmatpush2.bf16.msra.mxu0 0
    %3459 = vmatprep.subr.bf16.mxu0 0
    %3460 = vmatpush2.bf16.msra.mxu0 0
    %3461 = vmatprep.subr.bf16.mxu0 0
    %3462 = vmatpush2.bf16.msra.mxu0 0
    %3463 = vmatprep.subr.bf16.mxu0 0
    %3464 = vmatpush2.bf16.msra.mxu0 0
    %3465 = vmatprep.subr.bf16.mxu0 0
    %3466 = vmatpush2.bf16.msra.mxu0 0
    %3467 = vmatprep.subr.bf16.mxu0 0
    %3468 = vmatpush2.bf16.msra.mxu0 0
    %3469 = vmatprep.subr.bf16.mxu0 0
    %3470 = vmatpush2.bf16.msra.mxu0 0
    %3471 = vmatprep.mubr.bf16.mxu0 0
    %3472 = vmatmul.mubr.bf16.gmra.mxu0 %v3395
    %v3473 = vpop.f32.mrf.mxu0
    %v3474 = vadd.f32 0.0, %v3473
    %v3475 = vpop.f32.mrf.mxu0
    %v3476 = vpop.f32.mrf.mxu0
    %v3477 = vadd.f32 0.0, %v3476
    %v3478 = vpop.f32.mrf.mxu0
    %3479 = vdwg.mxu0
    %v3480 = vld [vmem:[%s1461] sm:$0xff]
    %v3481 = vld [vmem:[%s1461 + $0x8] sm:$0xf]
    %v3482 = vld [vmem:[%s1461 + $0xc] sm:$0xff]
    %v3483 = vld [vmem:[%s1461 + $0x14] sm:$0xf]
    %v3484 = vunpack.c.l.bf16 %v3480
    %v3485 = vunpack.c.h.bf16 %v3480
    %v3486 = vunpack.c.l.bf16 %v3481
    %v3487 = vunpack.c.l.bf16 %v3482
    %v3488 = vunpack.c.h.bf16 %v3482
    %v3489 = vunpack.c.l.bf16 %v3483
    %v3490 = vadd.f32 %v3484, %v3431
    %v3491 = vadd.f32 %v3485, %v3433
    %v3492 = vadd.f32 %v3487, %v3435
    %v3493 = vadd.f32 %v3488, %v3437
    %v3494 = vxor.u32 %v3490, 2147483648
    %v3495 = vxor.u32 %v3491, 2147483648
    %v3496 = vxor.u32 %v3492, 2147483648
    %v3497 = vxor.u32 %v3493, 2147483648
    %v3498 = vmul.f32 %v3494, 1.442695
    %v3499 = vpow.pop %v3498
    %v3500 = vmul.f32 %v3495, 1.442695
    %v3501 = vpow.pop %v3500
    %v3502 = vmul.f32 %v3496, 1.442695
    %v3503 = vpow.pop %v3502
    %v3504 = vmul.f32 %v3497, 1.442695
    %v3505 = vpow.pop %v3504
    %v3506 = vadd.f32 %v3499, 1.0
    %v3507 = vadd.f32 %v3501, 1.0
    %v3508 = vadd.f32 %v3503, 1.0
    %v3509 = vadd.f32 %v3505, 1.0
    %v3510 = vrcp.pop %v3506
    %v3511 = vmul.f32 1.0, %v3510
    %v3512 = vrcp.pop %v3507
    %v3513 = vmul.f32 1.0, %v3512
    %v3514 = vrcp.pop %v3508
    %v3515 = vmul.f32 1.0, %v3514
    %v3516 = vrcp.pop %v3509
    %v3517 = vmul.f32 1.0, %v3516
    %v3518 = vadd.f32 %v3474, %v2832
    %v3519 = vadd.f32 %v3477, %v2832
    %v3520 = vmul.f32 %v3511, %v3518
    %v3521 = vmul.f32 %v3515, %v3519
    %v3522 = vadd.f32 %v3486, %v3520
    %v3523 = vadd.f32 %v3489, %v3521
    %v3524 = vtanh.pop %v3522
    %v3525 = vtanh.pop %v3523
    %v3526 = vsub.f32 1.0, %v3513
    %v3527 = vsub.f32 1.0, %v3517
    %v3528 = vmul.f32 %v3526, %v3524
    %v3529 = vmul.f32 %v3527, %v3525
    %v3530 = vmul.f32 %v3513, %v3393
    %v3531 = vmul.f32 %v3517, %v3394
    %v3532 = vadd.f32 %v3528, %v3530
    %v3533 = vadd.f32 %v3529, %v3531
    %3534 = vst [vmem:[#allocation4] sm:$0xff] %v3532
    %3535 = vst [vmem:[#allocation4 + $0x8] sm:$0xff] %v3533
    %v3536 = vld [vmem:[#allocation4] sm:$0xff]
    %v3537 = vld [vmem:[#allocation4 + $0x8] sm:$0xff]
    %v3538 = vpack.c.bf16 %v3537, %v3536
    %3539 = vmatprep.subr.bf16.mxu0 %v2941
    %3540 = vmatpush1.bf16.msra.mxu0 %v2940
    %3541 = vmatprep.subr.bf16.mxu0 %v2938
    %3542 = vmatpush1.bf16.msra.mxu0 %v2937
    %3543 = vmatprep.subr.bf16.mxu0 %v2935
    %3544 = vmatpush1.bf16.msra.mxu0 %v2934
    %3545 = vmatprep.subr.bf16.mxu0 %v2932
    %3546 = vmatpush1.bf16.msra.mxu0 %v2931
    %3547 = vmatprep.subr.bf16.mxu0 %v2929
    %3548 = vmatpush1.bf16.msra.mxu0 %v2928
    %3549 = vmatprep.subr.bf16.mxu0 %v2926
    %3550 = vmatpush1.bf16.msra.mxu0 %v2925
    %3551 = vmatprep.subr.bf16.mxu0 %v2923
    %3552 = vmatpush1.bf16.msra.mxu0 %v2922
    %3553 = vmatprep.subr.bf16.mxu0 %v2920
    %3554 = vmatpush1.bf16.msra.mxu0 %v2919
    %3555 = vmatprep.subr.bf16.mxu0 0
    %3556 = vmatpush2.bf16.msra.mxu0 0
    %3557 = vmatprep.subr.bf16.mxu0 0
    %3558 = vmatpush2.bf16.msra.mxu0 0
    %3559 = vmatprep.subr.bf16.mxu0 0
    %3560 = vmatpush2.bf16.msra.mxu0 0
    %3561 = vmatprep.subr.bf16.mxu0 0
    %3562 = vmatpush2.bf16.msra.mxu0 0
    %3563 = vmatprep.subr.bf16.mxu0 0
    %3564 = vmatpush2.bf16.msra.mxu0 0
    %3565 = vmatprep.subr.bf16.mxu0 0
    %3566 = vmatpush2.bf16.msra.mxu0 0
    %3567 = vmatprep.subr.bf16.mxu0 0
    %3568 = vmatpush2.bf16.msra.mxu0 0
    %3569 = vmatprep.subr.bf16.mxu0 0
    %3570 = vmatpush2.bf16.msra.mxu0 0
    %3571 = vmatprep.mubr.bf16.mxu0 0
    %3572 = vmatmul.mubr.bf16.gmra.mxu0 %v3538
    %v3573 = vpop.f32.mrf.mxu0
    %v3574 = vadd.f32 0.0, %v3573
    %v3575 = vpop.f32.mrf.mxu0
    %v3576 = vadd.f32 0.0, %v3575
    %v3577 = vpop.f32.mrf.mxu0
    %v3578 = vadd.f32 0.0, %v3577
    %v3579 = vpop.f32.mrf.mxu0
    %v3580 = vadd.f32 0.0, %v3579
    %3581 = vdwg.mxu0
    %3582 = vmatprep.subr.bf16.mxu0 0
    %3583 = vmatpush1.bf16.msra.mxu0 %v2942
    %3584 = vmatprep.subr.bf16.mxu0 0
    %3585 = vmatpush1.bf16.msra.mxu0 %v2939
    %3586 = vmatprep.subr.bf16.mxu0 0
    %3587 = vmatpush1.bf16.msra.mxu0 %v2936
    %3588 = vmatprep.subr.bf16.mxu0 0
    %3589 = vmatpush1.bf16.msra.mxu0 %v2933
    %3590 = vmatprep.subr.bf16.mxu0 0
    %3591 = vmatpush1.bf16.msra.mxu0 %v2930
    %3592 = vmatprep.subr.bf16.mxu0 0
    %3593 = vmatpush1.bf16.msra.mxu0 %v2927
    %3594 = vmatprep.subr.bf16.mxu0 0
    %3595 = vmatpush1.bf16.msra.mxu0 %v2924
    %3596 = vmatprep.subr.bf16.mxu0 0
    %3597 = vmatpush1.bf16.msra.mxu0 %v2921
    %3598 = vmatprep.subr.bf16.mxu0 0
    %3599 = vmatpush2.bf16.msra.mxu0 0
    %3600 = vmatprep.subr.bf16.mxu0 0
    %3601 = vmatpush2.bf16.msra.mxu0 0
    %3602 = vmatprep.subr.bf16.mxu0 0
    %3603 = vmatpush2.bf16.msra.mxu0 0
    %3604 = vmatprep.subr.bf16.mxu0 0
    %3605 = vmatpush2.bf16.msra.mxu0 0
    %3606 = vmatprep.subr.bf16.mxu0 0
    %3607 = vmatpush2.bf16.msra.mxu0 0
    %3608 = vmatprep.subr.bf16.mxu0 0
    %3609 = vmatpush2.bf16.msra.mxu0 0
    %3610 = vmatprep.subr.bf16.mxu0 0
    %3611 = vmatpush2.bf16.msra.mxu0 0
    %3612 = vmatprep.subr.bf16.mxu0 0
    %3613 = vmatpush2.bf16.msra.mxu0 0
    %3614 = vmatprep.mubr.bf16.mxu0 0
    %3615 = vmatmul.mubr.bf16.gmra.mxu0 %v3538
    %v3616 = vpop.f32.mrf.mxu0
    %v3617 = vadd.f32 0.0, %v3616
    %v3618 = vpop.f32.mrf.mxu0
    %v3619 = vpop.f32.mrf.mxu0
    %v3620 = vadd.f32 0.0, %v3619
    %v3621 = vpop.f32.mrf.mxu0
    %3622 = vdwg.mxu0
    %v3623 = vld [vmem:[%s1616] sm:$0xff]
    %v3624 = vld [vmem:[%s1616 + $0x8] sm:$0xf]
    %v3625 = vld [vmem:[%s1616 + $0xc] sm:$0xff]
    %v3626 = vld [vmem:[%s1616 + $0x14] sm:$0xf]
    %v3627 = vunpack.c.l.bf16 %v3623
    %v3628 = vunpack.c.h.bf16 %v3623
    %v3629 = vunpack.c.l.bf16 %v3624
    %v3630 = vunpack.c.l.bf16 %v3625
    %v3631 = vunpack.c.h.bf16 %v3625
    %v3632 = vunpack.c.l.bf16 %v3626
    %v3633 = vadd.f32 %v3627, %v3574
    %v3634 = vadd.f32 %v3628, %v3576
    %v3635 = vadd.f32 %v3630, %v3578
    %v3636 = vadd.f32 %v3631, %v3580
    %v3637 = vxor.u32 %v3633, 2147483648
    %v3638 = vxor.u32 %v3634, 2147483648
    %v3639 = vxor.u32 %v3635, 2147483648
    %v3640 = vxor.u32 %v3636, 2147483648
    %v3641 = vmul.f32 %v3637, 1.442695
    %v3642 = vpow.pop %v3641
    %v3643 = vmul.f32 %v3638, 1.442695
    %v3644 = vpow.pop %v3643
    %v3645 = vmul.f32 %v3639, 1.442695
    %v3646 = vpow.pop %v3645
    %v3647 = vmul.f32 %v3640, 1.442695
    %v3648 = vpow.pop %v3647
    %v3649 = vadd.f32 %v3642, 1.0
    %v3650 = vadd.f32 %v3644, 1.0
    %v3651 = vadd.f32 %v3646, 1.0
    %v3652 = vadd.f32 %v3648, 1.0
    %v3653 = vrcp.pop %v3649
    %v3654 = vmul.f32 1.0, %v3653
    %v3655 = vrcp.pop %v3650
    %v3656 = vmul.f32 1.0, %v3655
    %v3657 = vrcp.pop %v3651
    %v3658 = vmul.f32 1.0, %v3657
    %v3659 = vrcp.pop %v3652
    %v3660 = vmul.f32 1.0, %v3659
    %v3661 = vadd.f32 %v3617, %v2832
    %v3662 = vadd.f32 %v3620, %v2832
    %v3663 = vmul.f32 %v3654, %v3661
    %v3664 = vmul.f32 %v3658, %v3662
    %v3665 = vadd.f32 %v3629, %v3663
    %v3666 = vadd.f32 %v3632, %v3664
    %v3667 = vtanh.pop %v3665
    %v3668 = vtanh.pop %v3666
    %v3669 = vsub.f32 1.0, %v3656
    %v3670 = vsub.f32 1.0, %v3660
    %v3671 = vmul.f32 %v3669, %v3667
    %v3672 = vmul.f32 %v3670, %v3668
    %v3673 = vmul.f32 %v3656, %v3536
    %v3674 = vmul.f32 %v3660, %v3537
    %v3675 = vadd.f32 %v3671, %v3673
    %v3676 = vadd.f32 %v3672, %v3674
    %3677 = vst [vmem:[#allocation4] sm:$0xff] %v3675
    %3678 = vst [vmem:[#allocation4 + $0x8] sm:$0xff] %v3676
    %v3679 = vld [vmem:[#allocation4] sm:$0xff]
    %v3680 = vld [vmem:[#allocation4 + $0x8] sm:$0xff]
    %v3681 = vpack.c.bf16 %v3680, %v3679
    %3682 = vmatprep.subr.bf16.mxu0 %v2941
    %3683 = vmatpush1.bf16.msra.mxu0 %v2940
    %3684 = vmatprep.subr.bf16.mxu0 %v2938
    %3685 = vmatpush1.bf16.msra.mxu0 %v2937
    %3686 = vmatprep.subr.bf16.mxu0 %v2935
    %3687 = vmatpush1.bf16.msra.mxu0 %v2934
    %3688 = vmatprep.subr.bf16.mxu0 %v2932
    %3689 = vmatpush1.bf16.msra.mxu0 %v2931
    %3690 = vmatprep.subr.bf16.mxu0 %v2929
    %3691 = vmatpush1.bf16.msra.mxu0 %v2928
    %3692 = vmatprep.subr.bf16.mxu0 %v2926
    %3693 = vmatpush1.bf16.msra.mxu0 %v2925
    %3694 = vmatprep.subr.bf16.mxu0 %v2923
    %3695 = vmatpush1.bf16.msra.mxu0 %v2922
    %3696 = vmatprep.subr.bf16.mxu0 %v2920
    %3697 = vmatpush1.bf16.msra.mxu0 %v2919
    %3698 = vmatprep.subr.bf16.mxu0 0
    %3699 = vmatpush2.bf16.msra.mxu0 0
    %3700 = vmatprep.subr.bf16.mxu0 0
    %3701 = vmatpush2.bf16.msra.mxu0 0
    %3702 = vmatprep.subr.bf16.mxu0 0
    %3703 = vmatpush2.bf16.msra.mxu0 0
    %3704 = vmatprep.subr.bf16.mxu0 0
    %3705 = vmatpush2.bf16.msra.mxu0 0
    %3706 = vmatprep.subr.bf16.mxu0 0
    %3707 = vmatpush2.bf16.msra.mxu0 0
    %3708 = vmatprep.subr.bf16.mxu0 0
    %3709 = vmatpush2.bf16.msra.mxu0 0
    %3710 = vmatprep.subr.bf16.mxu0 0
    %3711 = vmatpush2.bf16.msra.mxu0 0
    %3712 = vmatprep.subr.bf16.mxu0 0
    %3713 = vmatpush2.bf16.msra.mxu0 0
    %3714 = vmatprep.mubr.bf16.mxu0 0
    %3715 = vmatmul.mubr.bf16.gmra.mxu0 %v3681
    %v3716 = vpop.f32.mrf.mxu0
    %v3717 = vadd.f32 0.0, %v3716
    %v3718 = vpop.f32.mrf.mxu0
    %v3719 = vadd.f32 0.0, %v3718
    %v3720 = vpop.f32.mrf.mxu0
    %v3721 = vadd.f32 0.0, %v3720
    %v3722 = vpop.f32.mrf.mxu0
    %v3723 = vadd.f32 0.0, %v3722
    %3724 = vdwg.mxu0
    %3725 = vmatprep.subr.bf16.mxu0 0
    %3726 = vmatpush1.bf16.msra.mxu0 %v2942
    %3727 = vmatprep.subr.bf16.mxu0 0
    %3728 = vmatpush1.bf16.msra.mxu0 %v2939
    %3729 = vmatprep.subr.bf16.mxu0 0
    %3730 = vmatpush1.bf16.msra.mxu0 %v2936
    %3731 = vmatprep.subr.bf16.mxu0 0
    %3732 = vmatpush1.bf16.msra.mxu0 %v2933
    %3733 = vmatprep.subr.bf16.mxu0 0
    %3734 = vmatpush1.bf16.msra.mxu0 %v2930
    %3735 = vmatprep.subr.bf16.mxu0 0
    %3736 = vmatpush1.bf16.msra.mxu0 %v2927
    %3737 = vmatprep.subr.bf16.mxu0 0
    %3738 = vmatpush1.bf16.msra.mxu0 %v2924
    %3739 = vmatprep.subr.bf16.mxu0 0
    %3740 = vmatpush1.bf16.msra.mxu0 %v2921
    %3741 = vmatprep.subr.bf16.mxu0 0
    %3742 = vmatpush2.bf16.msra.mxu0 0
    %3743 = vmatprep.subr.bf16.mxu0 0
    %3744 = vmatpush2.bf16.msra.mxu0 0
    %3745 = vmatprep.subr.bf16.mxu0 0
    %3746 = vmatpush2.bf16.msra.mxu0 0
    %3747 = vmatprep.subr.bf16.mxu0 0
    %3748 = vmatpush2.bf16.msra.mxu0 0
    %3749 = vmatprep.subr.bf16.mxu0 0
    %3750 = vmatpush2.bf16.msra.mxu0 0
    %3751 = vmatprep.subr.bf16.mxu0 0
    %3752 = vmatpush2.bf16.msra.mxu0 0
    %3753 = vmatprep.subr.bf16.mxu0 0
    %3754 = vmatpush2.bf16.msra.mxu0 0
    %3755 = vmatprep.subr.bf16.mxu0 0
    %3756 = vmatpush2.bf16.msra.mxu0 0
    %3757 = vmatprep.mubr.bf16.mxu0 0
    %3758 = vmatmul.mubr.bf16.gmra.mxu0 %v3681
    %v3759 = vpop.f32.mrf.mxu0
    %v3760 = vadd.f32 0.0, %v3759
    %v3761 = vpop.f32.mrf.mxu0
    %v3762 = vpop.f32.mrf.mxu0
    %v3763 = vadd.f32 0.0, %v3762
    %v3764 = vpop.f32.mrf.mxu0
    %3765 = vdwg.mxu0
    %v3766 = vld [vmem:[%s1771] sm:$0xff]
    %v3767 = vld [vmem:[%s1771 + $0x8] sm:$0xf]
    %v3768 = vld [vmem:[%s1771 + $0xc] sm:$0xff]
    %v3769 = vld [vmem:[%s1771 + $0x14] sm:$0xf]
    %v3770 = vunpack.c.l.bf16 %v3766
    %v3771 = vunpack.c.h.bf16 %v3766
    %v3772 = vunpack.c.l.bf16 %v3767
    %v3773 = vunpack.c.l.bf16 %v3768
    %v3774 = vunpack.c.h.bf16 %v3768
    %v3775 = vunpack.c.l.bf16 %v3769
    %v3776 = vadd.f32 %v3770, %v3717
    %v3777 = vadd.f32 %v3771, %v3719
    %v3778 = vadd.f32 %v3773, %v3721
    %v3779 = vadd.f32 %v3774, %v3723
    %v3780 = vxor.u32 %v3776, 2147483648
    %v3781 = vxor.u32 %v3777, 2147483648
    %v3782 = vxor.u32 %v3778, 2147483648
    %v3783 = vxor.u32 %v3779, 2147483648
    %v3784 = vmul.f32 %v3780, 1.442695
    %v3785 = vpow.pop %v3784
    %v3786 = vmul.f32 %v3781, 1.442695
    %v3787 = vpow.pop %v3786
    %v3788 = vmul.f32 %v3782, 1.442695
    %v3789 = vpow.pop %v3788
    %v3790 = vmul.f32 %v3783, 1.442695
    %v3791 = vpow.pop %v3790
    %v3792 = vadd.f32 %v3785, 1.0
    %v3793 = vadd.f32 %v3787, 1.0
    %v3794 = vadd.f32 %v3789, 1.0
    %v3795 = vadd.f32 %v3791, 1.0
    %v3796 = vrcp.pop %v3792
    %v3797 = vmul.f32 1.0, %v3796
    %v3798 = vrcp.pop %v3793
    %v3799 = vmul.f32 1.0, %v3798
    %v3800 = vrcp.pop %v3794
    %v3801 = vmul.f32 1.0, %v3800
    %v3802 = vrcp.pop %v3795
    %v3803 = vmul.f32 1.0, %v3802
    %v3804 = vadd.f32 %v3760, %v2832
    %v3805 = vadd.f32 %v3763, %v2832
    %v3806 = vmul.f32 %v3797, %v3804
    %v3807 = vmul.f32 %v3801, %v3805
    %v3808 = vadd.f32 %v3772, %v3806
    %v3809 = vadd.f32 %v3775, %v3807
    %v3810 = vtanh.pop %v3808
    %v3811 = vtanh.pop %v3809
    %v3812 = vsub.f32 1.0, %v3799
    %v3813 = vsub.f32 1.0, %v3803
    %v3814 = vmul.f32 %v3812, %v3810
    %v3815 = vmul.f32 %v3813, %v3811
    %v3816 = vmul.f32 %v3799, %v3679
    %v3817 = vmul.f32 %v3803, %v3680
    %v3818 = vadd.f32 %v3814, %v3816
    %v3819 = vadd.f32 %v3815, %v3817
    %3820 = vst [vmem:[#allocation4] sm:$0xff] %v3818
    %3821 = vst [vmem:[#allocation4 + $0x8] sm:$0xff] %v3819
    %v3822 = vld [vmem:[#allocation4] sm:$0xff]
    %v3823 = vld [vmem:[#allocation4 + $0x8] sm:$0xff]
    %v3824 = vpack.c.bf16 %v3823, %v3822
    %3825 = vmatprep.subr.bf16.mxu0 %v2941
    %3826 = vmatpush1.bf16.msra.mxu0 %v2940
    %3827 = vmatprep.subr.bf16.mxu0 %v2938
    %3828 = vmatpush1.bf16.msra.mxu0 %v2937
    %3829 = vmatprep.subr.bf16.mxu0 %v2935
    %3830 = vmatpush1.bf16.msra.mxu0 %v2934
    %3831 = vmatprep.subr.bf16.mxu0 %v2932
    %3832 = vmatpush1.bf16.msra.mxu0 %v2931
    %3833 = vmatprep.subr.bf16.mxu0 %v2929
    %3834 = vmatpush1.bf16.msra.mxu0 %v2928
    %3835 = vmatprep.subr.bf16.mxu0 %v2926
    %3836 = vmatpush1.bf16.msra.mxu0 %v2925
    %3837 = vmatprep.subr.bf16.mxu0 %v2923
    %3838 = vmatpush1.bf16.msra.mxu0 %v2922
    %3839 = vmatprep.subr.bf16.mxu0 %v2920
    %3840 = vmatpush1.bf16.msra.mxu0 %v2919
    %3841 = vmatprep.subr.bf16.mxu0 0
    %3842 = vmatpush2.bf16.msra.mxu0 0
    %3843 = vmatprep.subr.bf16.mxu0 0
    %3844 = vmatpush2.bf16.msra.mxu0 0
    %3845 = vmatprep.subr.bf16.mxu0 0
    %3846 = vmatpush2.bf16.msra.mxu0 0
    %3847 = vmatprep.subr.bf16.mxu0 0
    %3848 = vmatpush2.bf16.msra.mxu0 0
    %3849 = vmatprep.subr.bf16.mxu0 0
    %3850 = vmatpush2.bf16.msra.mxu0 0
    %3851 = vmatprep.subr.bf16.mxu0 0
    %3852 = vmatpush2.bf16.msra.mxu0 0
    %3853 = vmatprep.subr.bf16.mxu0 0
    %3854 = vmatpush2.bf16.msra.mxu0 0
    %3855 = vmatprep.subr.bf16.mxu0 0
    %3856 = vmatpush2.bf16.msra.mxu0 0
    %3857 = vmatprep.mubr.bf16.mxu0 0
    %3858 = vmatmul.mubr.bf16.gmra.mxu0 %v3824
    %v3859 = vpop.f32.mrf.mxu0
    %v3860 = vadd.f32 0.0, %v3859
    %v3861 = vpop.f32.mrf.mxu0
    %v3862 = vadd.f32 0.0, %v3861
    %v3863 = vpop.f32.mrf.mxu0
    %v3864 = vadd.f32 0.0, %v3863
    %v3865 = vpop.f32.mrf.mxu0
    %v3866 = vadd.f32 0.0, %v3865
    %3867 = vdwg.mxu0
    %3868 = vmatprep.subr.bf16.mxu0 0
    %3869 = vmatpush1.bf16.msra.mxu0 %v2942
    %3870 = vmatprep.subr.bf16.mxu0 0
    %3871 = vmatpush1.bf16.msra.mxu0 %v2939
    %3872 = vmatprep.subr.bf16.mxu0 0
    %3873 = vmatpush1.bf16.msra.mxu0 %v2936
    %3874 = vmatprep.subr.bf16.mxu0 0
    %3875 = vmatpush1.bf16.msra.mxu0 %v2933
    %3876 = vmatprep.subr.bf16.mxu0 0
    %3877 = vmatpush1.bf16.msra.mxu0 %v2930
    %3878 = vmatprep.subr.bf16.mxu0 0
    %3879 = vmatpush1.bf16.msra.mxu0 %v2927
    %3880 = vmatprep.subr.bf16.mxu0 0
    %3881 = vmatpush1.bf16.msra.mxu0 %v2924
    %3882 = vmatprep.subr.bf16.mxu0 0
    %3883 = vmatpush1.bf16.msra.mxu0 %v2921
    %3884 = vmatprep.subr.bf16.mxu0 0
    %3885 = vmatpush2.bf16.msra.mxu0 0
    %3886 = vmatprep.subr.bf16.mxu0 0
    %3887 = vmatpush2.bf16.msra.mxu0 0
    %3888 = vmatprep.subr.bf16.mxu0 0
    %3889 = vmatpush2.bf16.msra.mxu0 0
    %3890 = vmatprep.subr.bf16.mxu0 0
    %3891 = vmatpush2.bf16.msra.mxu0 0
    %3892 = vmatprep.subr.bf16.mxu0 0
    %3893 = vmatpush2.bf16.msra.mxu0 0
    %3894 = vmatprep.subr.bf16.mxu0 0
    %3895 = vmatpush2.bf16.msra.mxu0 0
    %3896 = vmatprep.subr.bf16.mxu0 0
    %3897 = vmatpush2.bf16.msra.mxu0 0
    %3898 = vmatprep.subr.bf16.mxu0 0
    %3899 = vmatpush2.bf16.msra.mxu0 0
    %3900 = vmatprep.mubr.bf16.mxu0 0
    %3901 = vmatmul.mubr.bf16.gmra.mxu0 %v3824
    %v3902 = vpop.f32.mrf.mxu0
    %v3903 = vadd.f32 0.0, %v3902
    %v3904 = vpop.f32.mrf.mxu0
    %v3905 = vpop.f32.mrf.mxu0
    %v3906 = vadd.f32 0.0, %v3905
    %v3907 = vpop.f32.mrf.mxu0
    %3908 = vdwg.mxu0
    %v3909 = vld [vmem:[%s1926] sm:$0xff]
    %v3910 = vld [vmem:[%s1926 + $0x8] sm:$0xf]
    %v3911 = vld [vmem:[%s1926 + $0xc] sm:$0xff]
    %v3912 = vld [vmem:[%s1926 + $0x14] sm:$0xf]
    %v3913 = vunpack.c.l.bf16 %v3909
    %v3914 = vunpack.c.h.bf16 %v3909
    %v3915 = vunpack.c.l.bf16 %v3910
    %v3916 = vunpack.c.l.bf16 %v3911
    %v3917 = vunpack.c.h.bf16 %v3911
    %v3918 = vunpack.c.l.bf16 %v3912
    %v3919 = vadd.f32 %v3913, %v3860
    %v3920 = vadd.f32 %v3914, %v3862
    %v3921 = vadd.f32 %v3916, %v3864
    %v3922 = vadd.f32 %v3917, %v3866
    %v3923 = vxor.u32 %v3919, 2147483648
    %v3924 = vxor.u32 %v3920, 2147483648
    %v3925 = vxor.u32 %v3921, 2147483648
    %v3926 = vxor.u32 %v3922, 2147483648
    %v3927 = vmul.f32 %v3923, 1.442695
    %v3928 = vpow.pop %v3927
    %v3929 = vmul.f32 %v3924, 1.442695
    %v3930 = vpow.pop %v3929
    %v3931 = vmul.f32 %v3925, 1.442695
    %v3932 = vpow.pop %v3931
    %v3933 = vmul.f32 %v3926, 1.442695
    %v3934 = vpow.pop %v3933
    %v3935 = vadd.f32 %v3928, 1.0
    %v3936 = vadd.f32 %v3930, 1.0
    %v3937 = vadd.f32 %v3932, 1.0
    %v3938 = vadd.f32 %v3934, 1.0
    %v3939 = vrcp.pop %v3935
    %v3940 = vmul.f32 1.0, %v3939
    %v3941 = vrcp.pop %v3936
    %v3942 = vmul.f32 1.0, %v3941
    %v3943 = vrcp.pop %v3937
    %v3944 = vmul.f32 1.0, %v3943
    %v3945 = vrcp.pop %v3938
    %v3946 = vmul.f32 1.0, %v3945
    %v3947 = vadd.f32 %v3903, %v2832
    %v3948 = vadd.f32 %v3906, %v2832
    %v3949 = vmul.f32 %v3940, %v3947
    %v3950 = vmul.f32 %v3944, %v3948
    %v3951 = vadd.f32 %v3915, %v3949
    %v3952 = vadd.f32 %v3918, %v3950
    %v3953 = vtanh.pop %v3951
    %v3954 = vtanh.pop %v3952
    %v3955 = vsub.f32 1.0, %v3942
    %v3956 = vsub.f32 1.0, %v3946
    %v3957 = vmul.f32 %v3955, %v3953
    %v3958 = vmul.f32 %v3956, %v3954
    %v3959 = vmul.f32 %v3942, %v3822
    %v3960 = vmul.f32 %v3946, %v3823
    %v3961 = vadd.f32 %v3957, %v3959
    %v3962 = vadd.f32 %v3958, %v3960
    %3963 = vst [vmem:[#allocation4] sm:$0xff] %v3961
    %3964 = vst [vmem:[#allocation4 + $0x8] sm:$0xff] %v3962
    %v3965 = vld [vmem:[#allocation4] sm:$0xff]
    %v3966 = vld [vmem:[#allocation4 + $0x8] sm:$0xff]
    %v3967 = vpack.c.bf16 %v3966, %v3965
    %3968 = vmatprep.subr.bf16.mxu0 %v2941
    %3969 = vmatpush1.bf16.msra.mxu0 %v2940
    %3970 = vmatprep.subr.bf16.mxu0 %v2938
    %3971 = vmatpush1.bf16.msra.mxu0 %v2937
    %3972 = vmatprep.subr.bf16.mxu0 %v2935
    %3973 = vmatpush1.bf16.msra.mxu0 %v2934
    %3974 = vmatprep.subr.bf16.mxu0 %v2932
    %3975 = vmatpush1.bf16.msra.mxu0 %v2931
    %3976 = vmatprep.subr.bf16.mxu0 %v2929
    %3977 = vmatpush1.bf16.msra.mxu0 %v2928
    %3978 = vmatprep.subr.bf16.mxu0 %v2926
    %3979 = vmatpush1.bf16.msra.mxu0 %v2925
    %3980 = vmatprep.subr.bf16.mxu0 %v2923
    %3981 = vmatpush1.bf16.msra.mxu0 %v2922
    %3982 = vmatprep.subr.bf16.mxu0 %v2920
    %3983 = vmatpush1.bf16.msra.mxu0 %v2919
    %3984 = vmatprep.subr.bf16.mxu0 0
    %3985 = vmatpush2.bf16.msra.mxu0 0
    %3986 = vmatprep.subr.bf16.mxu0 0
    %3987 = vmatpush2.bf16.msra.mxu0 0
    %3988 = vmatprep.subr.bf16.mxu0 0
    %3989 = vmatpush2.bf16.msra.mxu0 0
    %3990 = vmatprep.subr.bf16.mxu0 0
    %3991 = vmatpush2.bf16.msra.mxu0 0
    %3992 = vmatprep.subr.bf16.mxu0 0
    %3993 = vmatpush2.bf16.msra.mxu0 0
    %3994 = vmatprep.subr.bf16.mxu0 0
    %3995 = vmatpush2.bf16.msra.mxu0 0
    %3996 = vmatprep.subr.bf16.mxu0 0
    %3997 = vmatpush2.bf16.msra.mxu0 0
    %3998 = vmatprep.subr.bf16.mxu0 0
    %3999 = vmatpush2.bf16.msra.mxu0 0
    %4000 = vmatprep.mubr.bf16.mxu0 0
    %4001 = vmatmul.mubr.bf16.gmra.mxu0 %v3967
    %v4002 = vpop.f32.mrf.mxu0
    %v4003 = vadd.f32 0.0, %v4002
    %v4004 = vpop.f32.mrf.mxu0
    %v4005 = vadd.f32 0.0, %v4004
    %v4006 = vpop.f32.mrf.mxu0
    %v4007 = vadd.f32 0.0, %v4006
    %v4008 = vpop.f32.mrf.mxu0
    %v4009 = vadd.f32 0.0, %v4008
    %4010 = vdwg.mxu0
    %4011 = vmatprep.subr.bf16.mxu0 0
    %4012 = vmatpush1.bf16.msra.mxu0 %v2942
    %4013 = vmatprep.subr.bf16.mxu0 0
    %4014 = vmatpush1.bf16.msra.mxu0 %v2939
    %4015 = vmatprep.subr.bf16.mxu0 0
    %4016 = vmatpush1.bf16.msra.mxu0 %v2936
    %4017 = vmatprep.subr.bf16.mxu0 0
    %4018 = vmatpush1.bf16.msra.mxu0 %v2933
    %4019 = vmatprep.subr.bf16.mxu0 0
    %4020 = vmatpush1.bf16.msra.mxu0 %v2930
    %4021 = vmatprep.subr.bf16.mxu0 0
    %4022 = vmatpush1.bf16.msra.mxu0 %v2927
    %4023 = vmatprep.subr.bf16.mxu0 0
    %4024 = vmatpush1.bf16.msra.mxu0 %v2924
    %4025 = vmatprep.subr.bf16.mxu0 0
    %4026 = vmatpush1.bf16.msra.mxu0 %v2921
    %4027 = vmatprep.subr.bf16.mxu0 0
    %4028 = vmatpush2.bf16.msra.mxu0 0
    %4029 = vmatprep.subr.bf16.mxu0 0
    %4030 = vmatpush2.bf16.msra.mxu0 0
    %4031 = vmatprep.subr.bf16.mxu0 0
    %4032 = vmatpush2.bf16.msra.mxu0 0
    %4033 = vmatprep.subr.bf16.mxu0 0
    %4034 = vmatpush2.bf16.msra.mxu0 0
    %4035 = vmatprep.subr.bf16.mxu0 0
    %4036 = vmatpush2.bf16.msra.mxu0 0
    %4037 = vmatprep.subr.bf16.mxu0 0
    %4038 = vmatpush2.bf16.msra.mxu0 0
    %4039 = vmatprep.subr.bf16.mxu0 0
    %4040 = vmatpush2.bf16.msra.mxu0 0
    %4041 = vmatprep.subr.bf16.mxu0 0
    %4042 = vmatpush2.bf16.msra.mxu0 0
    %4043 = vmatprep.mubr.bf16.mxu0 0
    %4044 = vmatmul.mubr.bf16.gmra.mxu0 %v3967
    %v4045 = vpop.f32.mrf.mxu0
    %v4046 = vadd.f32 0.0, %v4045
    %v4047 = vpop.f32.mrf.mxu0
    %v4048 = vpop.f32.mrf.mxu0
    %v4049 = vadd.f32 0.0, %v4048
    %v4050 = vpop.f32.mrf.mxu0
    %4051 = vdwg.mxu0
    %v4052 = vld [vmem:[%s2081] sm:$0xff]
    %v4053 = vld [vmem:[%s2081 + $0x8] sm:$0xf]
    %v4054 = vld [vmem:[%s2081 + $0xc] sm:$0xff]
    %v4055 = vld [vmem:[%s2081 + $0x14] sm:$0xf]
    %v4056 = vunpack.c.l.bf16 %v4052
    %v4057 = vunpack.c.h.bf16 %v4052
    %v4058 = vunpack.c.l.bf16 %v4053
    %v4059 = vunpack.c.l.bf16 %v4054
    %v4060 = vunpack.c.h.bf16 %v4054
    %v4061 = vunpack.c.l.bf16 %v4055
    %v4062 = vadd.f32 %v4056, %v4003
    %v4063 = vadd.f32 %v4057, %v4005
    %v4064 = vadd.f32 %v4059, %v4007
    %v4065 = vadd.f32 %v4060, %v4009
    %v4066 = vxor.u32 %v4062, 2147483648
    %v4067 = vxor.u32 %v4063, 2147483648
    %v4068 = vxor.u32 %v4064, 2147483648
    %v4069 = vxor.u32 %v4065, 2147483648
    %v4070 = vmul.f32 %v4066, 1.442695
    %v4071 = vpow.pop %v4070
    %v4072 = vmul.f32 %v4067, 1.442695
    %v4073 = vpow.pop %v4072
    %v4074 = vmul.f32 %v4068, 1.442695
    %v4075 = vpow.pop %v4074
    %v4076 = vmul.f32 %v4069, 1.442695
    %v4077 = vpow.pop %v4076
    %v4078 = vadd.f32 %v4071, 1.0
    %v4079 = vadd.f32 %v4073, 1.0
    %v4080 = vadd.f32 %v4075, 1.0
    %v4081 = vadd.f32 %v4077, 1.0
    %v4082 = vrcp.pop %v4078
    %v4083 = vmul.f32 1.0, %v4082
    %v4084 = vrcp.pop %v4079
    %v4085 = vmul.f32 1.0, %v4084
    %v4086 = vrcp.pop %v4080
    %v4087 = vmul.f32 1.0, %v4086
    %v4088 = vrcp.pop %v4081
    %v4089 = vmul.f32 1.0, %v4088
    %v4090 = vadd.f32 %v4046, %v2832
    %v4091 = vadd.f32 %v4049, %v2832
    %v4092 = vmul.f32 %v4083, %v4090
    %v4093 = vmul.f32 %v4087, %v4091
    %v4094 = vadd.f32 %v4058, %v4092
    %v4095 = vadd.f32 %v4061, %v4093
    %v4096 = vtanh.pop %v4094
    %v4097 = vtanh.pop %v4095
    %v4098 = vsub.f32 1.0, %v4085
    %v4099 = vsub.f32 1.0, %v4089
    %v4100 = vmul.f32 %v4098, %v4096
    %v4101 = vmul.f32 %v4099, %v4097
    %v4102 = vmul.f32 %v4085, %v3965
    %v4103 = vmul.f32 %v4089, %v3966
    %v4104 = vadd.f32 %v4100, %v4102
    %v4105 = vadd.f32 %v4101, %v4103
    %4106 = vst [vmem:[#allocation4] sm:$0xff] %v4104
    %4107 = vst [vmem:[#allocation4 + $0x8] sm:$0xff] %v4105
    %v4108 = vld [vmem:[#allocation4] sm:$0xff]
    %v4109 = vld [vmem:[#allocation4 + $0x8] sm:$0xff]
    %v4110 = vpack.c.bf16 %v4109, %v4108
    %v4111 = vld [vmem:[#allocation13] sm:$0xf]
    %v4112 = vld [vmem:[#allocation13 + $0x4] sm:$0xf]
    %v4113 = vld [vmem:[#allocation13 + $0x8] sm:$0xf]
    %v4114 = vld [vmem:[#allocation13 + $0xc] sm:$0xf]
    %v4115 = vld [vmem:[#allocation13 + $0x10] sm:$0xf]
    %v4116 = vld [vmem:[#allocation13 + $0x14] sm:$0xf]
    %v4117 = vld [vmem:[#allocation13 + $0x18] sm:$0xf]
    %v4118 = vld [vmem:[#allocation13 + $0x1c] sm:$0xf]
    %v4119 = vld [vmem:[#allocation13 + $0x20] sm:$0xf]
    %v4120 = vld [vmem:[#allocation13 + $0x24] sm:$0xf]
    %v4121 = vld [vmem:[#allocation13 + $0x28] sm:$0xf]
    %v4122 = vld [vmem:[#allocation13 + $0x2c] sm:$0xf]
    %v4123 = vld [vmem:[#allocation13 + $0x30] sm:$0xf]
    %v4124 = vld [vmem:[#allocation13 + $0x34] sm:$0xf]
    %v4125 = vld [vmem:[#allocation13 + $0x38] sm:$0xf]
    %v4126 = vld [vmem:[#allocation13 + $0x3c] sm:$0xf]
    %v4127 = vld [vmem:[%s7] sm:$0x1]
    %v4129 = vlaneseq
    %v4130 = vshrl.u32 %v4129, 7
    %v4131 = vsub.s32 0, %v4130
    %v4132 = vrot.slane %v4127, %v4131
    %v4150 = vunpack.c.l.b16 %v4111
    %v4151 = vunpack.c.l.b16 %v4112
    %v4152 = vunpack.c.l.b16 %v4113
    %v4153 = vunpack.c.l.b16 %v4114
    %v4154 = vunpack.c.l.b16 %v4115
    %v4155 = vunpack.c.l.b16 %v4116
    %v4156 = vunpack.c.l.b16 %v4117
    %v4157 = vunpack.c.l.b16 %v4118
    %v4158 = vunpack.c.l.b16 %v4119
    %v4159 = vunpack.c.l.b16 %v4120
    %v4160 = vunpack.c.l.b16 %v4121
    %v4161 = vunpack.c.l.b16 %v4122
    %v4162 = vunpack.c.l.b16 %v4123
    %v4163 = vunpack.c.l.b16 %v4124
    %v4164 = vunpack.c.l.b16 %v4125
    %v4165 = vunpack.c.l.b16 %v4126
    %v4166 = vpack.c.b16 %v4151, %v4150
    %v4167 = vpack.c.b16 %v4153, %v4152
    %v4168 = vpack.c.b16 %v4155, %v4154
    %v4169 = vpack.c.b16 %v4157, %v4156
    %v4170 = vpack.c.b16 %v4159, %v4158
    %v4171 = vpack.c.b16 %v4161, %v4160
    %v4172 = vpack.c.b16 %v4163, %v4162
    %v4173 = vpack.c.b16 %v4165, %v4164
    %4182 = vmatprep.subr.bf16.mxu0 0
    %4183 = vmatpush1.bf16.msra.mxu0 %v4173
    %4184 = vmatprep.subr.bf16.mxu0 0
    %4185 = vmatpush1.bf16.msra.mxu0 %v4172
    %4186 = vmatprep.subr.bf16.mxu0 0
    %4187 = vmatpush1.bf16.msra.mxu0 %v4171
    %4188 = vmatprep.subr.bf16.mxu0 0
    %4189 = vmatpush1.bf16.msra.mxu0 %v4170
    %4190 = vmatprep.subr.bf16.mxu0 0
    %4191 = vmatpush1.bf16.msra.mxu0 %v4169
    %4192 = vmatprep.subr.bf16.mxu0 0
    %4193 = vmatpush1.bf16.msra.mxu0 %v4168
    %4194 = vmatprep.subr.bf16.mxu0 0
    %4195 = vmatpush1.bf16.msra.mxu0 %v4167
    %4196 = vmatprep.subr.bf16.mxu0 0
    %4197 = vmatpush1.bf16.msra.mxu0 %v4166
    %4198 = vmatprep.subr.bf16.mxu0 0
    %4199 = vmatpush2.bf16.msra.mxu0 0
    %4200 = vmatprep.subr.bf16.mxu0 0
    %4201 = vmatpush2.bf16.msra.mxu0 0
    %4202 = vmatprep.subr.bf16.mxu0 0
    %4203 = vmatpush2.bf16.msra.mxu0 0
    %4204 = vmatprep.subr.bf16.mxu0 0
    %4205 = vmatpush2.bf16.msra.mxu0 0
    %4206 = vmatprep.subr.bf16.mxu0 0
    %4207 = vmatpush2.bf16.msra.mxu0 0
    %4208 = vmatprep.subr.bf16.mxu0 0
    %4209 = vmatpush2.bf16.msra.mxu0 0
    %4210 = vmatprep.subr.bf16.mxu0 0
    %4211 = vmatpush2.bf16.msra.mxu0 0
    %4212 = vmatprep.subr.bf16.mxu0 0
    %4213 = vmatpush2.bf16.msra.mxu0 0
    %4214 = vmatprep.mubr.bf16.mxu0 0
    %4215 = vmatmul.mubr.bf16.gmra.mxu0 %v4110
    %v4216 = vpop.f32.mrf.mxu0
    %v4217 = vadd.f32 %v4132, %v4216
    %v4218 = vpop.f32.mrf.mxu0
    %v4219 = vpop.f32.mrf.mxu0
    %v4220 = vadd.f32 %v4132, %v4219
    %v4221 = vpop.f32.mrf.mxu0
    %4222 = vdwg.mxu0
    %4223 = vst [vmem:[#allocation14] sm:$0xff] %v4217
    %4224 = vst [vmem:[#allocation14 + $0x8] sm:$0xff] %v4220
    // Predicated region
    $region54: #{tpu_custom_call.1} parent=1 // pred_check
      _
    $region55: #{tpu_custom_call.1} parent=1 // pred_check_branch
      %4226 = sbr.rel (0) target = $region57
    $region56: #{tpu_custom_call.1} parent=1 // pred_region
      %s4228 = ssub.s32 256, 256
      %4229 = vsyncadd [#allocation7], %s4228
      %s4230 = sshll.u32 [#allocation14], 4
      %s4231 = int_to_ptr.vmem [resolvable:$true] %s4230
      %4236 = dma.vmem_to_hbm [thread:$0]  %s4231, 256, %s8, [#allocation7], 128, 128, 8
    $region57: #{tpu_custom_call.1} parent=1 // pred_fallthru
      _
    // Predicated region
    $region58: #{tpu_custom_call.1} parent=1 // pred_check
      _
    $region59: #{tpu_custom_call.1} parent=1 // pred_check_branch
      %4238 = sbr.rel (0) target = $region61
    $region60: #{tpu_custom_call.1} parent=1 // pred_region
      %4239 = dma.done [#allocation7], 256
    $region61: #{tpu_custom_call.1} parent=1 // pred_fallthru
      _
    %4240 = vsyncpa [#allocation6], 1
    %4241 = vsyncpa [#allocation9], 1
    %4242 = vsyncpa [#allocation12], 1
    %4243 = vsyncpa [#allocation7], 1

</llo_original>
